<compile_context>
chip_gen: v6e
topology: v6e:2x2x1
jax: 0.10.0
libtpu: 0.0.40
codegen_flags: <defaults>
</compile_context>

<pallas_src>
import functools

import jax
import jax.numpy as jnp
from jax import lax
from jax.experimental import pallas as pl
from jax.experimental.pallas import tpu as pltpu


# ------------------------------- kernel --------------------------------------
def _bottleneck_kernel(x_ref, xt_ref, xb_ref,
                       w1_ref, w2c_ref, w3_ref,
                       b1_ref, b2_ref, b3_ref,
                       o_ref, s_ref):
    # Shapes (batch dim squeezed away by pl.Squeezed()):
    #   x_ref   : (TR, W, Cin)   bf16  interior rows (also the residual source)
    #   xt_ref  : (1, W, Cin)    bf16  row above tile (clamped; zeroed at r==0)
    #   xb_ref  : (1, W, Cin)    bf16  row below tile (clamped; zeroed at r==last)
    #   w1_ref  : (Cin, P)       bf16  conv1 weight, bn1 scale folded in
    #   w2c_ref : (3, 3P, P)     bf16  conv2 weight laid out (ky, kx*ci, co), bn2 folded
    #   w3_ref  : (P, Cout)      bf16  conv3 weight, bn3 scale folded in
    #   bN_ref  : (1, C)         f32   folded BN biases
    #   o_ref   : (TR, W, Cout)  f32
    #   s_ref   : (TR+2, W, 3P)  bf16  im2col-over-kx scratch (W-shifted conv1 output)
    TR, W, Cin = x_ref.shape
    P = w1_ref.shape[1]
    Cout = o_ref.shape[-1]

    r = pl.program_id(1)
    top_valid = 1.0 - (r == 0).astype(jnp.float32)
    bot_valid = 1.0 - (r == pl.num_programs(1) - 1).astype(jnp.float32)

    def conv1(x2d):  # (M, Cin) bf16 -> (M, P) f32, bn1 bias + relu applied
        y = jnp.dot(x2d, w1_ref[...], preferred_element_type=jnp.float32)
        return jnp.maximum(y + b1_ref[...], 0.0)

    def im2col_w(a):  # (R, W, P) bf16 -> (R, W, 3P): taps [x-1, x, x+1], zero-padded in W
        z = jnp.zeros_like(a[:, :1, :])
        left = jnp.concatenate([z, a[:, :W - 1, :]], axis=1)   # a[:, x-1, :]
        right = jnp.concatenate([a[:, 1:, :], z], axis=1)      # a[:, x+1, :]
        return jnp.concatenate([left, a, right], axis=-1)

    # ---- conv1 (1x1, bn1 folded) on interior + the two halo rows -------------
    # Halo rows that fall outside the image are conv2's zero padding -> zeroed.
    h_int = conv1(x_ref[...].reshape(TR * W, Cin)).reshape(TR, W, P)
    h_top = (conv1(xt_ref[...].reshape(W, Cin)) * top_valid).reshape(1, W, P)
    h_bot = (conv1(xb_ref[...].reshape(W, Cin)) * bot_valid).reshape(1, W, P)

    # Write the kx-shifted, lane-concatenated conv1 output into the scratch once.
    s_ref[1:TR + 1] = im2col_w(h_int.astype(jnp.bfloat16))
    s_ref[0:1] = im2col_w(h_top.astype(jnp.bfloat16))
    s_ref[TR + 1:TR + 2] = im2col_w(h_bot.astype(jnp.bfloat16))

    # ---- conv2 (3x3, stride 1, pad 1, bn2 folded): 3 MXU matmuls, K = 3P -----
    acc = jnp.zeros((TR * W, P), jnp.float32)
    for ky in range(3):
        lhs = s_ref[ky:ky + TR].reshape(TR * W, 3 * P)   # contiguous plane slice
        acc = acc + jnp.dot(lhs, w2c_ref[ky], preferred_element_type=jnp.float32)
    h2 = jnp.maximum(acc + b2_ref[...], 0.0)             # (TR*W, P) f32

    # ---- conv3 (1x1, bn3 folded) + bias + residual + relu --------------------
    h3 = jnp.dot(h2.astype(jnp.bfloat16), w3_ref[...],
                 preferred_element_type=jnp.float32) + b3_ref[...]
    res = x_ref[...].astype(jnp.float32).reshape(TR * W, Cout)
    o_ref[...] = jnp.maximum(h3 + res, 0.0).reshape(TR, W, Cout).astype(o_ref.dtype)


# ------------------------------- wrapper --------------------------------------
def _pick_row_tile(H):
    # Biggest row tile that divides H while keeping a few pipeline steps per
    # batch element (cap keeps the per-step footprint well under v7x's VMEM).
    cap = H if H <= 16 else min(64, max(8, H // 4))
    for t in range(cap, 0, -1):
        if H % t == 0:
            return t
    return 1


def bottleneck_pallas(x_nhwc, folded_params, *, row_tile=None):
    """Bottleneck forward (stride=1, downsample=None), NHWC layout.

    x_nhwc: (B, H, W, Cin) float32 -> (B, H, W, Cin) float32.
    Keep the surrounding model NHWC end-to-end to avoid layout transposes.
    """
    w1, w2c, w3, b1, b2, b3 = folded_params
    B, H, W, Cin = x_nhwc.shape
    P = w1.shape[1]
    Cout = w3.shape[1]
    assert Cout == Cin, "downsample=None requires inplanes == planes * expansion"
    assert W % 8 == 0, "W should be a multiple of 8 for layout-free reshapes"
    TR = row_tile if row_tile is not None else _pick_row_tile(H)
    TR = min(TR, H)
    assert H % TR == 0, "H must be divisible by the row tile"
    n_rt = H // TR

    # bf16 activations in HBM (halves activation DMA traffic); f32 output.
    x_bf = x_nhwc.astype(jnp.bfloat16)

    def const(arr):                      # grid-invariant: fetched once, VMEM resident
        nd = arr.ndim
        return pl.BlockSpec(arr.shape, lambda b, r: (0,) * nd)

    flops = 2 * B * H * W * (Cin * P + 9 * P * P + P * Cout)
    bytes_accessed = (B * H * W * Cin * 2 + B * H * W * Cout * 4
                      + (Cin * P + 9 * P * P + P * Cout) * 2 + (2 * P + Cout) * 4)

    return pl.pallas_call(
        _bottleneck_kernel,
        out_shape=jax.ShapeDtypeStruct((B, H, W, Cout), x_nhwc.dtype),
        grid=(B, n_rt),
        in_specs=[
            # interior rows of the tile
            pl.BlockSpec((pl.Squeezed(), TR, W, Cin), lambda b, r: (b, r, 0, 0)),
            # one halo row above / below (index clamped; zeroed in-kernel at borders)
            pl.BlockSpec((pl.Squeezed(), 1, W, Cin),
                         lambda b, r: (b, jnp.maximum(r * TR - 1, 0), 0, 0)),
            pl.BlockSpec((pl.Squeezed(), 1, W, Cin),
                         lambda b, r: (b, jnp.minimum((r + 1) * TR, H - 1), 0, 0)),
            const(w1), const(w2c), const(w3),
            const(b1), const(b2), const(b3),
        ],
        out_specs=pl.BlockSpec((pl.Squeezed(), TR, W, Cout),
                               lambda b, r: (b, r, 0, 0)),
        scratch_shapes=[pltpu.VMEM((TR + 2, W, 3 * P), jnp.bfloat16)],
        compiler_params=pltpu.CompilerParams(
            dimension_semantics=("parallel", "parallel"),
            # Safe on v7x's 64 MiB VMEM; on v5e/v6e (128 MiB) this plus
            # row_tile can be raised further (up to full-image tiles).
            vmem_limit_bytes=48 * 1024 * 1024),
        cost_estimate=pl.CostEstimate(flops=flops, transcendentals=0,
                                      bytes_accessed=bytes_accessed),
    )(x_bf, x_bf, x_bf, w1, w2c, w3, b1, b2, b3)


# --------------------------- parameters & folding ----------------------------
def make_raw_params(key, inplanes, planes, eps=1e-5):
    """Random conv weights (matmul layout) + BN stats, like the torch module."""
    expansion = 4
    cout = planes * expansion
    k = jax.random.split(key, 6)
    w1 = 0.05 * jax.random.normal(k[0], (inplanes, planes), jnp.float32)
    w2 = 0.05 * jax.random.normal(k[1], (3, 3, planes, planes), jnp.float32)
    w3 = 0.05 * jax.random.normal(k[2], (planes, cout), jnp.float32)

    def bn(kk, c):
        gamma = 1.0 + 0.1 * jax.random.normal(kk, (c,), jnp.float32)
        beta = 0.05 * jnp.arange(c, dtype=jnp.float32) / c
        mean = 0.02 * jnp.arange(c, dtype=jnp.float32) / c
        var = 1.0 + 0.01 * jnp.arange(c, dtype=jnp.float32) / c
        return gamma, beta, mean, var

    return dict(w1=w1, w2=w2, w3=w3,
                bn1=bn(k[3], planes), bn2=bn(k[4], planes), bn3=bn(k[5], cout),
                eps=eps)


def fold_params(raw):
    """Fold eval-mode BN into conv weights (bf16) + per-channel biases (f32)."""
    eps = raw["eps"]

    def fold(gamma, beta, mean, var):
        scale = gamma / jnp.sqrt(var + eps)
        return scale, beta - mean * scale

    s1, b1 = fold(*raw["bn1"])
    s2, b2 = fold(*raw["bn2"])
    s3, b3 = fold(*raw["bn3"])

    w1f = (raw["w1"] * s1[None, :]).astype(jnp.bfloat16)
    w2f = raw["w2"] * s2[None, None, None, :]
    kh, kw, ci, co = w2f.shape
    # (ky, kx, ci, co) -> (ky, kx*ci, co): matches the kernel's kx-major im2col lanes.
    w2c = w2f.reshape(kh, kw * ci, co).astype(jnp.bfloat16)
    w3f = (raw["w3"] * s3[None, :]).astype(jnp.bfloat16)
    return (w1f, w2c, w3f,
            b1.reshape(1, -1), b2.reshape(1, -1), b3.reshape(1, -1))


# ----------------------------- reference (pure JAX) ---------------------------
def bottleneck_ref(x_nhwc, raw):
    eps = raw["eps"]

    def conv(x, w_hwio, padding):
        return lax.conv_general_dilated(
            x, w_hwio, window_strides=(1, 1), padding=padding,
            dimension_numbers=("NHWC", "HWIO", "NHWC"),
            precision=lax.Precision.HIGHEST)

    def bn(x, params):
        gamma, beta, mean, var = params
        scale = gamma / jnp.sqrt(var + eps)
        bias = beta - mean * scale
        return x * scale.reshape(1, 1, 1, -1) + bias.reshape(1, 1, 1, -1)

    relu = lambda v: jnp.maximum(v, 0.0)
    h = relu(bn(conv(x_nhwc, raw["w1"][None, None], "VALID"), raw["bn1"]))
    h = relu(bn(conv(h, raw["w2"], [(1, 1), (1, 1)]), raw["bn2"]))
    h = bn(conv(h, raw["w3"][None, None], "VALID"), raw["bn3"])
    return relu(h + x_nhwc)


# ----------------------------------- main -------------------------------------
if __name__ == "__main__":
    key = jax.random.PRNGKey(0)
    kx, kp = jax.random.split(key)

    # Bottleneck(256, 64): the no-downsample block used inside HRNet's layer1
    # (realistic channel counts keep the lane axis dense; spatial kept small).
    B, planes, H, W = 2, 64, 32, 32
    inplanes = planes * 4                                          # 256
    x = jax.random.normal(kx, (B, H, W, inplanes), jnp.float32)    # NHWC

    raw = make_raw_params(kp, inplanes, planes)
    folded = fold_params(raw)

    run = jax.jit(functools.partial(bottleneck_pallas, row_tile=16))   # grid (2, 2)
    out = jax.block_until_ready(run(x, folded))

    ref = bottleneck_ref(x, raw)
    assert out.shape == (B, H, W, inplanes)
    max_err = float(jnp.max(jnp.abs(out - ref)))
    # bf16 weights + bf16 HBM activations (incl. the residual read) bound accuracy.
    assert jnp.allclose(out, ref, atol=6e-2, rtol=3e-2), (
        f"mismatch vs reference: max abs err {max_err}")

    print("KERNEL_OK")
</pallas_src>

<mosaic_0001>
module attributes {stable_mosaic.version = 11 : i64} {
  func.func @_bottleneck_kernel(%arg0: i32, %arg1: i32, %arg2: memref<1x16x32x256xbf16, #tpu.memory_space<vmem>>, %arg3: memref<1x1x32x256xbf16, #tpu.memory_space<vmem>>, %arg4: memref<1x1x32x256xbf16, #tpu.memory_space<vmem>>, %arg5: memref<256x64xbf16, #tpu.memory_space<vmem>>, %arg6: memref<3x192x64xbf16, #tpu.memory_space<vmem>>, %arg7: memref<64x256xbf16, #tpu.memory_space<vmem>>, %arg8: memref<1x64xf32, #tpu.memory_space<vmem>>, %arg9: memref<1x64xf32, #tpu.memory_space<vmem>>, %arg10: memref<1x256xf32, #tpu.memory_space<vmem>>, %arg11: memref<1x16x32x256xf32, #tpu.memory_space<vmem>>, %arg12: memref<18x32x192xbf16, #tpu.memory_space<vmem>>) attributes {dimension_semantics = [#tpu.dimension_semantics<parallel>, #tpu.dimension_semantics<parallel>], iteration_bounds = array<i64: 2, 2>, scalar_prefetch = 0 : i64, scratch_operands = 1 : i64, tpu.core_type = #tpu.core_type<tc>, window_params = [{transform_indices = @transform_0, window_bounds = array<i64: 1, 16, 32, 256>}, {transform_indices = @transform_1, window_bounds = array<i64: 1, 1, 32, 256>}, {transform_indices = @transform_2, window_bounds = array<i64: 1, 1, 32, 256>}, {pipeline_mode = #tpu.pipeline_mode<synchronous>, transform_indices = @transform_3, window_bounds = array<i64: 256, 64>}, {pipeline_mode = #tpu.pipeline_mode<synchronous>, transform_indices = @transform_4, window_bounds = array<i64: 3, 192, 64>}, {pipeline_mode = #tpu.pipeline_mode<synchronous>, transform_indices = @transform_5, window_bounds = array<i64: 64, 256>}, {pipeline_mode = #tpu.pipeline_mode<synchronous>, transform_indices = @transform_6, window_bounds = array<i64: 1, 64>}, {pipeline_mode = #tpu.pipeline_mode<synchronous>, transform_indices = @transform_7, window_bounds = array<i64: 1, 64>}, {pipeline_mode = #tpu.pipeline_mode<synchronous>, transform_indices = @transform_8, window_bounds = array<i64: 1, 256>}, {transform_indices = @transform_9, window_bounds = array<i64: 1, 16, 32, 256>}]} {
    %c0_i32 = arith.constant 0 : i32
    %0 = arith.cmpi eq, %arg1, %c0_i32 : i32
    %1 = arith.extui %0 : i1 to i32
    %2 = arith.sitofp %1 : i32 to f32
    %cst = arith.constant 1.000000e+00 : f32
    %3 = arith.subf %cst, %2 : f32
    %c1_i32 = arith.constant 1 : i32
    %4 = arith.cmpi eq, %arg1, %c1_i32 : i32
    %5 = arith.extui %4 : i1 to i32
    %6 = arith.sitofp %5 : i32 to f32
    %cst_0 = arith.constant 1.000000e+00 : f32
    %7 = arith.subf %cst_0, %6 : f32
    %c0 = arith.constant 0 : index
    %c0_1 = arith.constant 0 : index
    %c0_2 = arith.constant 0 : index
    %c0_3 = arith.constant 0 : index
    %8 = vector.load %arg2[%c0, %c0_1, %c0_2, %c0_3] : memref<1x16x32x256xbf16, #tpu.memory_space<vmem>>, vector<1x16x32x256xbf16>
    %9 = vector.shape_cast %8 : vector<1x16x32x256xbf16> to vector<16x32x256xbf16>
    %10 = vector.shape_cast %9 : vector<16x32x256xbf16> to vector<512x256xbf16>
    %c0_4 = arith.constant 0 : index
    %c0_5 = arith.constant 0 : index
    %11 = vector.load %arg5[%c0_4, %c0_5] : memref<256x64xbf16, #tpu.memory_space<vmem>>, vector<256x64xbf16>
    %cst_6 = arith.constant dense<0.000000e+00> : vector<512x64xf32>
    %12 = tpu.matmul %10, %11, %cst_6 {dimension_numbers = #tpu.dot_dimension_numbers<[1], [0], [0], [1], [0, 0, 1, 1], [], []>} : vector<512x256xbf16>, vector<256x64xbf16>, vector<512x64xf32> -> vector<512x64xf32>
    %c0_7 = arith.constant 0 : index
    %c0_8 = arith.constant 0 : index
    %13 = vector.load %arg8[%c0_7, %c0_8] : memref<1x64xf32, #tpu.memory_space<vmem>>, vector<1x64xf32>
    %14 = vector.broadcast %13 : vector<1x64xf32> to vector<512x64xf32>
    %15 = arith.addf %12, %14 : vector<512x64xf32>
    %cst_9 = arith.constant 0.000000e+00 : f32
    %16 = vector.broadcast %cst_9 : f32 to vector<512x64xf32>
    %17 = arith.maximumf %15, %16 : vector<512x64xf32>
    %18 = vector.shape_cast %17 : vector<512x64xf32> to vector<16x32x64xf32>
    %c0_10 = arith.constant 0 : index
    %c0_11 = arith.constant 0 : index
    %c0_12 = arith.constant 0 : index
    %c0_13 = arith.constant 0 : index
    %19 = vector.load %arg3[%c0_10, %c0_11, %c0_12, %c0_13] : memref<1x1x32x256xbf16, #tpu.memory_space<vmem>>, vector<1x1x32x256xbf16>
    %20 = vector.shape_cast %19 : vector<1x1x32x256xbf16> to vector<1x32x256xbf16>
    %21 = vector.shape_cast %20 : vector<1x32x256xbf16> to vector<32x256xbf16>
    %c0_14 = arith.constant 0 : index
    %c0_15 = arith.constant 0 : index
    %22 = vector.load %arg5[%c0_14, %c0_15] : memref<256x64xbf16, #tpu.memory_space<vmem>>, vector<256x64xbf16>
    %cst_16 = arith.constant dense<0.000000e+00> : vector<32x64xf32>
    %23 = tpu.matmul %21, %22, %cst_16 {dimension_numbers = #tpu.dot_dimension_numbers<[1], [0], [0], [1], [0, 0, 1, 1], [], []>} : vector<32x256xbf16>, vector<256x64xbf16>, vector<32x64xf32> -> vector<32x64xf32>
    %c0_17 = arith.constant 0 : index
    %c0_18 = arith.constant 0 : index
    %24 = vector.load %arg8[%c0_17, %c0_18] : memref<1x64xf32, #tpu.memory_space<vmem>>, vector<1x64xf32>
    %25 = vector.broadcast %24 : vector<1x64xf32> to vector<32x64xf32>
    %26 = arith.addf %23, %25 : vector<32x64xf32>
    %cst_19 = arith.constant 0.000000e+00 : f32
    %27 = vector.broadcast %cst_19 : f32 to vector<32x64xf32>
    %28 = arith.maximumf %26, %27 : vector<32x64xf32>
    %29 = vector.broadcast %3 : f32 to vector<32x64xf32>
    %30 = arith.mulf %28, %29 : vector<32x64xf32>
    %31 = vector.shape_cast %30 : vector<32x64xf32> to vector<1x32x64xf32>
    %c0_20 = arith.constant 0 : index
    %c0_21 = arith.constant 0 : index
    %c0_22 = arith.constant 0 : index
    %c0_23 = arith.constant 0 : index
    %32 = vector.load %arg4[%c0_20, %c0_21, %c0_22, %c0_23] : memref<1x1x32x256xbf16, #tpu.memory_space<vmem>>, vector<1x1x32x256xbf16>
    %33 = vector.shape_cast %32 : vector<1x1x32x256xbf16> to vector<1x32x256xbf16>
    %34 = vector.shape_cast %33 : vector<1x32x256xbf16> to vector<32x256xbf16>
    %c0_24 = arith.constant 0 : index
    %c0_25 = arith.constant 0 : index
    %35 = vector.load %arg5[%c0_24, %c0_25] : memref<256x64xbf16, #tpu.memory_space<vmem>>, vector<256x64xbf16>
    %cst_26 = arith.constant dense<0.000000e+00> : vector<32x64xf32>
    %36 = tpu.matmul %34, %35, %cst_26 {dimension_numbers = #tpu.dot_dimension_numbers<[1], [0], [0], [1], [0, 0, 1, 1], [], []>} : vector<32x256xbf16>, vector<256x64xbf16>, vector<32x64xf32> -> vector<32x64xf32>
    %c0_27 = arith.constant 0 : index
    %c0_28 = arith.constant 0 : index
    %37 = vector.load %arg8[%c0_27, %c0_28] : memref<1x64xf32, #tpu.memory_space<vmem>>, vector<1x64xf32>
    %38 = vector.broadcast %37 : vector<1x64xf32> to vector<32x64xf32>
    %39 = arith.addf %36, %38 : vector<32x64xf32>
    %cst_29 = arith.constant 0.000000e+00 : f32
    %40 = vector.broadcast %cst_29 : f32 to vector<32x64xf32>
    %41 = arith.maximumf %39, %40 : vector<32x64xf32>
    %42 = vector.broadcast %7 : f32 to vector<32x64xf32>
    %43 = arith.mulf %41, %42 : vector<32x64xf32>
    %44 = vector.shape_cast %43 : vector<32x64xf32> to vector<1x32x64xf32>
    %45 = arith.truncf %18 : vector<16x32x64xf32> to vector<16x32x64xbf16>
    %cst_30 = arith.constant 0.000000e+00 : bf16
    %46 = vector.broadcast %cst_30 : bf16 to vector<16x1x64xbf16>
    %47 = vector.extract_strided_slice %45 {offsets = [0, 0, 0], sizes = [16, 31, 64], strides = [1, 1, 1]} : vector<16x32x64xbf16> to vector<16x31x64xbf16>
    %48 = tpu.concatenate %46, %47 in 1 : vector<16x1x64xbf16>, vector<16x31x64xbf16> -> vector<16x32x64xbf16>
    %49 = vector.extract_strided_slice %45 {offsets = [0, 1, 0], sizes = [16, 31, 64], strides = [1, 1, 1]} : vector<16x32x64xbf16> to vector<16x31x64xbf16>
    %50 = tpu.concatenate %49, %46 in 1 : vector<16x31x64xbf16>, vector<16x1x64xbf16> -> vector<16x32x64xbf16>
    %51 = tpu.concatenate %48, %45, %50 in 2 : vector<16x32x64xbf16>, vector<16x32x64xbf16>, vector<16x32x64xbf16> -> vector<16x32x192xbf16>
    %c1 = arith.constant 1 : index
    %c0_31 = arith.constant 0 : index
    %c0_32 = arith.constant 0 : index
    %52 = vector.load %arg12[%c1, %c0_31, %c0_32] : memref<18x32x192xbf16, #tpu.memory_space<vmem>>, vector<16x32x192xbf16>
    tpu.vector_store %arg12[%c1, %c0_31, %c0_32], %51 {strides = array<i32>} : memref<18x32x192xbf16, #tpu.memory_space<vmem>>, vector<16x32x192xbf16>,
    %53 = arith.truncf %31 : vector<1x32x64xf32> to vector<1x32x64xbf16>
    %cst_33 = arith.constant 0.000000e+00 : bf16
    %54 = vector.broadcast %cst_33 : bf16 to vector<1x1x64xbf16>
    %55 = vector.extract_strided_slice %53 {offsets = [0, 0, 0], sizes = [1, 31, 64], strides = [1, 1, 1]} : vector<1x32x64xbf16> to vector<1x31x64xbf16>
    %56 = tpu.concatenate %54, %55 in 1 : vector<1x1x64xbf16>, vector<1x31x64xbf16> -> vector<1x32x64xbf16>
    %57 = vector.extract_strided_slice %53 {offsets = [0, 1, 0], sizes = [1, 31, 64], strides = [1, 1, 1]} : vector<1x32x64xbf16> to vector<1x31x64xbf16>
    %58 = tpu.concatenate %57, %54 in 1 : vector<1x31x64xbf16>, vector<1x1x64xbf16> -> vector<1x32x64xbf16>
    %59 = tpu.concatenate %56, %53, %58 in 2 : vector<1x32x64xbf16>, vector<1x32x64xbf16>, vector<1x32x64xbf16> -> vector<1x32x192xbf16>
    %c0_34 = arith.constant 0 : index
    %c0_35 = arith.constant 0 : index
    %c0_36 = arith.constant 0 : index
    %60 = vector.load %arg12[%c0_34, %c0_35, %c0_36] : memref<18x32x192xbf16, #tpu.memory_space<vmem>>, vector<1x32x192xbf16>
    tpu.vector_store %arg12[%c0_34, %c0_35, %c0_36], %59 {strides = array<i32>} : memref<18x32x192xbf16, #tpu.memory_space<vmem>>, vector<1x32x192xbf16>,
    %61 = arith.truncf %44 : vector<1x32x64xf32> to vector<1x32x64xbf16>
    %cst_37 = arith.constant 0.000000e+00 : bf16
    %62 = vector.broadcast %cst_37 : bf16 to vector<1x1x64xbf16>
    %63 = vector.extract_strided_slice %61 {offsets = [0, 0, 0], sizes = [1, 31, 64], strides = [1, 1, 1]} : vector<1x32x64xbf16> to vector<1x31x64xbf16>
    %64 = tpu.concatenate %62, %63 in 1 : vector<1x1x64xbf16>, vector<1x31x64xbf16> -> vector<1x32x64xbf16>
    %65 = vector.extract_strided_slice %61 {offsets = [0, 1, 0], sizes = [1, 31, 64], strides = [1, 1, 1]} : vector<1x32x64xbf16> to vector<1x31x64xbf16>
    %66 = tpu.concatenate %65, %62 in 1 : vector<1x31x64xbf16>, vector<1x1x64xbf16> -> vector<1x32x64xbf16>
    %67 = tpu.concatenate %64, %61, %66 in 2 : vector<1x32x64xbf16>, vector<1x32x64xbf16>, vector<1x32x64xbf16> -> vector<1x32x192xbf16>
    %c17 = arith.constant 17 : index
    %c0_38 = arith.constant 0 : index
    %c0_39 = arith.constant 0 : index
    %68 = vector.load %arg12[%c17, %c0_38, %c0_39] : memref<18x32x192xbf16, #tpu.memory_space<vmem>>, vector<1x32x192xbf16>
    tpu.vector_store %arg12[%c17, %c0_38, %c0_39], %67 {strides = array<i32>} : memref<18x32x192xbf16, #tpu.memory_space<vmem>>, vector<1x32x192xbf16>,
    %cst_40 = arith.constant 0.000000e+00 : f32
    %69 = vector.broadcast %cst_40 : f32 to vector<512x64xf32>
    %c0_41 = arith.constant 0 : index
    %c0_42 = arith.constant 0 : index
    %c0_43 = arith.constant 0 : index
    %70 = vector.load %arg12[%c0_41, %c0_42, %c0_43] : memref<18x32x192xbf16, #tpu.memory_space<vmem>>, vector<16x32x192xbf16>
    %71 = vector.shape_cast %70 : vector<16x32x192xbf16> to vector<512x192xbf16>
    %c0_44 = arith.constant 0 : index
    %c0_45 = arith.constant 0 : index
    %c0_46 = arith.constant 0 : index
    %72 = vector.load %arg6[%c0_44, %c0_45, %c0_46] : memref<3x192x64xbf16, #tpu.memory_space<vmem>>, vector<1x192x64xbf16>
    %73 = vector.shape_cast %72 : vector<1x192x64xbf16> to vector<192x64xbf16>
    %cst_47 = arith.constant dense<0.000000e+00> : vector<512x64xf32>
    %74 = tpu.matmul %71, %73, %cst_47 {dimension_numbers = #tpu.dot_dimension_numbers<[1], [0], [0], [1], [0, 0, 1, 1], [], []>} : vector<512x192xbf16>, vector<192x64xbf16>, vector<512x64xf32> -> vector<512x64xf32>
    %75 = arith.addf %69, %74 : vector<512x64xf32>
    %c1_48 = arith.constant 1 : index
    %c0_49 = arith.constant 0 : index
    %c0_50 = arith.constant 0 : index
    %76 = vector.load %arg12[%c1_48, %c0_49, %c0_50] : memref<18x32x192xbf16, #tpu.memory_space<vmem>>, vector<16x32x192xbf16>
    %77 = vector.shape_cast %76 : vector<16x32x192xbf16> to vector<512x192xbf16>
    %c1_51 = arith.constant 1 : index
    %c0_52 = arith.constant 0 : index
    %c0_53 = arith.constant 0 : index
    %78 = vector.load %arg6[%c1_51, %c0_52, %c0_53] : memref<3x192x64xbf16, #tpu.memory_space<vmem>>, vector<1x192x64xbf16>
    %79 = vector.shape_cast %78 : vector<1x192x64xbf16> to vector<192x64xbf16>
    %cst_54 = arith.constant dense<0.000000e+00> : vector<512x64xf32>
    %80 = tpu.matmul %77, %79, %cst_54 {dimension_numbers = #tpu.dot_dimension_numbers<[1], [0], [0], [1], [0, 0, 1, 1], [], []>} : vector<512x192xbf16>, vector<192x64xbf16>, vector<512x64xf32> -> vector<512x64xf32>
    %81 = arith.addf %75, %80 : vector<512x64xf32>
    %c2 = arith.constant 2 : index
    %c0_55 = arith.constant 0 : index
    %c0_56 = arith.constant 0 : index
    %82 = vector.load %arg12[%c2, %c0_55, %c0_56] : memref<18x32x192xbf16, #tpu.memory_space<vmem>>, vector<16x32x192xbf16>
    %83 = vector.shape_cast %82 : vector<16x32x192xbf16> to vector<512x192xbf16>
    %c2_57 = arith.constant 2 : index
    %c0_58 = arith.constant 0 : index
    %c0_59 = arith.constant 0 : index
    %84 = vector.load %arg6[%c2_57, %c0_58, %c0_59] : memref<3x192x64xbf16, #tpu.memory_space<vmem>>, vector<1x192x64xbf16>
    %85 = vector.shape_cast %84 : vector<1x192x64xbf16> to vector<192x64xbf16>
    %cst_60 = arith.constant dense<0.000000e+00> : vector<512x64xf32>
    %86 = tpu.matmul %83, %85, %cst_60 {dimension_numbers = #tpu.dot_dimension_numbers<[1], [0], [0], [1], [0, 0, 1, 1], [], []>} : vector<512x192xbf16>, vector<192x64xbf16>, vector<512x64xf32> -> vector<512x64xf32>
    %87 = arith.addf %81, %86 : vector<512x64xf32>
    %c0_61 = arith.constant 0 : index
    %c0_62 = arith.constant 0 : index
    %88 = vector.load %arg9[%c0_61, %c0_62] : memref<1x64xf32, #tpu.memory_space<vmem>>, vector<1x64xf32>
    %89 = vector.broadcast %88 : vector<1x64xf32> to vector<512x64xf32>
    %90 = arith.addf %87, %89 : vector<512x64xf32>
    %cst_63 = arith.constant 0.000000e+00 : f32
    %91 = vector.broadcast %cst_63 : f32 to vector<512x64xf32>
    %92 = arith.maximumf %90, %91 : vector<512x64xf32>
    %93 = arith.truncf %92 : vector<512x64xf32> to vector<512x64xbf16>
    %c0_64 = arith.constant 0 : index
    %c0_65 = arith.constant 0 : index
    %94 = vector.load %arg7[%c0_64, %c0_65] : memref<64x256xbf16, #tpu.memory_space<vmem>>, vector<64x256xbf16>
    %cst_66 = arith.constant dense<0.000000e+00> : vector<512x256xf32>
    %95 = tpu.matmul %93, %94, %cst_66 {dimension_numbers = #tpu.dot_dimension_numbers<[1], [0], [0], [1], [0, 0, 1, 1], [], []>} : vector<512x64xbf16>, vector<64x256xbf16>, vector<512x256xf32> -> vector<512x256xf32>
    %c0_67 = arith.constant 0 : index
    %c0_68 = arith.constant 0 : index
    %96 = vector.load %arg10[%c0_67, %c0_68] : memref<1x256xf32, #tpu.memory_space<vmem>>, vector<1x256xf32>
    %97 = vector.broadcast %96 : vector<1x256xf32> to vector<512x256xf32>
    %98 = arith.addf %95, %97 : vector<512x256xf32>
    %c0_69 = arith.constant 0 : index
    %c0_70 = arith.constant 0 : index
    %c0_71 = arith.constant 0 : index
    %c0_72 = arith.constant 0 : index
    %99 = vector.load %arg2[%c0_69, %c0_70, %c0_71, %c0_72] : memref<1x16x32x256xbf16, #tpu.memory_space<vmem>>, vector<1x16x32x256xbf16>
    %100 = vector.shape_cast %99 : vector<1x16x32x256xbf16> to vector<16x32x256xbf16>
    %101 = arith.extf %100 : vector<16x32x256xbf16> to vector<16x32x256xf32>
    %102 = vector.shape_cast %101 : vector<16x32x256xf32> to vector<512x256xf32>
    %103 = arith.addf %98, %102 : vector<512x256xf32>
    %cst_73 = arith.constant 0.000000e+00 : f32
    %104 = vector.broadcast %cst_73 : f32 to vector<512x256xf32>
    %105 = arith.maximumf %103, %104 : vector<512x256xf32>
    %106 = vector.shape_cast %105 : vector<512x256xf32> to vector<16x32x256xf32>
    %c0_74 = arith.constant 0 : index
    %c0_75 = arith.constant 0 : index
    %c0_76 = arith.constant 0 : index
    %c0_77 = arith.constant 0 : index
    %107 = vector.load %arg11[%c0_74, %c0_75, %c0_76, %c0_77] : memref<1x16x32x256xf32, #tpu.memory_space<vmem>>, vector<1x16x32x256xf32>
    %108 = vector.shape_cast %107 : vector<1x16x32x256xf32> to vector<16x32x256xf32>
    %109 = vector.shape_cast %106 : vector<16x32x256xf32> to vector<1x16x32x256xf32>
    tpu.vector_store %arg11[%c0_74, %c0_75, %c0_76, %c0_77], %109 {strides = array<i32>} : memref<1x16x32x256xf32, #tpu.memory_space<vmem>>, vector<1x16x32x256xf32>,
    return
  }
  func.func @transform_0(%arg0: i32, %arg1: i32) -> (i32, i32, i32, i32) {
    %c0_i32 = arith.constant 0 : i32
    %c0_i32_0 = arith.constant 0 : i32
    %c0_i32_1 = arith.constant 0 : i32
    return %arg0, %arg1, %c0_i32, %c0_i32_0 : i32, i32, i32, i32
  }
  func.func @transform_1(%arg0: i32, %arg1: i32) -> (i32, i32, i32, i32) {
    %c16_i32 = arith.constant 16 : i32
    %0 = arith.muli %arg1, %c16_i32 : i32
    %c1_i32 = arith.constant 1 : i32
    %1 = arith.subi %0, %c1_i32 : i32
    %c0_i32 = arith.constant 0 : i32
    %2 = arith.maxsi %1, %c0_i32 : i32
    %c0_i32_0 = arith.constant 0 : i32
    %c0_i32_1 = arith.constant 0 : i32
    %c0_i32_2 = arith.constant 0 : i32
    return %arg0, %2, %c0_i32_0, %c0_i32_1 : i32, i32, i32, i32
  }
  func.func @transform_2(%arg0: i32, %arg1: i32) -> (i32, i32, i32, i32) {
    %c1_i32 = arith.constant 1 : i32
    %0 = arith.addi %arg1, %c1_i32 : i32
    %c16_i32 = arith.constant 16 : i32
    %1 = arith.muli %0, %c16_i32 : i32
    %c31_i32 = arith.constant 31 : i32
    %2 = arith.minsi %1, %c31_i32 : i32
    %c0_i32 = arith.constant 0 : i32
    %c0_i32_0 = arith.constant 0 : i32
    %c0_i32_1 = arith.constant 0 : i32
    return %arg0, %2, %c0_i32, %c0_i32_0 : i32, i32, i32, i32
  }
  func.func @transform_3(%arg0: i32, %arg1: i32) -> (i32, i32) {
    %c0_i32 = arith.constant 0 : i32
    %c0_i32_0 = arith.constant 0 : i32
    %c0_i32_1 = arith.constant 0 : i32
    return %c0_i32, %c0_i32_0 : i32, i32
  }
  func.func @transform_4(%arg0: i32, %arg1: i32) -> (i32, i32, i32) {
    %c0_i32 = arith.constant 0 : i32
    %c0_i32_0 = arith.constant 0 : i32
    %c0_i32_1 = arith.constant 0 : i32
    %c0_i32_2 = arith.constant 0 : i32
    return %c0_i32, %c0_i32_0, %c0_i32_1 : i32, i32, i32
  }
  func.func @transform_5(%arg0: i32, %arg1: i32) -> (i32, i32) {
    %c0_i32 = arith.constant 0 : i32
    %c0_i32_0 = arith.constant 0 : i32
    %c0_i32_1 = arith.constant 0 : i32
    return %c0_i32, %c0_i32_0 : i32, i32
  }
  func.func @transform_6(%arg0: i32, %arg1: i32) -> (i32, i32) {
    %c0_i32 = arith.constant 0 : i32
    %c0_i32_0 = arith.constant 0 : i32
    %c0_i32_1 = arith.constant 0 : i32
    return %c0_i32, %c0_i32_0 : i32, i32
  }
  func.func @transform_7(%arg0: i32, %arg1: i32) -> (i32, i32) {
    %c0_i32 = arith.constant 0 : i32
    %c0_i32_0 = arith.constant 0 : i32
    %c0_i32_1 = arith.constant 0 : i32
    return %c0_i32, %c0_i32_0 : i32, i32
  }
  func.func @transform_8(%arg0: i32, %arg1: i32) -> (i32, i32) {
    %c0_i32 = arith.constant 0 : i32
    %c0_i32_0 = arith.constant 0 : i32
    %c0_i32_1 = arith.constant 0 : i32
    return %c0_i32, %c0_i32_0 : i32, i32
  }
  func.func @transform_9(%arg0: i32, %arg1: i32) -> (i32, i32, i32, i32) {
    %c0_i32 = arith.constant 0 : i32
    %c0_i32_0 = arith.constant 0 : i32
    %c0_i32_1 = arith.constant 0 : i32
    return %arg0, %arg1, %c0_i32, %c0_i32_0 : i32, i32, i32, i32
  }
}

</mosaic_0001>

<llo_original>
// kernel: bottleneck_pallas.1
$region0: #{bottleneck_pallas.1}
  #allocation0 [shape = 'u32[]', space=smem, size = 0x4, offset = 0x4, fixed_abs, tag = 'smem constant byte address 0x4 - core index']
  #allocation1 [shape = 'u32[144,128]{1,0:T(1,128)}', space=vmem, size = 0x12000, scoped, tag = 'internal scratch']
  #allocation2 [shape = 'bf16[18,32,192]{2,1,0:T(8,128)(2,1)}', space=vmem, size = 0x48000, scoped, tag = 'scratch operand']
  %s0 = inlined_call_operand.vmem [shape: bf16[2,32,32,256], index: 0, kind: input, shape index: {}, may-alias: {0,1,2}]
  %s1 = inlined_call_operand.vmem [shape: bf16[2,32,32,256], index: 1, kind: input, shape index: {}, may-alias: {0,1,2}]
  %s2 = inlined_call_operand.vmem [shape: bf16[2,32,32,256], index: 2, kind: input, shape index: {}, may-alias: {0,1,2}]
  %s3 = inlined_call_operand.vmem [shape: bf16[256,64], index: 3, kind: input, shape index: {}]
  %s4 = inlined_call_operand.vmem [shape: bf16[3,192,64], index: 4, kind: input, shape index: {}]
  %s5 = inlined_call_operand.vmem [shape: bf16[64,256], index: 5, kind: input, shape index: {}]
  %s6 = inlined_call_operand.vmem [shape: f32[1,64], index: 6, kind: input, shape index: {}]
  %s7 = inlined_call_operand.vmem [shape: f32[1,64], index: 7, kind: input, shape index: {}]
  %s8 = inlined_call_operand.vmem [shape: f32[1,256], index: 8, kind: input, shape index: {}]
  %s9 = inlined_call_operand.hbm [shape: f32[2,32,32,256], index: 9, kind: output, shape index: {}]
  %s10 = sld [smem:[#allocation0]]
  $region69: #{bottleneck_pallas.1} parent=0
    _
  %s12 = ssub.s32 1, %s10
  %s13 = scalar_select 0, %s12, %s10
  $region1: #{bottleneck_pallas.1} parent=0
    #allocation3 [shape = 'u8[1048576]{0}', space=vmem, size = 0x100000, scoped, tag = 'output window, operand 0']
    #allocation4 [shape = 's32[2]{0}', space=sflag, size = 0x8, scoped, tag = 'scoped memory for bottleneck_pallas.1']
    %14 = vsyncpa [#allocation4], 0
    %s15 = scalar_lea.sflag [#allocation4], 1
    %16 = vsyncpa %s15, 0
    loop: start=0, step=1, limit=6
    $region2: #{bottleneck_pallas.1} parent=1 // loop_pre_header
      _
    $region3: #{bottleneck_pallas.1} parent=1 // loop_header
      %s18 = sphi 0, %s22
      %p19 = scmp.ge.s32.totalorder %s18, 6
      %s25 = sphi 0, %s37
      %s26 = sphi 0, %s33
      %s27 = sphi 0, %s25
      %s28 = sphi 0, %s26
      %s29 = sphi 0, %s27
      %s30 = sphi 0, %s28
      %s42 = sphi 0, %s44
      %s45 = sphi 0, %s42
      %s46 = sphi 0, %s45
      %s62 = sphi 0, %s46
      %s78 = sphi 0, %s80
      %s81 = sphi 0, %s78
      %s82 = sphi 0, %s81
      %s98 = sphi 0, %s82
      %s114 = sphi 0, %s116
      %s117 = sphi 0, %s114
      %s118 = sphi 0, %s117
      %s134 = sphi 0, %s118
      %s138 = sphi 0, %s138
      %s140 = sphi 0, %s138
      %s141 = sphi 0, %s140
      %s155 = sphi 0, %s141
      %s159 = sphi 0, %s159
      %s161 = sphi 0, %s159
      %s162 = sphi 0, %s161
      %s176 = sphi 0, %s162
      %s180 = sphi 0, %s180
      %s182 = sphi 0, %s180
      %s183 = sphi 0, %s182
      %s197 = sphi 0, %s183
      %s201 = sphi 0, %s201
      %s203 = sphi 0, %s201
      %s204 = sphi 0, %s203
      %s218 = sphi 0, %s204
      %s222 = sphi 0, %s222
      %s224 = sphi 0, %s222
      %s225 = sphi 0, %s224
      %s239 = sphi 0, %s225
      %s243 = sphi 0, %s243
      %s245 = sphi 0, %s243
      %s246 = sphi 0, %s245
      %s260 = sphi 0, %s246
      %s268 = sphi 0, %s270
      %s271 = sphi 0, %s268
      %s272 = sphi 0, %s271
      %s288 = sphi 0, %s272
    $region4: #{bottleneck_pallas.1} parent=1 // loop_header_branch
      %21 = sbr.rel (%p19) target = $region8
    $region5: #{bottleneck_pallas.1} parent=1 // loop_body
      %s23 = ssub.s32 %s18, 1
      %s24 = ssub.s32 %s18, 2
      %s31 = sadd.s32 1, %s26
      %p32 = scmp.ge.s32.totalorder %s31, 2
      %s33 = scalar_select %p32, 0, %s31
      %s34 = sadd.s32 1, %s25
      %s35 = scalar_select %p32, %s34, %s25
      %p36 = scmp.ge.s32.totalorder %s35, 2
      %s37 = scalar_select %p36, 0, %s35
      %s38 = ssub.s32 %s25, %s37
      %s39 = ssub.s32 %s26, %s33
      %s40 = sor.u32 %s38, %s39
      %p41 = scmp.eq.s32.totalorder %s40, 0
      %s43 = sadd.s32 %s42, 1
      %s44 = scalar_select %p41, %s42, %s43
      %p47 = pneg %p41
      %p48 = scmp.eq.s32.totalorder %s18, 3
      %p49 = por %p47, %p48
      %p50 = scmp.ne.s32.totalorder %s42, %s45
      %p51 = scmp.eq.s32.totalorder %s18, 0
      %p52 = por %p50, %p51
      %p53 = scmp.ne.s32.totalorder %s42, %s45
      %p54 = scmp.eq.s32.totalorder %s23, 3
      %p55 = por %p53, %p54
      %p56 = scmp.ne.s32.totalorder %s45, %s46
      %p57 = scmp.eq.s32.totalorder %s23, 0
      %p58 = por %p56, %p57
      %p59 = scmp.ne.s32.totalorder %s45, %s46
      %p60 = scmp.eq.s32.totalorder %s24, 3
      %p61 = por %p59, %p60
      %p63 = scmp.ne.s32.totalorder %s46, %s62
      %p64 = scmp.eq.s32.totalorder %s24, 0
      %p65 = por %p63, %p64
      %s66 = smul.u32 %s26, 16
      %s67 = ssub.s32 %s66, 1
      %p68 = scmp.gt.s32.totalorder %s67, 0
      %s69 = scalar_select %p68, %s67, 0
      %s70 = smul.u32 %s33, 16
      %s71 = ssub.s32 %s70, 1
      %p72 = scmp.gt.s32.totalorder %s71, 0
      %s73 = scalar_select %p72, %s71, 0
      %s74 = ssub.s32 %s25, %s37
      %s75 = ssub.s32 %s69, %s73
      %s76 = sor.u32 %s74, %s75
      %p77 = scmp.eq.s32.totalorder %s76, 0
      %s79 = sadd.s32 %s78, 1
      %s80 = scalar_select %p77, %s78, %s79
      %p83 = pneg %p77
      %p84 = scmp.eq.s32.totalorder %s18, 3
      %p85 = por %p83, %p84
      %p86 = scmp.ne.s32.totalorder %s78, %s81
      %p87 = scmp.eq.s32.totalorder %s18, 0
      %p88 = por %p86, %p87
      %p89 = scmp.ne.s32.totalorder %s78, %s81
      %p90 = scmp.eq.s32.totalorder %s23, 3
      %p91 = por %p89, %p90
      %p92 = scmp.ne.s32.totalorder %s81, %s82
      %p93 = scmp.eq.s32.totalorder %s23, 0
      %p94 = por %p92, %p93
      %p95 = scmp.ne.s32.totalorder %s81, %s82
      %p96 = scmp.eq.s32.totalorder %s24, 3
      %p97 = por %p95, %p96
      %p99 = scmp.ne.s32.totalorder %s82, %s98
      %p100 = scmp.eq.s32.totalorder %s24, 0
      %p101 = por %p99, %p100
      %s102 = sadd.s32 %s26, 1
      %s103 = smul.u32 %s102, 16
      %p104 = scmp.lt.s32.totalorder %s103, 31
      %s105 = scalar_select %p104, %s103, 31
      %s106 = sadd.s32 %s33, 1
      %s107 = smul.u32 %s106, 16
      %p108 = scmp.lt.s32.totalorder %s107, 31
      %s109 = scalar_select %p108, %s107, 31
      %s110 = ssub.s32 %s25, %s37
      %s111 = ssub.s32 %s105, %s109
      %s112 = sor.u32 %s110, %s111
      %p113 = scmp.eq.s32.totalorder %s112, 0
      %s115 = sadd.s32 %s114, 1
      %s116 = scalar_select %p113, %s114, %s115
      %p119 = pneg %p113
      %p120 = scmp.eq.s32.totalorder %s18, 3
      %p121 = por %p119, %p120
      %p122 = scmp.ne.s32.totalorder %s114, %s117
      %p123 = scmp.eq.s32.totalorder %s18, 0
      %p124 = por %p122, %p123
      %p125 = scmp.ne.s32.totalorder %s114, %s117
      %p126 = scmp.eq.s32.totalorder %s23, 3
      %p127 = por %p125, %p126
      %p128 = scmp.ne.s32.totalorder %s117, %s118
      %p129 = scmp.eq.s32.totalorder %s23, 0
      %p130 = por %p128, %p129
      %p131 = scmp.ne.s32.totalorder %s117, %s118
      %p132 = scmp.eq.s32.totalorder %s24, 3
      %p133 = por %p131, %p132
      %p135 = scmp.ne.s32.totalorder %s118, %s134
      %p136 = scmp.eq.s32.totalorder %s24, 0
      %p137 = por %p135, %p136
      %s139 = sadd.s32 %s138, 1
      %p142 = scmp.eq.s32.totalorder %s18, 3
      %p143 = scmp.ne.s32.totalorder %s138, %s140
      %p144 = scmp.eq.s32.totalorder %s18, 0
      %p145 = por %p143, %p144
      %p146 = scmp.ne.s32.totalorder %s138, %s140
      %p147 = scmp.eq.s32.totalorder %s23, 3
      %p148 = por %p146, %p147
      %p149 = scmp.ne.s32.totalorder %s140, %s141
      %p150 = scmp.eq.s32.totalorder %s23, 0
      %p151 = por %p149, %p150
      %p152 = scmp.ne.s32.totalorder %s140, %s141
      %p153 = scmp.eq.s32.totalorder %s24, 3
      %p154 = por %p152, %p153
      %p156 = scmp.ne.s32.totalorder %s141, %s155
      %p157 = scmp.eq.s32.totalorder %s24, 0
      %p158 = por %p156, %p157
      %s160 = sadd.s32 %s159, 1
      %p163 = scmp.eq.s32.totalorder %s18, 3
      %p164 = scmp.ne.s32.totalorder %s159, %s161
      %p165 = scmp.eq.s32.totalorder %s18, 0
      %p166 = por %p164, %p165
      %p167 = scmp.ne.s32.totalorder %s159, %s161
      %p168 = scmp.eq.s32.totalorder %s23, 3
      %p169 = por %p167, %p168
      %p170 = scmp.ne.s32.totalorder %s161, %s162
      %p171 = scmp.eq.s32.totalorder %s23, 0
      %p172 = por %p170, %p171
      %p173 = scmp.ne.s32.totalorder %s161, %s162
      %p174 = scmp.eq.s32.totalorder %s24, 3
      %p175 = por %p173, %p174
      %p177 = scmp.ne.s32.totalorder %s162, %s176
      %p178 = scmp.eq.s32.totalorder %s24, 0
      %p179 = por %p177, %p178
      %s181 = sadd.s32 %s180, 1
      %p184 = scmp.eq.s32.totalorder %s18, 3
      %p185 = scmp.ne.s32.totalorder %s180, %s182
      %p186 = scmp.eq.s32.totalorder %s18, 0
      %p187 = por %p185, %p186
      %p188 = scmp.ne.s32.totalorder %s180, %s182
      %p189 = scmp.eq.s32.totalorder %s23, 3
      %p190 = por %p188, %p189
      %p191 = scmp.ne.s32.totalorder %s182, %s183
      %p192 = scmp.eq.s32.totalorder %s23, 0
      %p193 = por %p191, %p192
      %p194 = scmp.ne.s32.totalorder %s182, %s183
      %p195 = scmp.eq.s32.totalorder %s24, 3
      %p196 = por %p194, %p195
      %p198 = scmp.ne.s32.totalorder %s183, %s197
      %p199 = scmp.eq.s32.totalorder %s24, 0
      %p200 = por %p198, %p199
      %s202 = sadd.s32 %s201, 1
      %p205 = scmp.eq.s32.totalorder %s18, 3
      %p206 = scmp.ne.s32.totalorder %s201, %s203
      %p207 = scmp.eq.s32.totalorder %s18, 0
      %p208 = por %p206, %p207
      %p209 = scmp.ne.s32.totalorder %s201, %s203
      %p210 = scmp.eq.s32.totalorder %s23, 3
      %p211 = por %p209, %p210
      %p212 = scmp.ne.s32.totalorder %s203, %s204
      %p213 = scmp.eq.s32.totalorder %s23, 0
      %p214 = por %p212, %p213
      %p215 = scmp.ne.s32.totalorder %s203, %s204
      %p216 = scmp.eq.s32.totalorder %s24, 3
      %p217 = por %p215, %p216
      %p219 = scmp.ne.s32.totalorder %s204, %s218
      %p220 = scmp.eq.s32.totalorder %s24, 0
      %p221 = por %p219, %p220
      %s223 = sadd.s32 %s222, 1
      %p226 = scmp.eq.s32.totalorder %s18, 3
      %p227 = scmp.ne.s32.totalorder %s222, %s224
      %p228 = scmp.eq.s32.totalorder %s18, 0
      %p229 = por %p227, %p228
      %p230 = scmp.ne.s32.totalorder %s222, %s224
      %p231 = scmp.eq.s32.totalorder %s23, 3
      %p232 = por %p230, %p231
      %p233 = scmp.ne.s32.totalorder %s224, %s225
      %p234 = scmp.eq.s32.totalorder %s23, 0
      %p235 = por %p233, %p234
      %p236 = scmp.ne.s32.totalorder %s224, %s225
      %p237 = scmp.eq.s32.totalorder %s24, 3
      %p238 = por %p236, %p237
      %p240 = scmp.ne.s32.totalorder %s225, %s239
      %p241 = scmp.eq.s32.totalorder %s24, 0
      %p242 = por %p240, %p241
      %s244 = sadd.s32 %s243, 1
      %p247 = scmp.eq.s32.totalorder %s18, 3
      %p248 = scmp.ne.s32.totalorder %s243, %s245
      %p249 = scmp.eq.s32.totalorder %s18, 0
      %p250 = por %p248, %p249
      %p251 = scmp.ne.s32.totalorder %s243, %s245
      %p252 = scmp.eq.s32.totalorder %s23, 3
      %p253 = por %p251, %p252
      %p254 = scmp.ne.s32.totalorder %s245, %s246
      %p255 = scmp.eq.s32.totalorder %s23, 0
      %p256 = por %p254, %p255
      %p257 = scmp.ne.s32.totalorder %s245, %s246
      %p258 = scmp.eq.s32.totalorder %s24, 3
      %p259 = por %p257, %p258
      %p261 = scmp.ne.s32.totalorder %s246, %s260
      %p262 = scmp.eq.s32.totalorder %s24, 0
      %p263 = por %p261, %p262
      %s264 = ssub.s32 %s25, %s37
      %s265 = ssub.s32 %s26, %s33
      %s266 = sor.u32 %s264, %s265
      %p267 = scmp.eq.s32.totalorder %s266, 0
      %s269 = sadd.s32 %s268, 1
      %s270 = scalar_select %p267, %s268, %s269
      %p273 = pneg %p267
      %p274 = scmp.eq.s32.totalorder %s18, 3
      %p275 = por %p273, %p274
      %p276 = scmp.ne.s32.totalorder %s268, %s271
      %p277 = scmp.eq.s32.totalorder %s18, 0
      %p278 = por %p276, %p277
      %p279 = scmp.ne.s32.totalorder %s268, %s271
      %p280 = scmp.eq.s32.totalorder %s23, 3
      %p281 = por %p279, %p280
      %p282 = scmp.ne.s32.totalorder %s271, %s272
      %p283 = scmp.eq.s32.totalorder %s23, 0
      %p284 = por %p282, %p283
      %p285 = scmp.ne.s32.totalorder %s271, %s272
      %p286 = scmp.eq.s32.totalorder %s24, 3
      %p287 = por %p285, %p286
      %p289 = scmp.ne.s32.totalorder %s272, %s288
      %p290 = scmp.eq.s32.totalorder %s24, 0
      %p291 = por %p289, %p290
      %p292 = scmp.le.s32.totalorder 1, %s18
      %p293 = scmp.lt.s32.totalorder %s18, 5
      %p294 = pnand %p292, %p293
      %p295 = pneg %p294
      // Predicated region
      $region9: #{bottleneck_pallas.1} parent=5 // pred_check
        _
      $region10: #{bottleneck_pallas.1} parent=5 // pred_check_branch
        %297 = sbr.rel (%p294) target = $region12
      $region11: #{bottleneck_pallas.1} parent=5 // pred_region
        %s298 = ssub.s32 %s18, 1
        // Predicated region
        $region13: #{bottleneck_pallas.1} parent=11 // pred_check
          %p299 = pneg %p151
        $region14: #{bottleneck_pallas.1} parent=11 // pred_check_branch
          %301 = sbr.rel (%p299) target = $region16
        $region15: #{bottleneck_pallas.1} parent=11 // pred_region
          _
        $region16: #{bottleneck_pallas.1} parent=11 // pred_fallthru
          _
        // Predicated region
        $region17: #{bottleneck_pallas.1} parent=11 // pred_check
          %p302 = pneg %p172
        $region18: #{bottleneck_pallas.1} parent=11 // pred_check_branch
          %304 = sbr.rel (%p302) target = $region20
        $region19: #{bottleneck_pallas.1} parent=11 // pred_region
          _
        $region20: #{bottleneck_pallas.1} parent=11 // pred_fallthru
          _
        // Predicated region
        $region21: #{bottleneck_pallas.1} parent=11 // pred_check
          %p305 = pneg %p193
        $region22: #{bottleneck_pallas.1} parent=11 // pred_check_branch
          %307 = sbr.rel (%p305) target = $region24
        $region23: #{bottleneck_pallas.1} parent=11 // pred_region
          _
        $region24: #{bottleneck_pallas.1} parent=11 // pred_fallthru
          _
        // Predicated region
        $region25: #{bottleneck_pallas.1} parent=11 // pred_check
          %p308 = pneg %p214
        $region26: #{bottleneck_pallas.1} parent=11 // pred_check_branch
          %310 = sbr.rel (%p308) target = $region28
        $region27: #{bottleneck_pallas.1} parent=11 // pred_region
          _
        $region28: #{bottleneck_pallas.1} parent=11 // pred_fallthru
          _
        // Predicated region
        $region29: #{bottleneck_pallas.1} parent=11 // pred_check
          %p311 = pneg %p235
        $region30: #{bottleneck_pallas.1} parent=11 // pred_check_branch
          %313 = sbr.rel (%p311) target = $region32
        $region31: #{bottleneck_pallas.1} parent=11 // pred_region
          _
        $region32: #{bottleneck_pallas.1} parent=11 // pred_fallthru
          _
        // Predicated region
        $region33: #{bottleneck_pallas.1} parent=11 // pred_check
          %p314 = pneg %p256
        $region34: #{bottleneck_pallas.1} parent=11 // pred_check_branch
          %316 = sbr.rel (%p314) target = $region36
        $region35: #{bottleneck_pallas.1} parent=11 // pred_region
          _
        $region36: #{bottleneck_pallas.1} parent=11 // pred_fallthru
          _
      $region12: #{bottleneck_pallas.1} parent=5 // pred_fallthru
        _
      %p317 = scmp.lt.s32.totalorder %s18, 4
      // Predicated region
      $region37: #{bottleneck_pallas.1} parent=5 // pred_check
        %p318 = pneg %p317
      $region38: #{bottleneck_pallas.1} parent=5 // pred_check_branch
        %320 = sbr.rel (%p318) target = $region40
      $region39: #{bottleneck_pallas.1} parent=5 // pred_region
        // Predicated region
        $region41: #{bottleneck_pallas.1} parent=39 // pred_check
          %p321 = pneg %p52
        $region42: #{bottleneck_pallas.1} parent=39 // pred_check_branch
          %323 = sbr.rel (%p321) target = $region44
        $region43: #{bottleneck_pallas.1} parent=39 // pred_region
          %s324 = smul.u32 16, %s26
          %p325 = scmp.lt.s32.totalorder %s25, 1
          %s326 = scalar_select %p325, %s25, 1
          %p327 = scmp.lt.s32.totalorder %s324, 31
          %s328 = scalar_select %p327, %s324, 31
          %s329 = smul.addr %s328, 8
          %s330 = smul.addr %s326, 256
          %s331 = sadd.s32 %s329, %s330
          %s332 = smul.addr %s331, 4
          %s333 = scalar_lea.vmem %s0, %s332
          %s334 = smul.u32 16, %s26
        $region44: #{bottleneck_pallas.1} parent=39 // pred_fallthru
          _
        // Predicated region
        $region45: #{bottleneck_pallas.1} parent=39 // pred_check
          %p335 = pneg %p88
        $region46: #{bottleneck_pallas.1} parent=39 // pred_check_branch
          %337 = sbr.rel (%p335) target = $region48
        $region47: #{bottleneck_pallas.1} parent=39 // pred_region
          %s338 = smul.u32 %s26, 16
          %s339 = ssub.s32 %s338, 1
          %p340 = scmp.gt.s32.totalorder %s339, 0
          %s341 = scalar_select %p340, %s339, 0
          %p342 = scmp.lt.s32.totalorder %s25, 1
          %s343 = scalar_select %p342, %s25, 1
          %p344 = scmp.lt.s32.totalorder %s341, 31
          %s345 = scalar_select %p344, %s341, 31
          %s346 = smul.addr %s345, 8
          %s347 = smul.addr %s343, 256
          %s348 = sadd.s32 %s346, %s347
          %s349 = smul.addr %s348, 4
          %s350 = scalar_lea.vmem %s1, %s349
          %s351 = smul.u32 %s26, 16
          %s352 = ssub.s32 %s351, 1
          %p353 = scmp.gt.s32.totalorder %s352, 0
          %s354 = scalar_select %p353, %s352, 0
        $region48: #{bottleneck_pallas.1} parent=39 // pred_fallthru
          _
        // Predicated region
        $region49: #{bottleneck_pallas.1} parent=39 // pred_check
          %p355 = pneg %p124
        $region50: #{bottleneck_pallas.1} parent=39 // pred_check_branch
          %357 = sbr.rel (%p355) target = $region52
        $region51: #{bottleneck_pallas.1} parent=39 // pred_region
          %s358 = sadd.s32 %s26, 1
          %s359 = smul.u32 %s358, 16
          %p360 = scmp.lt.s32.totalorder %s359, 31
          %s361 = scalar_select %p360, %s359, 31
          %p362 = scmp.lt.s32.totalorder %s25, 1
          %s363 = scalar_select %p362, %s25, 1
          %p364 = scmp.lt.s32.totalorder %s361, 31
          %s365 = scalar_select %p364, %s361, 31
          %s366 = smul.addr %s365, 8
          %s367 = smul.addr %s363, 256
          %s368 = sadd.s32 %s366, %s367
          %s369 = smul.addr %s368, 4
          %s370 = scalar_lea.vmem %s2, %s369
          %s371 = sadd.s32 %s26, 1
          %s372 = smul.u32 %s371, 16
          %p373 = scmp.lt.s32.totalorder %s372, 31
          %s374 = scalar_select %p373, %s372, 31
        $region52: #{bottleneck_pallas.1} parent=39 // pred_fallthru
          _
      $region40: #{bottleneck_pallas.1} parent=5 // pred_fallthru
        _
      %p375 = scmp.le.s32.totalorder 1, %s18
      %p376 = scmp.lt.s32.totalorder %s18, 5
      %p377 = pnand %p375, %p376
      %p378 = pneg %p377
      // Predicated region
      $region53: #{bottleneck_pallas.1} parent=5 // pred_check
        _
      $region54: #{bottleneck_pallas.1} parent=5 // pred_check_branch
        %380 = sbr.rel (%p377) target = $region56
      $region55: #{bottleneck_pallas.1} parent=5 // pred_region
        %s381 = ssub.s32 %s18, 1
        %s382 = smul.u32 16, %s28
        %p383 = scmp.lt.s32.totalorder %s27, 1
        %s384 = scalar_select %p383, %s27, 1
        %p385 = scmp.lt.s32.totalorder %s382, 31
        %s386 = scalar_select %p385, %s382, 31
        %s387 = smul.addr %s386, 8
        %s388 = smul.addr %s384, 256
        %s389 = sadd.s32 %s387, %s388
        %s390 = smul.addr %s389, 4
        %s391 = scalar_lea.vmem %s0, %s390
        %p392 = pneg %p58
        %p393 = pneg %p55
        %s394 = smul.u32 %s28, 16
        %s395 = ssub.s32 %s394, 1
        %p396 = scmp.gt.s32.totalorder %s395, 0
        %s397 = scalar_select %p396, %s395, 0
        %p398 = scmp.lt.s32.totalorder %s27, 1
        %s399 = scalar_select %p398, %s27, 1
        %p400 = scmp.lt.s32.totalorder %s397, 31
        %s401 = scalar_select %p400, %s397, 31
        %s402 = smul.addr %s401, 8
        %s403 = smul.addr %s399, 256
        %s404 = sadd.s32 %s402, %s403
        %s405 = smul.addr %s404, 4
        %s406 = scalar_lea.vmem %s1, %s405
        %p407 = pneg %p94
        %p408 = pneg %p91
        %s409 = sadd.s32 %s28, 1
        %s410 = smul.u32 %s409, 16
        %p411 = scmp.lt.s32.totalorder %s410, 31
        %s412 = scalar_select %p411, %s410, 31
        %p413 = scmp.lt.s32.totalorder %s27, 1
        %s414 = scalar_select %p413, %s27, 1
        %p415 = scmp.lt.s32.totalorder %s412, 31
        %s416 = scalar_select %p415, %s412, 31
        %s417 = smul.addr %s416, 8
        %s418 = smul.addr %s414, 256
        %s419 = sadd.s32 %s417, %s418
        %s420 = smul.addr %s419, 4
        %s421 = scalar_lea.vmem %s2, %s420
        %p422 = pneg %p130
        %p423 = pneg %p127
        %p424 = pneg %p151
        %p425 = pneg %p148
        %p426 = pneg %p172
        %p427 = pneg %p169
        %p428 = pneg %p193
        %p429 = pneg %p190
        %p430 = pneg %p214
        %p431 = pneg %p211
        %p432 = pneg %p235
        %p433 = pneg %p232
        %p434 = pneg %p256
        %p435 = pneg %p253
        %p436 = pneg %p284
        %p437 = pneg %p281
        %s438 = sand.u32 %s271, 1
        %s439 = scalar_lea.sflag [#allocation4], %s438
        %s440 = sand.u32 %s271, 1
        %s441 = smul.addr %s440, 1024
        %s442 = scalar_lea.vmem [#allocation3], %s441
        %s443 = smul.u32 16, %s28
        %p444 = scmp.lt.s32.totalorder %s27, 1
        %s445 = scalar_select %p444, %s27, 1
        %p446 = scmp.lt.s32.totalorder %s443, 31
        %s447 = scalar_select %p446, %s443, 31
        %s448 = smul.addr %s447, 8
        %s449 = smul.addr %s445, 256
        %s450 = sadd.s32 %s448, %s449
        %s451 = smul.addr %s450, 4
        %s452 = scalar_lea.vmem %s0, %s451
        %s453 = smul.u32 16, %s28
        %s454 = smul.u32 %s28, 16
        %s455 = ssub.s32 %s454, 1
        %p456 = scmp.gt.s32.totalorder %s455, 0
        %s457 = scalar_select %p456, %s455, 0
        %p458 = scmp.lt.s32.totalorder %s27, 1
        %s459 = scalar_select %p458, %s27, 1
        %p460 = scmp.lt.s32.totalorder %s457, 31
        %s461 = scalar_select %p460, %s457, 31
        %s462 = smul.addr %s461, 8
        %s463 = smul.addr %s459, 256
        %s464 = sadd.s32 %s462, %s463
        %s465 = smul.addr %s464, 4
        %s466 = scalar_lea.vmem %s1, %s465
        %s467 = smul.u32 %s28, 16
        %s468 = ssub.s32 %s467, 1
        %p469 = scmp.gt.s32.totalorder %s468, 0
        %s470 = scalar_select %p469, %s468, 0
        %s471 = sadd.s32 %s28, 1
        %s472 = smul.u32 %s471, 16
        %p473 = scmp.lt.s32.totalorder %s472, 31
        %s474 = scalar_select %p473, %s472, 31
        %p475 = scmp.lt.s32.totalorder %s27, 1
        %s476 = scalar_select %p475, %s27, 1
        %p477 = scmp.lt.s32.totalorder %s474, 31
        %s478 = scalar_select %p477, %s474, 31
        %s479 = smul.addr %s478, 8
        %s480 = smul.addr %s476, 256
        %s481 = sadd.s32 %s479, %s480
        %s482 = smul.addr %s481, 4
        %s483 = scalar_lea.vmem %s2, %s482
        %s484 = sadd.s32 %s28, 1
        %s485 = smul.u32 %s484, 16
        %p486 = scmp.lt.s32.totalorder %s485, 31
        %s487 = scalar_select %p486, %s485, 31
        %s488 = smul.u32 16, %s28
        %p490 = scmp.eq.s32.totalorder %s28, 0
        %s491 = scalar_select %p490, 1, 0
        %s492 = scvt.s32.f32 %s491
        %s493 = ssub.f32 1.0, %s492
        %p494 = scmp.eq.s32.totalorder %s28, 1
        %s495 = scalar_select %p494, 1, 0
        %s496 = scvt.s32.f32 %s495
        %s497 = ssub.f32 1.0, %s496
        %v498 = vld [vmem:[%s452] sm:$0xff]
        %v499 = vld [vmem:[%s452 + $0x8] sm:$0xff]
        %v500 = vld [vmem:[%s452 + $0x10] sm:$0xff]
        %v501 = vld [vmem:[%s452 + $0x18] sm:$0xff]
        %v502 = vld [vmem:[%s452 + $0x20] sm:$0xff]
        %v503 = vld [vmem:[%s452 + $0x28] sm:$0xff]
        %v504 = vld [vmem:[%s452 + $0x30] sm:$0xff]
        %v505 = vld [vmem:[%s452 + $0x38] sm:$0xff]
        %v506 = vld [vmem:[%s452 + $0x40] sm:$0xff]
        %v507 = vld [vmem:[%s452 + $0x48] sm:$0xff]
        %v508 = vld [vmem:[%s452 + $0x50] sm:$0xff]
        %v509 = vld [vmem:[%s452 + $0x58] sm:$0xff]
        %v510 = vld [vmem:[%s452 + $0x60] sm:$0xff]
        %v511 = vld [vmem:[%s452 + $0x68] sm:$0xff]
        %v512 = vld [vmem:[%s452 + $0x70] sm:$0xff]
        %v513 = vld [vmem:[%s452 + $0x78] sm:$0xff]
        %v514 = vld [vmem:[%s452 + $0x80] sm:$0xff]
        %v515 = vld [vmem:[%s452 + $0x88] sm:$0xff]
        %v516 = vld [vmem:[%s452 + $0x90] sm:$0xff]
        %v517 = vld [vmem:[%s452 + $0x98] sm:$0xff]
        %v518 = vld [vmem:[%s452 + $0xa0] sm:$0xff]
        %v519 = vld [vmem:[%s452 + $0xa8] sm:$0xff]
        %v520 = vld [vmem:[%s452 + $0xb0] sm:$0xff]
        %v521 = vld [vmem:[%s452 + $0xb8] sm:$0xff]
        %v522 = vld [vmem:[%s452 + $0xc0] sm:$0xff]
        %v523 = vld [vmem:[%s452 + $0xc8] sm:$0xff]
        %v524 = vld [vmem:[%s452 + $0xd0] sm:$0xff]
        %v525 = vld [vmem:[%s452 + $0xd8] sm:$0xff]
        %v526 = vld [vmem:[%s452 + $0xe0] sm:$0xff]
        %v527 = vld [vmem:[%s452 + $0xe8] sm:$0xff]
        %v528 = vld [vmem:[%s452 + $0xf0] sm:$0xff]
        %v529 = vld [vmem:[%s452 + $0xf8] sm:$0xff]
        %v530 = vld [vmem:[%s452 + $0x100] sm:$0xff]
        %v531 = vld [vmem:[%s452 + $0x108] sm:$0xff]
        %v532 = vld [vmem:[%s452 + $0x110] sm:$0xff]
        %v533 = vld [vmem:[%s452 + $0x118] sm:$0xff]
        %v534 = vld [vmem:[%s452 + $0x120] sm:$0xff]
        %v535 = vld [vmem:[%s452 + $0x128] sm:$0xff]
        %v536 = vld [vmem:[%s452 + $0x130] sm:$0xff]
        %v537 = vld [vmem:[%s452 + $0x138] sm:$0xff]
        %v538 = vld [vmem:[%s452 + $0x140] sm:$0xff]
        %v539 = vld [vmem:[%s452 + $0x148] sm:$0xff]
        %v540 = vld [vmem:[%s452 + $0x150] sm:$0xff]
        %v541 = vld [vmem:[%s452 + $0x158] sm:$0xff]
        %v542 = vld [vmem:[%s452 + $0x160] sm:$0xff]
        %v543 = vld [vmem:[%s452 + $0x168] sm:$0xff]
        %v544 = vld [vmem:[%s452 + $0x170] sm:$0xff]
        %v545 = vld [vmem:[%s452 + $0x178] sm:$0xff]
        %v546 = vld [vmem:[%s452 + $0x180] sm:$0xff]
        %v547 = vld [vmem:[%s452 + $0x188] sm:$0xff]
        %v548 = vld [vmem:[%s452 + $0x190] sm:$0xff]
        %v549 = vld [vmem:[%s452 + $0x198] sm:$0xff]
        %v550 = vld [vmem:[%s452 + $0x1a0] sm:$0xff]
        %v551 = vld [vmem:[%s452 + $0x1a8] sm:$0xff]
        %v552 = vld [vmem:[%s452 + $0x1b0] sm:$0xff]
        %v553 = vld [vmem:[%s452 + $0x1b8] sm:$0xff]
        %v554 = vld [vmem:[%s452 + $0x1c0] sm:$0xff]
        %v555 = vld [vmem:[%s452 + $0x1c8] sm:$0xff]
        %v556 = vld [vmem:[%s452 + $0x1d0] sm:$0xff]
        %v557 = vld [vmem:[%s452 + $0x1d8] sm:$0xff]
        %v558 = vld [vmem:[%s452 + $0x1e0] sm:$0xff]
        %v559 = vld [vmem:[%s452 + $0x1e8] sm:$0xff]
        %v560 = vld [vmem:[%s452 + $0x1f0] sm:$0xff]
        %v561 = vld [vmem:[%s452 + $0x1f8] sm:$0xff]
        %v562 = vld [vmem:[%s3] sm:$0xf]
        %v563 = vld [vmem:[%s3 + $0x4] sm:$0xf]
        %v564 = vld [vmem:[%s3 + $0x8] sm:$0xf]
        %v565 = vld [vmem:[%s3 + $0xc] sm:$0xf]
        %v566 = vld [vmem:[%s3 + $0x10] sm:$0xf]
        %v567 = vld [vmem:[%s3 + $0x14] sm:$0xf]
        %v568 = vld [vmem:[%s3 + $0x18] sm:$0xf]
        %v569 = vld [vmem:[%s3 + $0x1c] sm:$0xf]
        %v570 = vld [vmem:[%s3 + $0x20] sm:$0xf]
        %v571 = vld [vmem:[%s3 + $0x24] sm:$0xf]
        %v572 = vld [vmem:[%s3 + $0x28] sm:$0xf]
        %v573 = vld [vmem:[%s3 + $0x2c] sm:$0xf]
        %v574 = vld [vmem:[%s3 + $0x30] sm:$0xf]
        %v575 = vld [vmem:[%s3 + $0x34] sm:$0xf]
        %v576 = vld [vmem:[%s3 + $0x38] sm:$0xf]
        %v577 = vld [vmem:[%s3 + $0x3c] sm:$0xf]
        %v578 = vld [vmem:[%s3 + $0x40] sm:$0xf]
        %v579 = vld [vmem:[%s3 + $0x44] sm:$0xf]
        %v580 = vld [vmem:[%s3 + $0x48] sm:$0xf]
        %v581 = vld [vmem:[%s3 + $0x4c] sm:$0xf]
        %v582 = vld [vmem:[%s3 + $0x50] sm:$0xf]
        %v583 = vld [vmem:[%s3 + $0x54] sm:$0xf]
        %v584 = vld [vmem:[%s3 + $0x58] sm:$0xf]
        %v585 = vld [vmem:[%s3 + $0x5c] sm:$0xf]
        %v586 = vld [vmem:[%s3 + $0x60] sm:$0xf]
        %v587 = vld [vmem:[%s3 + $0x64] sm:$0xf]
        %v588 = vld [vmem:[%s3 + $0x68] sm:$0xf]
        %v589 = vld [vmem:[%s3 + $0x6c] sm:$0xf]
        %v590 = vld [vmem:[%s3 + $0x70] sm:$0xf]
        %v591 = vld [vmem:[%s3 + $0x74] sm:$0xf]
        %v592 = vld [vmem:[%s3 + $0x78] sm:$0xf]
        %v593 = vld [vmem:[%s3 + $0x7c] sm:$0xf]
        %v594 = vld [vmem:[%s6] sm:$0x1]
        %v596 = vlaneseq
        %v597 = vshrl.u32 %v596, 7
        %v598 = vsub.s32 0, %v597
        %v599 = vrot.slane %v594, %v598
        %v665 = vunpack.c.l.b16 %v498
        %v666 = vunpack.c.h.b16 %v498
        %v667 = vunpack.c.l.b16 %v499
        %v668 = vunpack.c.h.b16 %v499
        %v669 = vunpack.c.l.b16 %v500
        %v670 = vunpack.c.h.b16 %v500
        %v671 = vunpack.c.l.b16 %v501
        %v672 = vunpack.c.h.b16 %v501
        %v673 = vunpack.c.l.b16 %v502
        %v674 = vunpack.c.h.b16 %v502
        %v675 = vunpack.c.l.b16 %v503
        %v676 = vunpack.c.h.b16 %v503
        %v677 = vunpack.c.l.b16 %v504
        %v678 = vunpack.c.h.b16 %v504
        %v679 = vunpack.c.l.b16 %v505
        %v680 = vunpack.c.h.b16 %v505
        %v681 = vunpack.c.l.b16 %v506
        %v682 = vunpack.c.h.b16 %v506
        %v683 = vunpack.c.l.b16 %v507
        %v684 = vunpack.c.h.b16 %v507
        %v685 = vunpack.c.l.b16 %v508
        %v686 = vunpack.c.h.b16 %v508
        %v687 = vunpack.c.l.b16 %v509
        %v688 = vunpack.c.h.b16 %v509
        %v689 = vunpack.c.l.b16 %v510
        %v690 = vunpack.c.h.b16 %v510
        %v691 = vunpack.c.l.b16 %v511
        %v692 = vunpack.c.h.b16 %v511
        %v693 = vunpack.c.l.b16 %v512
        %v694 = vunpack.c.h.b16 %v512
        %v695 = vunpack.c.l.b16 %v513
        %v696 = vunpack.c.h.b16 %v513
        %v697 = vunpack.c.l.b16 %v514
        %v698 = vunpack.c.h.b16 %v514
        %v699 = vunpack.c.l.b16 %v515
        %v700 = vunpack.c.h.b16 %v515
        %v701 = vunpack.c.l.b16 %v516
        %v702 = vunpack.c.h.b16 %v516
        %v703 = vunpack.c.l.b16 %v517
        %v704 = vunpack.c.h.b16 %v517
        %v705 = vunpack.c.l.b16 %v518
        %v706 = vunpack.c.h.b16 %v518
        %v707 = vunpack.c.l.b16 %v519
        %v708 = vunpack.c.h.b16 %v519
        %v709 = vunpack.c.l.b16 %v520
        %v710 = vunpack.c.h.b16 %v520
        %v711 = vunpack.c.l.b16 %v521
        %v712 = vunpack.c.h.b16 %v521
        %v713 = vunpack.c.l.b16 %v522
        %v714 = vunpack.c.h.b16 %v522
        %v715 = vunpack.c.l.b16 %v523
        %v716 = vunpack.c.h.b16 %v523
        %v717 = vunpack.c.l.b16 %v524
        %v718 = vunpack.c.h.b16 %v524
        %v719 = vunpack.c.l.b16 %v525
        %v720 = vunpack.c.h.b16 %v525
        %v721 = vunpack.c.l.b16 %v526
        %v722 = vunpack.c.h.b16 %v526
        %v723 = vunpack.c.l.b16 %v527
        %v724 = vunpack.c.h.b16 %v527
        %v725 = vunpack.c.l.b16 %v528
        %v726 = vunpack.c.h.b16 %v528
        %v727 = vunpack.c.l.b16 %v529
        %v728 = vunpack.c.h.b16 %v529
        %v729 = vunpack.c.l.b16 %v530
        %v730 = vunpack.c.h.b16 %v530
        %v731 = vunpack.c.l.b16 %v531
        %v732 = vunpack.c.h.b16 %v531
        %v733 = vunpack.c.l.b16 %v532
        %v734 = vunpack.c.h.b16 %v532
        %v735 = vunpack.c.l.b16 %v533
        %v736 = vunpack.c.h.b16 %v533
        %v737 = vunpack.c.l.b16 %v534
        %v738 = vunpack.c.h.b16 %v534
        %v739 = vunpack.c.l.b16 %v535
        %v740 = vunpack.c.h.b16 %v535
        %v741 = vunpack.c.l.b16 %v536
        %v742 = vunpack.c.h.b16 %v536
        %v743 = vunpack.c.l.b16 %v537
        %v744 = vunpack.c.h.b16 %v537
        %v745 = vunpack.c.l.b16 %v538
        %v746 = vunpack.c.h.b16 %v538
        %v747 = vunpack.c.l.b16 %v539
        %v748 = vunpack.c.h.b16 %v539
        %v749 = vunpack.c.l.b16 %v540
        %v750 = vunpack.c.h.b16 %v540
        %v751 = vunpack.c.l.b16 %v541
        %v752 = vunpack.c.h.b16 %v541
        %v753 = vunpack.c.l.b16 %v542
        %v754 = vunpack.c.h.b16 %v542
        %v755 = vunpack.c.l.b16 %v543
        %v756 = vunpack.c.h.b16 %v543
        %v757 = vunpack.c.l.b16 %v544
        %v758 = vunpack.c.h.b16 %v544
        %v759 = vunpack.c.l.b16 %v545
        %v760 = vunpack.c.h.b16 %v545
        %v761 = vunpack.c.l.b16 %v546
        %v762 = vunpack.c.h.b16 %v546
        %v763 = vunpack.c.l.b16 %v547
        %v764 = vunpack.c.h.b16 %v547
        %v765 = vunpack.c.l.b16 %v548
        %v766 = vunpack.c.h.b16 %v548
        %v767 = vunpack.c.l.b16 %v549
        %v768 = vunpack.c.h.b16 %v549
        %v769 = vunpack.c.l.b16 %v550
        %v770 = vunpack.c.h.b16 %v550
        %v771 = vunpack.c.l.b16 %v551
        %v772 = vunpack.c.h.b16 %v551
        %v773 = vunpack.c.l.b16 %v552
        %v774 = vunpack.c.h.b16 %v552
        %v775 = vunpack.c.l.b16 %v553
        %v776 = vunpack.c.h.b16 %v553
        %v777 = vunpack.c.l.b16 %v554
        %v778 = vunpack.c.h.b16 %v554
        %v779 = vunpack.c.l.b16 %v555
        %v780 = vunpack.c.h.b16 %v555
        %v781 = vunpack.c.l.b16 %v556
        %v782 = vunpack.c.h.b16 %v556
        %v783 = vunpack.c.l.b16 %v557
        %v784 = vunpack.c.h.b16 %v557
        %v785 = vunpack.c.l.b16 %v558
        %v786 = vunpack.c.h.b16 %v558
        %v787 = vunpack.c.l.b16 %v559
        %v788 = vunpack.c.h.b16 %v559
        %v789 = vunpack.c.l.b16 %v560
        %v790 = vunpack.c.h.b16 %v560
        %v791 = vunpack.c.l.b16 %v561
        %v792 = vunpack.c.h.b16 %v561
        %v793 = vpack.c.b16 %v667, %v665
        %v794 = vpack.c.b16 %v668, %v666
        %v795 = vpack.c.b16 %v671, %v669
        %v796 = vpack.c.b16 %v672, %v670
        %v797 = vpack.c.b16 %v675, %v673
        %v798 = vpack.c.b16 %v676, %v674
        %v799 = vpack.c.b16 %v679, %v677
        %v800 = vpack.c.b16 %v680, %v678
        %v801 = vpack.c.b16 %v683, %v681
        %v802 = vpack.c.b16 %v684, %v682
        %v803 = vpack.c.b16 %v687, %v685
        %v804 = vpack.c.b16 %v688, %v686
        %v805 = vpack.c.b16 %v691, %v689
        %v806 = vpack.c.b16 %v692, %v690
        %v807 = vpack.c.b16 %v695, %v693
        %v808 = vpack.c.b16 %v696, %v694
        %v809 = vpack.c.b16 %v699, %v697
        %v810 = vpack.c.b16 %v700, %v698
        %v811 = vpack.c.b16 %v703, %v701
        %v812 = vpack.c.b16 %v704, %v702
        %v813 = vpack.c.b16 %v707, %v705
        %v814 = vpack.c.b16 %v708, %v706
        %v815 = vpack.c.b16 %v711, %v709
        %v816 = vpack.c.b16 %v712, %v710
        %v817 = vpack.c.b16 %v715, %v713
        %v818 = vpack.c.b16 %v716, %v714
        %v819 = vpack.c.b16 %v719, %v717
        %v820 = vpack.c.b16 %v720, %v718
        %v821 = vpack.c.b16 %v723, %v721
        %v822 = vpack.c.b16 %v724, %v722
        %v823 = vpack.c.b16 %v727, %v725
        %v824 = vpack.c.b16 %v728, %v726
        %v825 = vpack.c.b16 %v731, %v729
        %v826 = vpack.c.b16 %v732, %v730
        %v827 = vpack.c.b16 %v735, %v733
        %v828 = vpack.c.b16 %v736, %v734
        %v829 = vpack.c.b16 %v739, %v737
        %v830 = vpack.c.b16 %v740, %v738
        %v831 = vpack.c.b16 %v743, %v741
        %v832 = vpack.c.b16 %v744, %v742
        %v833 = vpack.c.b16 %v747, %v745
        %v834 = vpack.c.b16 %v748, %v746
        %v835 = vpack.c.b16 %v751, %v749
        %v836 = vpack.c.b16 %v752, %v750
        %v837 = vpack.c.b16 %v755, %v753
        %v838 = vpack.c.b16 %v756, %v754
        %v839 = vpack.c.b16 %v759, %v757
        %v840 = vpack.c.b16 %v760, %v758
        %v841 = vpack.c.b16 %v763, %v761
        %v842 = vpack.c.b16 %v764, %v762
        %v843 = vpack.c.b16 %v767, %v765
        %v844 = vpack.c.b16 %v768, %v766
        %v845 = vpack.c.b16 %v771, %v769
        %v846 = vpack.c.b16 %v772, %v770
        %v847 = vpack.c.b16 %v775, %v773
        %v848 = vpack.c.b16 %v776, %v774
        %v849 = vpack.c.b16 %v779, %v777
        %v850 = vpack.c.b16 %v780, %v778
        %v851 = vpack.c.b16 %v783, %v781
        %v852 = vpack.c.b16 %v784, %v782
        %v853 = vpack.c.b16 %v787, %v785
        %v854 = vpack.c.b16 %v788, %v786
        %v855 = vpack.c.b16 %v791, %v789
        %v856 = vpack.c.b16 %v792, %v790
        %v953 = vunpack.c.l.b16 %v562
        %v954 = vunpack.c.l.b16 %v563
        %v955 = vunpack.c.l.b16 %v564
        %v956 = vunpack.c.l.b16 %v565
        %v957 = vunpack.c.l.b16 %v566
        %v958 = vunpack.c.l.b16 %v567
        %v959 = vunpack.c.l.b16 %v568
        %v960 = vunpack.c.l.b16 %v569
        %v961 = vunpack.c.l.b16 %v570
        %v962 = vunpack.c.l.b16 %v571
        %v963 = vunpack.c.l.b16 %v572
        %v964 = vunpack.c.l.b16 %v573
        %v965 = vunpack.c.l.b16 %v574
        %v966 = vunpack.c.l.b16 %v575
        %v967 = vunpack.c.l.b16 %v576
        %v968 = vunpack.c.l.b16 %v577
        %v969 = vunpack.c.l.b16 %v578
        %v970 = vunpack.c.l.b16 %v579
        %v971 = vunpack.c.l.b16 %v580
        %v972 = vunpack.c.l.b16 %v581
        %v973 = vunpack.c.l.b16 %v582
        %v974 = vunpack.c.l.b16 %v583
        %v975 = vunpack.c.l.b16 %v584
        %v976 = vunpack.c.l.b16 %v585
        %v977 = vunpack.c.l.b16 %v586
        %v978 = vunpack.c.l.b16 %v587
        %v979 = vunpack.c.l.b16 %v588
        %v980 = vunpack.c.l.b16 %v589
        %v981 = vunpack.c.l.b16 %v590
        %v982 = vunpack.c.l.b16 %v591
        %v983 = vunpack.c.l.b16 %v592
        %v984 = vunpack.c.l.b16 %v593
        %v985 = vpack.c.b16 %v954, %v953
        %v986 = vpack.c.b16 %v956, %v955
        %v987 = vpack.c.b16 %v958, %v957
        %v988 = vpack.c.b16 %v960, %v959
        %v989 = vpack.c.b16 %v962, %v961
        %v990 = vpack.c.b16 %v964, %v963
        %v991 = vpack.c.b16 %v966, %v965
        %v992 = vpack.c.b16 %v968, %v967
        %v993 = vpack.c.b16 %v970, %v969
        %v994 = vpack.c.b16 %v972, %v971
        %v995 = vpack.c.b16 %v974, %v973
        %v996 = vpack.c.b16 %v976, %v975
        %v997 = vpack.c.b16 %v978, %v977
        %v998 = vpack.c.b16 %v980, %v979
        %v999 = vpack.c.b16 %v982, %v981
        %v1000 = vpack.c.b16 %v984, %v983
        %1017 = vmatprep.subr.bf16.mxu0 0
        %1018 = vmatpush1.bf16.msra.mxu0 %v992
        %1019 = vmatprep.subr.bf16.mxu0 0
        %1020 = vmatpush1.bf16.msra.mxu0 %v991
        %1021 = vmatprep.subr.bf16.mxu0 0
        %1022 = vmatpush1.bf16.msra.mxu0 %v990
        %1023 = vmatprep.subr.bf16.mxu0 0
        %1024 = vmatpush1.bf16.msra.mxu0 %v989
        %1025 = vmatprep.subr.bf16.mxu0 0
        %1026 = vmatpush1.bf16.msra.mxu0 %v988
        %1027 = vmatprep.subr.bf16.mxu0 0
        %1028 = vmatpush1.bf16.msra.mxu0 %v987
        %1029 = vmatprep.subr.bf16.mxu0 0
        %1030 = vmatpush1.bf16.msra.mxu0 %v986
        %1031 = vmatprep.subr.bf16.mxu0 0
        %1032 = vmatpush1.bf16.msra.mxu0 %v985
        %1033 = vmatprep.subr.bf16.mxu0 0
        %1034 = vmatpush2.bf16.msra.mxu0 %v1000
        %1035 = vmatprep.subr.bf16.mxu0 0
        %1036 = vmatpush2.bf16.msra.mxu0 %v999
        %1037 = vmatprep.subr.bf16.mxu0 0
        %1038 = vmatpush2.bf16.msra.mxu0 %v998
        %1039 = vmatprep.subr.bf16.mxu0 0
        %1040 = vmatpush2.bf16.msra.mxu0 %v997
        %1041 = vmatprep.subr.bf16.mxu0 0
        %1042 = vmatpush2.bf16.msra.mxu0 %v996
        %1043 = vmatprep.subr.bf16.mxu0 0
        %1044 = vmatpush2.bf16.msra.mxu0 %v995
        %1045 = vmatprep.subr.bf16.mxu0 0
        %1046 = vmatpush2.bf16.msra.mxu0 %v994
        %1047 = vmatprep.subr.bf16.mxu0 0
        %1048 = vmatpush2.bf16.msra.mxu0 %v993
        %1049 = vmatprep.mubr.bf16.mxu0 %v794
        %1050 = vmatmul.mubr.bf16.gmra.mxu0 %v793
        %v1051 = vpop.f32.mrf.mxu0
        %v1052 = vadd.f32 %v599, %v1051
        %v1053 = vpop.f32.mrf.mxu0
        %v1054 = vpop.f32.mrf.mxu0
        %v1055 = vadd.f32 %v599, %v1054
        %v1056 = vpop.f32.mrf.mxu0
        %1057 = vmatprep.mubr.bf16.mxu0 %v796
        %1058 = vmatmul.mubr.bf16.gmra.mxu0 %v795
        %v1059 = vpop.f32.mrf.mxu0
        %v1060 = vadd.f32 %v599, %v1059
        %v1061 = vpop.f32.mrf.mxu0
        %v1062 = vpop.f32.mrf.mxu0
        %v1063 = vadd.f32 %v599, %v1062
        %v1064 = vpop.f32.mrf.mxu0
        %1065 = vmatprep.mubr.bf16.mxu0 %v798
        %1066 = vmatmul.mubr.bf16.gmra.mxu0 %v797
        %v1067 = vpop.f32.mrf.mxu0
        %v1068 = vadd.f32 %v599, %v1067
        %v1069 = vpop.f32.mrf.mxu0
        %v1070 = vpop.f32.mrf.mxu0
        %v1071 = vadd.f32 %v599, %v1070
        %v1072 = vpop.f32.mrf.mxu0
        %1073 = vmatprep.mubr.bf16.mxu0 %v800
        %1074 = vmatmul.mubr.bf16.gmra.mxu0 %v799
        %v1075 = vpop.f32.mrf.mxu0
        %v1076 = vadd.f32 %v599, %v1075
        %v1077 = vpop.f32.mrf.mxu0
        %v1078 = vpop.f32.mrf.mxu0
        %v1079 = vadd.f32 %v599, %v1078
        %v1080 = vpop.f32.mrf.mxu0
        %1081 = vmatprep.mubr.bf16.mxu0 %v802
        %1082 = vmatmul.mubr.bf16.gmra.mxu0 %v801
        %v1083 = vpop.f32.mrf.mxu0
        %v1084 = vadd.f32 %v599, %v1083
        %v1085 = vpop.f32.mrf.mxu0
        %v1086 = vpop.f32.mrf.mxu0
        %v1087 = vadd.f32 %v599, %v1086
        %v1088 = vpop.f32.mrf.mxu0
        %1089 = vmatprep.mubr.bf16.mxu0 %v804
        %1090 = vmatmul.mubr.bf16.gmra.mxu0 %v803
        %v1091 = vpop.f32.mrf.mxu0
        %v1092 = vadd.f32 %v599, %v1091
        %v1093 = vpop.f32.mrf.mxu0
        %v1094 = vpop.f32.mrf.mxu0
        %v1095 = vadd.f32 %v599, %v1094
        %v1096 = vpop.f32.mrf.mxu0
        %1097 = vmatprep.mubr.bf16.mxu0 %v806
        %1098 = vmatmul.mubr.bf16.gmra.mxu0 %v805
        %v1099 = vpop.f32.mrf.mxu0
        %v1100 = vadd.f32 %v599, %v1099
        %v1101 = vpop.f32.mrf.mxu0
        %v1102 = vpop.f32.mrf.mxu0
        %v1103 = vadd.f32 %v599, %v1102
        %v1104 = vpop.f32.mrf.mxu0
        %1105 = vmatprep.mubr.bf16.mxu0 %v808
        %1106 = vmatmul.mubr.bf16.gmra.mxu0 %v807
        %v1107 = vpop.f32.mrf.mxu0
        %v1108 = vadd.f32 %v599, %v1107
        %v1109 = vpop.f32.mrf.mxu0
        %v1110 = vpop.f32.mrf.mxu0
        %v1111 = vadd.f32 %v599, %v1110
        %v1112 = vpop.f32.mrf.mxu0
        %1113 = vmatprep.mubr.bf16.mxu0 %v810
        %1114 = vmatmul.mubr.bf16.gmra.mxu0 %v809
        %v1115 = vpop.f32.mrf.mxu0
        %v1116 = vadd.f32 %v599, %v1115
        %v1117 = vpop.f32.mrf.mxu0
        %v1118 = vpop.f32.mrf.mxu0
        %v1119 = vadd.f32 %v599, %v1118
        %v1120 = vpop.f32.mrf.mxu0
        %1121 = vmatprep.mubr.bf16.mxu0 %v812
        %1122 = vmatmul.mubr.bf16.gmra.mxu0 %v811
        %v1123 = vpop.f32.mrf.mxu0
        %v1124 = vadd.f32 %v599, %v1123
        %v1125 = vpop.f32.mrf.mxu0
        %v1126 = vpop.f32.mrf.mxu0
        %v1127 = vadd.f32 %v599, %v1126
        %v1128 = vpop.f32.mrf.mxu0
        %1129 = vmatprep.mubr.bf16.mxu0 %v814
        %1130 = vmatmul.mubr.bf16.gmra.mxu0 %v813
        %v1131 = vpop.f32.mrf.mxu0
        %v1132 = vadd.f32 %v599, %v1131
        %v1133 = vpop.f32.mrf.mxu0
        %v1134 = vpop.f32.mrf.mxu0
        %v1135 = vadd.f32 %v599, %v1134
        %v1136 = vpop.f32.mrf.mxu0
        %1137 = vmatprep.mubr.bf16.mxu0 %v816
        %1138 = vmatmul.mubr.bf16.gmra.mxu0 %v815
        %v1139 = vpop.f32.mrf.mxu0
        %v1140 = vadd.f32 %v599, %v1139
        %v1141 = vpop.f32.mrf.mxu0
        %v1142 = vpop.f32.mrf.mxu0
        %v1143 = vadd.f32 %v599, %v1142
        %v1144 = vpop.f32.mrf.mxu0
        %1145 = vmatprep.mubr.bf16.mxu0 %v818
        %1146 = vmatmul.mubr.bf16.gmra.mxu0 %v817
        %v1147 = vpop.f32.mrf.mxu0
        %v1148 = vadd.f32 %v599, %v1147
        %v1149 = vpop.f32.mrf.mxu0
        %v1150 = vpop.f32.mrf.mxu0
        %v1151 = vadd.f32 %v599, %v1150
        %v1152 = vpop.f32.mrf.mxu0
        %1153 = vmatprep.mubr.bf16.mxu0 %v820
        %1154 = vmatmul.mubr.bf16.gmra.mxu0 %v819
        %v1155 = vpop.f32.mrf.mxu0
        %v1156 = vadd.f32 %v599, %v1155
        %v1157 = vpop.f32.mrf.mxu0
        %v1158 = vpop.f32.mrf.mxu0
        %v1159 = vadd.f32 %v599, %v1158
        %v1160 = vpop.f32.mrf.mxu0
        %1161 = vmatprep.mubr.bf16.mxu0 %v822
        %1162 = vmatmul.mubr.bf16.gmra.mxu0 %v821
        %v1163 = vpop.f32.mrf.mxu0
        %v1164 = vadd.f32 %v599, %v1163
        %v1165 = vpop.f32.mrf.mxu0
        %v1166 = vpop.f32.mrf.mxu0
        %v1167 = vadd.f32 %v599, %v1166
        %v1168 = vpop.f32.mrf.mxu0
        %1169 = vmatprep.mubr.bf16.mxu0 %v824
        %1170 = vmatmul.mubr.bf16.gmra.mxu0 %v823
        %v1171 = vpop.f32.mrf.mxu0
        %v1172 = vadd.f32 %v599, %v1171
        %v1173 = vpop.f32.mrf.mxu0
        %v1174 = vpop.f32.mrf.mxu0
        %v1175 = vadd.f32 %v599, %v1174
        %v1176 = vpop.f32.mrf.mxu0
        %1177 = vmatprep.mubr.bf16.mxu0 %v826
        %1178 = vmatmul.mubr.bf16.gmra.mxu0 %v825
        %v1179 = vpop.f32.mrf.mxu0
        %v1180 = vadd.f32 %v599, %v1179
        %v1181 = vpop.f32.mrf.mxu0
        %v1182 = vpop.f32.mrf.mxu0
        %v1183 = vadd.f32 %v599, %v1182
        %v1184 = vpop.f32.mrf.mxu0
        %1185 = vmatprep.mubr.bf16.mxu0 %v828
        %1186 = vmatmul.mubr.bf16.gmra.mxu0 %v827
        %v1187 = vpop.f32.mrf.mxu0
        %v1188 = vadd.f32 %v599, %v1187
        %v1189 = vpop.f32.mrf.mxu0
        %v1190 = vpop.f32.mrf.mxu0
        %v1191 = vadd.f32 %v599, %v1190
        %v1192 = vpop.f32.mrf.mxu0
        %1193 = vmatprep.mubr.bf16.mxu0 %v830
        %1194 = vmatmul.mubr.bf16.gmra.mxu0 %v829
        %v1195 = vpop.f32.mrf.mxu0
        %v1196 = vadd.f32 %v599, %v1195
        %v1197 = vpop.f32.mrf.mxu0
        %v1198 = vpop.f32.mrf.mxu0
        %v1199 = vadd.f32 %v599, %v1198
        %v1200 = vpop.f32.mrf.mxu0
        %1201 = vmatprep.mubr.bf16.mxu0 %v832
        %1202 = vmatmul.mubr.bf16.gmra.mxu0 %v831
        %v1203 = vpop.f32.mrf.mxu0
        %v1204 = vadd.f32 %v599, %v1203
        %v1205 = vpop.f32.mrf.mxu0
        %v1206 = vpop.f32.mrf.mxu0
        %v1207 = vadd.f32 %v599, %v1206
        %v1208 = vpop.f32.mrf.mxu0
        %1209 = vmatprep.mubr.bf16.mxu0 %v834
        %1210 = vmatmul.mubr.bf16.gmra.mxu0 %v833
        %v1211 = vpop.f32.mrf.mxu0
        %v1212 = vadd.f32 %v599, %v1211
        %v1213 = vpop.f32.mrf.mxu0
        %v1214 = vpop.f32.mrf.mxu0
        %v1215 = vadd.f32 %v599, %v1214
        %v1216 = vpop.f32.mrf.mxu0
        %1217 = vmatprep.mubr.bf16.mxu0 %v836
        %1218 = vmatmul.mubr.bf16.gmra.mxu0 %v835
        %v1219 = vpop.f32.mrf.mxu0
        %v1220 = vadd.f32 %v599, %v1219
        %v1221 = vpop.f32.mrf.mxu0
        %v1222 = vpop.f32.mrf.mxu0
        %v1223 = vadd.f32 %v599, %v1222
        %v1224 = vpop.f32.mrf.mxu0
        %1225 = vmatprep.mubr.bf16.mxu0 %v838
        %1226 = vmatmul.mubr.bf16.gmra.mxu0 %v837
        %v1227 = vpop.f32.mrf.mxu0
        %v1228 = vadd.f32 %v599, %v1227
        %v1229 = vpop.f32.mrf.mxu0
        %v1230 = vpop.f32.mrf.mxu0
        %v1231 = vadd.f32 %v599, %v1230
        %v1232 = vpop.f32.mrf.mxu0
        %1233 = vmatprep.mubr.bf16.mxu0 %v840
        %1234 = vmatmul.mubr.bf16.gmra.mxu0 %v839
        %v1235 = vpop.f32.mrf.mxu0
        %v1236 = vadd.f32 %v599, %v1235
        %v1237 = vpop.f32.mrf.mxu0
        %v1238 = vpop.f32.mrf.mxu0
        %v1239 = vadd.f32 %v599, %v1238
        %v1240 = vpop.f32.mrf.mxu0
        %1241 = vmatprep.mubr.bf16.mxu0 %v842
        %1242 = vmatmul.mubr.bf16.gmra.mxu0 %v841
        %v1243 = vpop.f32.mrf.mxu0
        %v1244 = vadd.f32 %v599, %v1243
        %v1245 = vpop.f32.mrf.mxu0
        %v1246 = vpop.f32.mrf.mxu0
        %v1247 = vadd.f32 %v599, %v1246
        %v1248 = vpop.f32.mrf.mxu0
        %1249 = vmatprep.mubr.bf16.mxu0 %v844
        %1250 = vmatmul.mubr.bf16.gmra.mxu0 %v843
        %v1251 = vpop.f32.mrf.mxu0
        %v1252 = vadd.f32 %v599, %v1251
        %v1253 = vpop.f32.mrf.mxu0
        %v1254 = vpop.f32.mrf.mxu0
        %v1255 = vadd.f32 %v599, %v1254
        %v1256 = vpop.f32.mrf.mxu0
        %1257 = vmatprep.mubr.bf16.mxu0 %v846
        %1258 = vmatmul.mubr.bf16.gmra.mxu0 %v845
        %v1259 = vpop.f32.mrf.mxu0
        %v1260 = vadd.f32 %v599, %v1259
        %v1261 = vpop.f32.mrf.mxu0
        %v1262 = vpop.f32.mrf.mxu0
        %v1263 = vadd.f32 %v599, %v1262
        %v1264 = vpop.f32.mrf.mxu0
        %1265 = vmatprep.mubr.bf16.mxu0 %v848
        %1266 = vmatmul.mubr.bf16.gmra.mxu0 %v847
        %v1267 = vpop.f32.mrf.mxu0
        %v1268 = vadd.f32 %v599, %v1267
        %v1269 = vpop.f32.mrf.mxu0
        %v1270 = vpop.f32.mrf.mxu0
        %v1271 = vadd.f32 %v599, %v1270
        %v1272 = vpop.f32.mrf.mxu0
        %1273 = vmatprep.mubr.bf16.mxu0 %v850
        %1274 = vmatmul.mubr.bf16.gmra.mxu0 %v849
        %v1275 = vpop.f32.mrf.mxu0
        %v1276 = vadd.f32 %v599, %v1275
        %v1277 = vpop.f32.mrf.mxu0
        %v1278 = vpop.f32.mrf.mxu0
        %v1279 = vadd.f32 %v599, %v1278
        %v1280 = vpop.f32.mrf.mxu0
        %1281 = vmatprep.mubr.bf16.mxu0 %v852
        %1282 = vmatmul.mubr.bf16.gmra.mxu0 %v851
        %v1283 = vpop.f32.mrf.mxu0
        %v1284 = vadd.f32 %v599, %v1283
        %v1285 = vpop.f32.mrf.mxu0
        %v1286 = vpop.f32.mrf.mxu0
        %v1287 = vadd.f32 %v599, %v1286
        %v1288 = vpop.f32.mrf.mxu0
        %1289 = vmatprep.mubr.bf16.mxu0 %v854
        %1290 = vmatmul.mubr.bf16.gmra.mxu0 %v853
        %v1291 = vpop.f32.mrf.mxu0
        %v1292 = vadd.f32 %v599, %v1291
        %v1293 = vpop.f32.mrf.mxu0
        %v1294 = vpop.f32.mrf.mxu0
        %v1295 = vadd.f32 %v599, %v1294
        %v1296 = vpop.f32.mrf.mxu0
        %1297 = vmatprep.mubr.bf16.mxu0 %v856
        %1298 = vmatmul.mubr.bf16.gmra.mxu0 %v855
        %v1299 = vpop.f32.mrf.mxu0
        %v1300 = vadd.f32 %v599, %v1299
        %v1301 = vpop.f32.mrf.mxu0
        %v1302 = vpop.f32.mrf.mxu0
        %v1303 = vadd.f32 %v599, %v1302
        %v1304 = vpop.f32.mrf.mxu0
        %1305 = vdwg.mxu0
        %v1306 = vmax.f32 %v1052, 0.0
        %v1307 = vmax.f32 %v1055, 0.0
        %v1308 = vmax.f32 %v1060, 0.0
        %v1309 = vmax.f32 %v1063, 0.0
        %v1310 = vmax.f32 %v1068, 0.0
        %v1311 = vmax.f32 %v1071, 0.0
        %v1312 = vmax.f32 %v1076, 0.0
        %v1313 = vmax.f32 %v1079, 0.0
        %v1314 = vmax.f32 %v1084, 0.0
        %v1315 = vmax.f32 %v1087, 0.0
        %v1316 = vmax.f32 %v1092, 0.0
        %v1317 = vmax.f32 %v1095, 0.0
        %v1318 = vmax.f32 %v1100, 0.0
        %v1319 = vmax.f32 %v1103, 0.0
        %v1320 = vmax.f32 %v1108, 0.0
        %v1321 = vmax.f32 %v1111, 0.0
        %v1322 = vmax.f32 %v1116, 0.0
        %v1323 = vmax.f32 %v1119, 0.0
        %v1324 = vmax.f32 %v1124, 0.0
        %v1325 = vmax.f32 %v1127, 0.0
        %v1326 = vmax.f32 %v1132, 0.0
        %v1327 = vmax.f32 %v1135, 0.0
        %v1328 = vmax.f32 %v1140, 0.0
        %v1329 = vmax.f32 %v1143, 0.0
        %v1330 = vmax.f32 %v1148, 0.0
        %v1331 = vmax.f32 %v1151, 0.0
        %v1332 = vmax.f32 %v1156, 0.0
        %v1333 = vmax.f32 %v1159, 0.0
        %v1334 = vmax.f32 %v1164, 0.0
        %v1335 = vmax.f32 %v1167, 0.0
        %v1336 = vmax.f32 %v1172, 0.0
        %v1337 = vmax.f32 %v1175, 0.0
        %v1338 = vmax.f32 %v1180, 0.0
        %v1339 = vmax.f32 %v1183, 0.0
        %v1340 = vmax.f32 %v1188, 0.0
        %v1341 = vmax.f32 %v1191, 0.0
        %v1342 = vmax.f32 %v1196, 0.0
        %v1343 = vmax.f32 %v1199, 0.0
        %v1344 = vmax.f32 %v1204, 0.0
        %v1345 = vmax.f32 %v1207, 0.0
        %v1346 = vmax.f32 %v1212, 0.0
        %v1347 = vmax.f32 %v1215, 0.0
        %v1348 = vmax.f32 %v1220, 0.0
        %v1349 = vmax.f32 %v1223, 0.0
        %v1350 = vmax.f32 %v1228, 0.0
        %v1351 = vmax.f32 %v1231, 0.0
        %v1352 = vmax.f32 %v1236, 0.0
        %v1353 = vmax.f32 %v1239, 0.0
        %v1354 = vmax.f32 %v1244, 0.0
        %v1355 = vmax.f32 %v1247, 0.0
        %v1356 = vmax.f32 %v1252, 0.0
        %v1357 = vmax.f32 %v1255, 0.0
        %v1358 = vmax.f32 %v1260, 0.0
        %v1359 = vmax.f32 %v1263, 0.0
        %v1360 = vmax.f32 %v1268, 0.0
        %v1361 = vmax.f32 %v1271, 0.0
        %v1362 = vmax.f32 %v1276, 0.0
        %v1363 = vmax.f32 %v1279, 0.0
        %v1364 = vmax.f32 %v1284, 0.0
        %v1365 = vmax.f32 %v1287, 0.0
        %v1366 = vmax.f32 %v1292, 0.0
        %v1367 = vmax.f32 %v1295, 0.0
        %v1368 = vmax.f32 %v1300, 0.0
        %v1369 = vmax.f32 %v1303, 0.0
        %v1370 = vld [vmem:[%s466] sm:$0xff]
        %v1371 = vld [vmem:[%s466 + $0x8] sm:$0xff]
        %v1372 = vld [vmem:[%s466 + $0x10] sm:$0xff]
        %v1373 = vld [vmem:[%s466 + $0x18] sm:$0xff]
        %v1378 = vunpack.c.l.b16 %v1370
        %v1379 = vunpack.c.h.b16 %v1370
        %v1380 = vunpack.c.l.b16 %v1371
        %v1381 = vunpack.c.h.b16 %v1371
        %v1382 = vunpack.c.l.b16 %v1372
        %v1383 = vunpack.c.h.b16 %v1372
        %v1384 = vunpack.c.l.b16 %v1373
        %v1385 = vunpack.c.h.b16 %v1373
        %v1386 = vpack.c.b16 %v1380, %v1378
        %v1387 = vpack.c.b16 %v1381, %v1379
        %v1388 = vpack.c.b16 %v1384, %v1382
        %v1389 = vpack.c.b16 %v1385, %v1383
        %1394 = vmatprep.subr.bf16.mxu0 0
        %1395 = vmatpush1.bf16.msra.mxu0 %v992
        %1396 = vmatprep.subr.bf16.mxu0 0
        %1397 = vmatpush1.bf16.msra.mxu0 %v991
        %1398 = vmatprep.subr.bf16.mxu0 0
        %1399 = vmatpush1.bf16.msra.mxu0 %v990
        %1400 = vmatprep.subr.bf16.mxu0 0
        %1401 = vmatpush1.bf16.msra.mxu0 %v989
        %1402 = vmatprep.subr.bf16.mxu0 0
        %1403 = vmatpush1.bf16.msra.mxu0 %v988
        %1404 = vmatprep.subr.bf16.mxu0 0
        %1405 = vmatpush1.bf16.msra.mxu0 %v987
        %1406 = vmatprep.subr.bf16.mxu0 0
        %1407 = vmatpush1.bf16.msra.mxu0 %v986
        %1408 = vmatprep.subr.bf16.mxu0 0
        %1409 = vmatpush1.bf16.msra.mxu0 %v985
        %1410 = vmatprep.subr.bf16.mxu0 0
        %1411 = vmatpush2.bf16.msra.mxu0 %v1000
        %1412 = vmatprep.subr.bf16.mxu0 0
        %1413 = vmatpush2.bf16.msra.mxu0 %v999
        %1414 = vmatprep.subr.bf16.mxu0 0
        %1415 = vmatpush2.bf16.msra.mxu0 %v998
        %1416 = vmatprep.subr.bf16.mxu0 0
        %1417 = vmatpush2.bf16.msra.mxu0 %v997
        %1418 = vmatprep.subr.bf16.mxu0 0
        %1419 = vmatpush2.bf16.msra.mxu0 %v996
        %1420 = vmatprep.subr.bf16.mxu0 0
        %1421 = vmatpush2.bf16.msra.mxu0 %v995
        %1422 = vmatprep.subr.bf16.mxu0 0
        %1423 = vmatpush2.bf16.msra.mxu0 %v994
        %1424 = vmatprep.subr.bf16.mxu0 0
        %1425 = vmatpush2.bf16.msra.mxu0 %v993
        %1426 = vmatprep.mubr.bf16.mxu0 %v1387
        %1427 = vmatmul.mubr.bf16.gmra.mxu0 %v1386
        %v1428 = vpop.f32.mrf.mxu0
        %v1429 = vadd.f32 %v599, %v1428
        %v1430 = vpop.f32.mrf.mxu0
        %v1431 = vpop.f32.mrf.mxu0
        %v1432 = vadd.f32 %v599, %v1431
        %v1433 = vpop.f32.mrf.mxu0
        %1434 = vmatprep.mubr.bf16.mxu0 %v1389
        %1435 = vmatmul.mubr.bf16.gmra.mxu0 %v1388
        %v1436 = vpop.f32.mrf.mxu0
        %v1437 = vadd.f32 %v599, %v1436
        %v1438 = vpop.f32.mrf.mxu0
        %v1439 = vpop.f32.mrf.mxu0
        %v1440 = vadd.f32 %v599, %v1439
        %v1441 = vpop.f32.mrf.mxu0
        %1442 = vdwg.mxu0
        %v1443 = vmax.f32 %v1429, 0.0
        %v1444 = vmax.f32 %v1432, 0.0
        %v1445 = vmax.f32 %v1437, 0.0
        %v1446 = vmax.f32 %v1440, 0.0
        %v1447 = vstv %s493
        %v1448 = vmul.f32 %v1443, %v1447
        %v1449 = vmul.f32 %v1444, %v1447
        %v1450 = vmul.f32 %v1445, %v1447
        %v1451 = vmul.f32 %v1446, %v1447
        %v1452 = vld [vmem:[%s483] sm:$0xff]
        %v1453 = vld [vmem:[%s483 + $0x8] sm:$0xff]
        %v1454 = vld [vmem:[%s483 + $0x10] sm:$0xff]
        %v1455 = vld [vmem:[%s483 + $0x18] sm:$0xff]
        %v1460 = vunpack.c.l.b16 %v1452
        %v1461 = vunpack.c.h.b16 %v1452
        %v1462 = vunpack.c.l.b16 %v1453
        %v1463 = vunpack.c.h.b16 %v1453
        %v1464 = vunpack.c.l.b16 %v1454
        %v1465 = vunpack.c.h.b16 %v1454
        %v1466 = vunpack.c.l.b16 %v1455
        %v1467 = vunpack.c.h.b16 %v1455
        %v1468 = vpack.c.b16 %v1462, %v1460
        %v1469 = vpack.c.b16 %v1463, %v1461
        %v1470 = vpack.c.b16 %v1466, %v1464
        %v1471 = vpack.c.b16 %v1467, %v1465
        %1476 = vmatprep.subr.bf16.mxu0 0
        %1477 = vmatpush1.bf16.msra.mxu0 %v992
        %1478 = vmatprep.subr.bf16.mxu0 0
        %1479 = vmatpush1.bf16.msra.mxu0 %v991
        %1480 = vmatprep.subr.bf16.mxu0 0
        %1481 = vmatpush1.bf16.msra.mxu0 %v990
        %1482 = vmatprep.subr.bf16.mxu0 0
        %1483 = vmatpush1.bf16.msra.mxu0 %v989
        %1484 = vmatprep.subr.bf16.mxu0 0
        %1485 = vmatpush1.bf16.msra.mxu0 %v988
        %1486 = vmatprep.subr.bf16.mxu0 0
        %1487 = vmatpush1.bf16.msra.mxu0 %v987
        %1488 = vmatprep.subr.bf16.mxu0 0
        %1489 = vmatpush1.bf16.msra.mxu0 %v986
        %1490 = vmatprep.subr.bf16.mxu0 0
        %1491 = vmatpush1.bf16.msra.mxu0 %v985
        %1492 = vmatprep.subr.bf16.mxu0 0
        %1493 = vmatpush2.bf16.msra.mxu0 %v1000
        %1494 = vmatprep.subr.bf16.mxu0 0
        %1495 = vmatpush2.bf16.msra.mxu0 %v999
        %1496 = vmatprep.subr.bf16.mxu0 0
        %1497 = vmatpush2.bf16.msra.mxu0 %v998
        %1498 = vmatprep.subr.bf16.mxu0 0
        %1499 = vmatpush2.bf16.msra.mxu0 %v997
        %1500 = vmatprep.subr.bf16.mxu0 0
        %1501 = vmatpush2.bf16.msra.mxu0 %v996
        %1502 = vmatprep.subr.bf16.mxu0 0
        %1503 = vmatpush2.bf16.msra.mxu0 %v995
        %1504 = vmatprep.subr.bf16.mxu0 0
        %1505 = vmatpush2.bf16.msra.mxu0 %v994
        %1506 = vmatprep.subr.bf16.mxu0 0
        %1507 = vmatpush2.bf16.msra.mxu0 %v993
        %1508 = vmatprep.mubr.bf16.mxu0 %v1469
        %1509 = vmatmul.mubr.bf16.gmra.mxu0 %v1468
        %v1510 = vpop.f32.mrf.mxu0
        %v1511 = vadd.f32 %v599, %v1510
        %v1512 = vpop.f32.mrf.mxu0
        %v1513 = vpop.f32.mrf.mxu0
        %v1514 = vadd.f32 %v599, %v1513
        %v1515 = vpop.f32.mrf.mxu0
        %1516 = vmatprep.mubr.bf16.mxu0 %v1471
        %1517 = vmatmul.mubr.bf16.gmra.mxu0 %v1470
        %v1518 = vpop.f32.mrf.mxu0
        %v1519 = vadd.f32 %v599, %v1518
        %v1520 = vpop.f32.mrf.mxu0
        %v1521 = vpop.f32.mrf.mxu0
        %v1522 = vadd.f32 %v599, %v1521
        %v1523 = vpop.f32.mrf.mxu0
        %1524 = vdwg.mxu0
        %v1525 = vmax.f32 %v1511, 0.0
        %v1526 = vmax.f32 %v1514, 0.0
        %v1527 = vmax.f32 %v1519, 0.0
        %v1528 = vmax.f32 %v1522, 0.0
        %v1529 = vstv %s497
        %v1530 = vmul.f32 %v1525, %v1529
        %v1531 = vmul.f32 %v1526, %v1529
        %v1532 = vmul.f32 %v1527, %v1529
        %v1533 = vmul.f32 %v1528, %v1529
        %v1534 = vpack.c.bf16 %v1307, %v1306
        %v1535 = vpack.c.bf16 %v1309, %v1308
        %v1536 = vpack.c.bf16 %v1311, %v1310
        %v1537 = vpack.c.bf16 %v1313, %v1312
        %v1538 = vpack.c.bf16 %v1315, %v1314
        %v1539 = vpack.c.bf16 %v1317, %v1316
        %v1540 = vpack.c.bf16 %v1319, %v1318
        %v1541 = vpack.c.bf16 %v1321, %v1320
        %v1542 = vpack.c.bf16 %v1323, %v1322
        %v1543 = vpack.c.bf16 %v1325, %v1324
        %v1544 = vpack.c.bf16 %v1327, %v1326
        %v1545 = vpack.c.bf16 %v1329, %v1328
        %v1546 = vpack.c.bf16 %v1331, %v1330
        %v1547 = vpack.c.bf16 %v1333, %v1332
        %v1548 = vpack.c.bf16 %v1335, %v1334
        %v1549 = vpack.c.bf16 %v1337, %v1336
        %v1550 = vpack.c.bf16 %v1339, %v1338
        %v1551 = vpack.c.bf16 %v1341, %v1340
        %v1552 = vpack.c.bf16 %v1343, %v1342
        %v1553 = vpack.c.bf16 %v1345, %v1344
        %v1554 = vpack.c.bf16 %v1347, %v1346
        %v1555 = vpack.c.bf16 %v1349, %v1348
        %v1556 = vpack.c.bf16 %v1351, %v1350
        %v1557 = vpack.c.bf16 %v1353, %v1352
        %v1558 = vpack.c.bf16 %v1355, %v1354
        %v1559 = vpack.c.bf16 %v1357, %v1356
        %v1560 = vpack.c.bf16 %v1359, %v1358
        %v1561 = vpack.c.bf16 %v1361, %v1360
        %v1562 = vpack.c.bf16 %v1363, %v1362
        %v1563 = vpack.c.bf16 %v1365, %v1364
        %v1564 = vpack.c.bf16 %v1367, %v1366
        %v1565 = vpack.c.bf16 %v1369, %v1368
        %vm1566 = vsmask.f32 256
        %v1568 = vshrl.u32 %v1534, 16
        %v1570 = vrot.slane %v1568, 7
        %v1571 = vshll.u32 %v1534, 16
        %v1573 = vor.u32 %v1570, %v1571
        %v1575 = vshrl.u32 %v1535, 16
        %v1577 = vrot.slane %v1575, 7
        %v1578 = vshll.u32 %v1535, 16
        %v1580 = vor.u32 %v1577, %v1578
        %v1581 = vsel %vm1566, %v1570, %v1580
        %v1583 = vshrl.u32 %v1536, 16
        %v1585 = vrot.slane %v1583, 7
        %v1586 = vshll.u32 %v1536, 16
        %v1588 = vor.u32 %v1585, %v1586
        %v1590 = vshrl.u32 %v1537, 16
        %v1592 = vrot.slane %v1590, 7
        %v1593 = vshll.u32 %v1537, 16
        %v1595 = vor.u32 %v1592, %v1593
        %v1596 = vsel %vm1566, %v1585, %v1595
        %v1598 = vshrl.u32 %v1538, 16
        %v1600 = vrot.slane %v1598, 7
        %v1601 = vshll.u32 %v1538, 16
        %v1603 = vor.u32 %v1600, %v1601
        %v1605 = vshrl.u32 %v1539, 16
        %v1607 = vrot.slane %v1605, 7
        %v1608 = vshll.u32 %v1539, 16
        %v1610 = vor.u32 %v1607, %v1608
        %v1611 = vsel %vm1566, %v1600, %v1610
        %v1613 = vshrl.u32 %v1540, 16
        %v1615 = vrot.slane %v1613, 7
        %v1616 = vshll.u32 %v1540, 16
        %v1618 = vor.u32 %v1615, %v1616
        %v1620 = vshrl.u32 %v1541, 16
        %v1622 = vrot.slane %v1620, 7
        %v1623 = vshll.u32 %v1541, 16
        %v1625 = vor.u32 %v1622, %v1623
        %v1626 = vsel %vm1566, %v1615, %v1625
        %v1628 = vshrl.u32 %v1542, 16
        %v1630 = vrot.slane %v1628, 7
        %v1631 = vshll.u32 %v1542, 16
        %v1633 = vor.u32 %v1630, %v1631
        %v1635 = vshrl.u32 %v1543, 16
        %v1637 = vrot.slane %v1635, 7
        %v1638 = vshll.u32 %v1543, 16
        %v1640 = vor.u32 %v1637, %v1638
        %v1641 = vsel %vm1566, %v1630, %v1640
        %v1643 = vshrl.u32 %v1544, 16
        %v1645 = vrot.slane %v1643, 7
        %v1646 = vshll.u32 %v1544, 16
        %v1648 = vor.u32 %v1645, %v1646
        %v1650 = vshrl.u32 %v1545, 16
        %v1652 = vrot.slane %v1650, 7
        %v1653 = vshll.u32 %v1545, 16
        %v1655 = vor.u32 %v1652, %v1653
        %v1656 = vsel %vm1566, %v1645, %v1655
        %v1658 = vshrl.u32 %v1546, 16
        %v1660 = vrot.slane %v1658, 7
        %v1661 = vshll.u32 %v1546, 16
        %v1663 = vor.u32 %v1660, %v1661
        %v1665 = vshrl.u32 %v1547, 16
        %v1667 = vrot.slane %v1665, 7
        %v1668 = vshll.u32 %v1547, 16
        %v1670 = vor.u32 %v1667, %v1668
        %v1671 = vsel %vm1566, %v1660, %v1670
        %v1673 = vshrl.u32 %v1548, 16
        %v1675 = vrot.slane %v1673, 7
        %v1676 = vshll.u32 %v1548, 16
        %v1678 = vor.u32 %v1675, %v1676
        %v1680 = vshrl.u32 %v1549, 16
        %v1682 = vrot.slane %v1680, 7
        %v1683 = vshll.u32 %v1549, 16
        %v1685 = vor.u32 %v1682, %v1683
        %v1686 = vsel %vm1566, %v1675, %v1685
        %v1688 = vshrl.u32 %v1550, 16
        %v1690 = vrot.slane %v1688, 7
        %v1691 = vshll.u32 %v1550, 16
        %v1693 = vor.u32 %v1690, %v1691
        %v1695 = vshrl.u32 %v1551, 16
        %v1697 = vrot.slane %v1695, 7
        %v1698 = vshll.u32 %v1551, 16
        %v1700 = vor.u32 %v1697, %v1698
        %v1701 = vsel %vm1566, %v1690, %v1700
        %v1703 = vshrl.u32 %v1552, 16
        %v1705 = vrot.slane %v1703, 7
        %v1706 = vshll.u32 %v1552, 16
        %v1708 = vor.u32 %v1705, %v1706
        %v1710 = vshrl.u32 %v1553, 16
        %v1712 = vrot.slane %v1710, 7
        %v1713 = vshll.u32 %v1553, 16
        %v1715 = vor.u32 %v1712, %v1713
        %v1716 = vsel %vm1566, %v1705, %v1715
        %v1718 = vshrl.u32 %v1554, 16
        %v1720 = vrot.slane %v1718, 7
        %v1721 = vshll.u32 %v1554, 16
        %v1723 = vor.u32 %v1720, %v1721
        %v1725 = vshrl.u32 %v1555, 16
        %v1727 = vrot.slane %v1725, 7
        %v1728 = vshll.u32 %v1555, 16
        %v1730 = vor.u32 %v1727, %v1728
        %v1731 = vsel %vm1566, %v1720, %v1730
        %v1733 = vshrl.u32 %v1556, 16
        %v1735 = vrot.slane %v1733, 7
        %v1736 = vshll.u32 %v1556, 16
        %v1738 = vor.u32 %v1735, %v1736
        %v1740 = vshrl.u32 %v1557, 16
        %v1742 = vrot.slane %v1740, 7
        %v1743 = vshll.u32 %v1557, 16
        %v1745 = vor.u32 %v1742, %v1743
        %v1746 = vsel %vm1566, %v1735, %v1745
        %v1748 = vshrl.u32 %v1558, 16
        %v1750 = vrot.slane %v1748, 7
        %v1751 = vshll.u32 %v1558, 16
        %v1753 = vor.u32 %v1750, %v1751
        %v1755 = vshrl.u32 %v1559, 16
        %v1757 = vrot.slane %v1755, 7
        %v1758 = vshll.u32 %v1559, 16
        %v1760 = vor.u32 %v1757, %v1758
        %v1761 = vsel %vm1566, %v1750, %v1760
        %v1763 = vshrl.u32 %v1560, 16
        %v1765 = vrot.slane %v1763, 7
        %v1766 = vshll.u32 %v1560, 16
        %v1768 = vor.u32 %v1765, %v1766
        %v1770 = vshrl.u32 %v1561, 16
        %v1772 = vrot.slane %v1770, 7
        %v1773 = vshll.u32 %v1561, 16
        %v1775 = vor.u32 %v1772, %v1773
        %v1776 = vsel %vm1566, %v1765, %v1775
        %v1778 = vshrl.u32 %v1562, 16
        %v1780 = vrot.slane %v1778, 7
        %v1781 = vshll.u32 %v1562, 16
        %v1783 = vor.u32 %v1780, %v1781
        %v1785 = vshrl.u32 %v1563, 16
        %v1787 = vrot.slane %v1785, 7
        %v1788 = vshll.u32 %v1563, 16
        %v1790 = vor.u32 %v1787, %v1788
        %v1791 = vsel %vm1566, %v1780, %v1790
        %v1793 = vshrl.u32 %v1564, 16
        %v1795 = vrot.slane %v1793, 7
        %v1796 = vshll.u32 %v1564, 16
        %v1798 = vor.u32 %v1795, %v1796
        %v1800 = vshrl.u32 %v1565, 16
        %v1802 = vrot.slane %v1800, 7
        %v1803 = vshll.u32 %v1565, 16
        %v1805 = vor.u32 %v1802, %v1803
        %v1806 = vsel %vm1566, %v1795, %v1805
        %vm1823 = vcmask 1040384
        %vm1824 = vmand %vm1823, %vm1566
        %v1825 = vsel %vm1824, 0, %v1573
        %v1826 = vsel %vm1824, 0, %v1588
        %v1827 = vsel %vm1824, 0, %v1603
        %v1828 = vsel %vm1824, 0, %v1618
        %v1829 = vsel %vm1824, 0, %v1633
        %v1830 = vsel %vm1824, 0, %v1648
        %v1831 = vsel %vm1824, 0, %v1663
        %v1832 = vsel %vm1824, 0, %v1678
        %v1833 = vsel %vm1824, 0, %v1693
        %v1834 = vsel %vm1824, 0, %v1708
        %v1835 = vsel %vm1824, 0, %v1723
        %v1836 = vsel %vm1824, 0, %v1738
        %v1837 = vsel %vm1824, 0, %v1753
        %v1838 = vsel %vm1824, 0, %v1768
        %v1839 = vsel %vm1824, 0, %v1783
        %v1840 = vsel %vm1824, 0, %v1798
        %vm1841 = vsmask.f32 7424
        %v1842 = vrot.slane %v1571, 1
        %v1843 = vor.u32 %v1568, %v1842
        %v1844 = vrot.slane %v1578, 1
        %v1845 = vsel %vm1841, %v1843, %v1844
        %v1846 = vor.u32 %v1575, %v1844
        %v1847 = vrot.slane %v1586, 1
        %v1848 = vor.u32 %v1583, %v1847
        %v1849 = vrot.slane %v1593, 1
        %v1850 = vsel %vm1841, %v1848, %v1849
        %v1851 = vor.u32 %v1590, %v1849
        %v1852 = vrot.slane %v1601, 1
        %v1853 = vor.u32 %v1598, %v1852
        %v1854 = vrot.slane %v1608, 1
        %v1855 = vsel %vm1841, %v1853, %v1854
        %v1856 = vor.u32 %v1605, %v1854
        %v1857 = vrot.slane %v1616, 1
        %v1858 = vor.u32 %v1613, %v1857
        %v1859 = vrot.slane %v1623, 1
        %v1860 = vsel %vm1841, %v1858, %v1859
        %v1861 = vor.u32 %v1620, %v1859
        %v1862 = vrot.slane %v1631, 1
        %v1863 = vor.u32 %v1628, %v1862
        %v1864 = vrot.slane %v1638, 1
        %v1865 = vsel %vm1841, %v1863, %v1864
        %v1866 = vor.u32 %v1635, %v1864
        %v1867 = vrot.slane %v1646, 1
        %v1868 = vor.u32 %v1643, %v1867
        %v1869 = vrot.slane %v1653, 1
        %v1870 = vsel %vm1841, %v1868, %v1869
        %v1871 = vor.u32 %v1650, %v1869
        %v1872 = vrot.slane %v1661, 1
        %v1873 = vor.u32 %v1658, %v1872
        %v1874 = vrot.slane %v1668, 1
        %v1875 = vsel %vm1841, %v1873, %v1874
        %v1876 = vor.u32 %v1665, %v1874
        %v1877 = vrot.slane %v1676, 1
        %v1878 = vor.u32 %v1673, %v1877
        %v1879 = vrot.slane %v1683, 1
        %v1880 = vsel %vm1841, %v1878, %v1879
        %v1881 = vor.u32 %v1680, %v1879
        %v1882 = vrot.slane %v1691, 1
        %v1883 = vor.u32 %v1688, %v1882
        %v1884 = vrot.slane %v1698, 1
        %v1885 = vsel %vm1841, %v1883, %v1884
        %v1886 = vor.u32 %v1695, %v1884
        %v1887 = vrot.slane %v1706, 1
        %v1888 = vor.u32 %v1703, %v1887
        %v1889 = vrot.slane %v1713, 1
        %v1890 = vsel %vm1841, %v1888, %v1889
        %v1891 = vor.u32 %v1710, %v1889
        %v1892 = vrot.slane %v1721, 1
        %v1893 = vor.u32 %v1718, %v1892
        %v1894 = vrot.slane %v1728, 1
        %v1895 = vsel %vm1841, %v1893, %v1894
        %v1896 = vor.u32 %v1725, %v1894
        %v1897 = vrot.slane %v1736, 1
        %v1898 = vor.u32 %v1733, %v1897
        %v1899 = vrot.slane %v1743, 1
        %v1900 = vsel %vm1841, %v1898, %v1899
        %v1901 = vor.u32 %v1740, %v1899
        %v1902 = vrot.slane %v1751, 1
        %v1903 = vor.u32 %v1748, %v1902
        %v1904 = vrot.slane %v1758, 1
        %v1905 = vsel %vm1841, %v1903, %v1904
        %v1906 = vor.u32 %v1755, %v1904
        %v1907 = vrot.slane %v1766, 1
        %v1908 = vor.u32 %v1763, %v1907
        %v1909 = vrot.slane %v1773, 1
        %v1910 = vsel %vm1841, %v1908, %v1909
        %v1911 = vor.u32 %v1770, %v1909
        %v1912 = vrot.slane %v1781, 1
        %v1913 = vor.u32 %v1778, %v1912
        %v1914 = vrot.slane %v1788, 1
        %v1915 = vsel %vm1841, %v1913, %v1914
        %v1916 = vor.u32 %v1785, %v1914
        %v1917 = vrot.slane %v1796, 1
        %v1918 = vor.u32 %v1793, %v1917
        %v1919 = vrot.slane %v1803, 1
        %v1920 = vsel %vm1841, %v1918, %v1919
        %v1921 = vor.u32 %v1800, %v1919
        %vm1938 = vcmask 1047552
        %vm1939 = vmand %vm1938, %vm1841
        %v1940 = vsel %vm1939, %v1846, 0
        %v1941 = vsel %vm1939, %v1851, 0
        %v1942 = vsel %vm1939, %v1856, 0
        %v1943 = vsel %vm1939, %v1861, 0
        %v1944 = vsel %vm1939, %v1866, 0
        %v1945 = vsel %vm1939, %v1871, 0
        %v1946 = vsel %vm1939, %v1876, 0
        %v1947 = vsel %vm1939, %v1881, 0
        %v1948 = vsel %vm1939, %v1886, 0
        %v1949 = vsel %vm1939, %v1891, 0
        %v1950 = vsel %vm1939, %v1896, 0
        %v1951 = vsel %vm1939, %v1901, 0
        %v1952 = vsel %vm1939, %v1906, 0
        %v1953 = vsel %vm1939, %v1911, 0
        %v1954 = vsel %vm1939, %v1916, 0
        %v1955 = vsel %vm1939, %v1921, 0
        %1988 = vrot.lane.b32.xlu0 %v1534, 64
        %v1989 = vpop.permute.xlu0 %1988
        %1990 = vrot.lane.b32.xlu0 %v1535, 64
        %v1991 = vpop.permute.xlu0 %1990
        %1992 = vrot.lane.b32.xlu0 %v1536, 64
        %v1993 = vpop.permute.xlu0 %1992
        %1994 = vrot.lane.b32.xlu0 %v1537, 64
        %v1995 = vpop.permute.xlu0 %1994
        %1996 = vrot.lane.b32.xlu0 %v1538, 64
        %v1997 = vpop.permute.xlu0 %1996
        %1998 = vrot.lane.b32.xlu0 %v1539, 64
        %v1999 = vpop.permute.xlu0 %1998
        %2000 = vrot.lane.b32.xlu0 %v1540, 64
        %v2001 = vpop.permute.xlu0 %2000
        %2002 = vrot.lane.b32.xlu0 %v1541, 64
        %v2003 = vpop.permute.xlu0 %2002
        %2004 = vrot.lane.b32.xlu0 %v1542, 64
        %v2005 = vpop.permute.xlu0 %2004
        %2006 = vrot.lane.b32.xlu0 %v1543, 64
        %v2007 = vpop.permute.xlu0 %2006
        %2008 = vrot.lane.b32.xlu0 %v1544, 64
        %v2009 = vpop.permute.xlu0 %2008
        %2010 = vrot.lane.b32.xlu0 %v1545, 64
        %v2011 = vpop.permute.xlu0 %2010
        %2012 = vrot.lane.b32.xlu0 %v1546, 64
        %v2013 = vpop.permute.xlu0 %2012
        %2014 = vrot.lane.b32.xlu0 %v1547, 64
        %v2015 = vpop.permute.xlu0 %2014
        %2016 = vrot.lane.b32.xlu0 %v1548, 64
        %v2017 = vpop.permute.xlu0 %2016
        %2018 = vrot.lane.b32.xlu0 %v1549, 64
        %v2019 = vpop.permute.xlu0 %2018
        %2020 = vrot.lane.b32.xlu0 %v1550, 64
        %v2021 = vpop.permute.xlu0 %2020
        %2022 = vrot.lane.b32.xlu0 %v1551, 64
        %v2023 = vpop.permute.xlu0 %2022
        %2024 = vrot.lane.b32.xlu0 %v1552, 64
        %v2025 = vpop.permute.xlu0 %2024
        %2026 = vrot.lane.b32.xlu0 %v1553, 64
        %v2027 = vpop.permute.xlu0 %2026
        %2028 = vrot.lane.b32.xlu0 %v1554, 64
        %v2029 = vpop.permute.xlu0 %2028
        %2030 = vrot.lane.b32.xlu0 %v1555, 64
        %v2031 = vpop.permute.xlu0 %2030
        %2032 = vrot.lane.b32.xlu0 %v1556, 64
        %v2033 = vpop.permute.xlu0 %2032
        %2034 = vrot.lane.b32.xlu0 %v1557, 64
        %v2035 = vpop.permute.xlu0 %2034
        %2036 = vrot.lane.b32.xlu0 %v1558, 64
        %v2037 = vpop.permute.xlu0 %2036
        %2038 = vrot.lane.b32.xlu0 %v1559, 64
        %v2039 = vpop.permute.xlu0 %2038
        %2040 = vrot.lane.b32.xlu0 %v1560, 64
        %v2041 = vpop.permute.xlu0 %2040
        %2042 = vrot.lane.b32.xlu0 %v1561, 64
        %v2043 = vpop.permute.xlu0 %2042
        %2044 = vrot.lane.b32.xlu0 %v1562, 64
        %v2045 = vpop.permute.xlu0 %2044
        %2046 = vrot.lane.b32.xlu0 %v1563, 64
        %v2047 = vpop.permute.xlu0 %2046
        %2048 = vrot.lane.b32.xlu0 %v1564, 64
        %v2049 = vpop.permute.xlu0 %2048
        %2050 = vrot.lane.b32.xlu0 %v1565, 64
        %v2051 = vpop.permute.xlu0 %2050
        %vm2052 = vcmask 523264
        %v2055 = vsel %vm2052, %v1825, %v1989
        %v2058 = vsel %vm2052, %v1581, %v1991
        %v2061 = vsel %vm2052, %v1826, %v1993
        %v2064 = vsel %vm2052, %v1596, %v1995
        %v2067 = vsel %vm2052, %v1827, %v1997
        %v2070 = vsel %vm2052, %v1611, %v1999
        %v2073 = vsel %vm2052, %v1828, %v2001
        %v2076 = vsel %vm2052, %v1626, %v2003
        %v2079 = vsel %vm2052, %v1829, %v2005
        %v2082 = vsel %vm2052, %v1641, %v2007
        %v2085 = vsel %vm2052, %v1830, %v2009
        %v2088 = vsel %vm2052, %v1656, %v2011
        %v2091 = vsel %vm2052, %v1831, %v2013
        %v2094 = vsel %vm2052, %v1671, %v2015
        %v2097 = vsel %vm2052, %v1832, %v2017
        %v2100 = vsel %vm2052, %v1686, %v2019
        %v2103 = vsel %vm2052, %v1833, %v2021
        %v2106 = vsel %vm2052, %v1701, %v2023
        %v2109 = vsel %vm2052, %v1834, %v2025
        %v2112 = vsel %vm2052, %v1716, %v2027
        %v2115 = vsel %vm2052, %v1835, %v2029
        %v2118 = vsel %vm2052, %v1731, %v2031
        %v2121 = vsel %vm2052, %v1836, %v2033
        %v2124 = vsel %vm2052, %v1746, %v2035
        %v2127 = vsel %vm2052, %v1837, %v2037
        %v2130 = vsel %vm2052, %v1761, %v2039
        %v2133 = vsel %vm2052, %v1838, %v2041
        %v2136 = vsel %vm2052, %v1776, %v2043
        %v2139 = vsel %vm2052, %v1839, %v2045
        %v2142 = vsel %vm2052, %v1791, %v2047
        %v2145 = vsel %vm2052, %v1840, %v2049
        %v2148 = vsel %vm2052, %v1806, %v2051
        %v2197 = vunpack.c.l.b16 %v2055
        %v2198 = vunpack.c.l.b16 %v1845
        %v2199 = vunpack.c.h.b16 %v2055
        %v2200 = vunpack.c.h.b16 %v1845
        %v2201 = vunpack.c.l.b16 %v2058
        %v2202 = vunpack.c.l.b16 %v1940
        %v2203 = vunpack.c.h.b16 %v2058
        %v2204 = vunpack.c.h.b16 %v1940
        %v2205 = vunpack.c.l.b16 %v2061
        %v2206 = vunpack.c.l.b16 %v1850
        %v2207 = vunpack.c.h.b16 %v2061
        %v2208 = vunpack.c.h.b16 %v1850
        %v2209 = vunpack.c.l.b16 %v2064
        %v2210 = vunpack.c.l.b16 %v1941
        %v2211 = vunpack.c.h.b16 %v2064
        %v2212 = vunpack.c.h.b16 %v1941
        %v2213 = vunpack.c.l.b16 %v2067
        %v2214 = vunpack.c.l.b16 %v1855
        %v2215 = vunpack.c.h.b16 %v2067
        %v2216 = vunpack.c.h.b16 %v1855
        %v2217 = vunpack.c.l.b16 %v2070
        %v2218 = vunpack.c.l.b16 %v1942
        %v2219 = vunpack.c.h.b16 %v2070
        %v2220 = vunpack.c.h.b16 %v1942
        %v2221 = vunpack.c.l.b16 %v2073
        %v2222 = vunpack.c.l.b16 %v1860
        %v2223 = vunpack.c.h.b16 %v2073
        %v2224 = vunpack.c.h.b16 %v1860
        %v2225 = vunpack.c.l.b16 %v2076
        %v2226 = vunpack.c.l.b16 %v1943
        %v2227 = vunpack.c.h.b16 %v2076
        %v2228 = vunpack.c.h.b16 %v1943
        %v2229 = vunpack.c.l.b16 %v2079
        %v2230 = vunpack.c.l.b16 %v1865
        %v2231 = vunpack.c.h.b16 %v2079
        %v2232 = vunpack.c.h.b16 %v1865
        %v2233 = vunpack.c.l.b16 %v2082
        %v2234 = vunpack.c.l.b16 %v1944
        %v2235 = vunpack.c.h.b16 %v2082
        %v2236 = vunpack.c.h.b16 %v1944
        %v2237 = vunpack.c.l.b16 %v2085
        %v2238 = vunpack.c.l.b16 %v1870
        %v2239 = vunpack.c.h.b16 %v2085
        %v2240 = vunpack.c.h.b16 %v1870
        %v2241 = vunpack.c.l.b16 %v2088
        %v2242 = vunpack.c.l.b16 %v1945
        %v2243 = vunpack.c.h.b16 %v2088
        %v2244 = vunpack.c.h.b16 %v1945
        %v2245 = vunpack.c.l.b16 %v2091
        %v2246 = vunpack.c.l.b16 %v1875
        %v2247 = vunpack.c.h.b16 %v2091
        %v2248 = vunpack.c.h.b16 %v1875
        %v2249 = vunpack.c.l.b16 %v2094
        %v2250 = vunpack.c.l.b16 %v1946
        %v2251 = vunpack.c.h.b16 %v2094
        %v2252 = vunpack.c.h.b16 %v1946
        %v2253 = vunpack.c.l.b16 %v2097
        %v2254 = vunpack.c.l.b16 %v1880
        %v2255 = vunpack.c.h.b16 %v2097
        %v2256 = vunpack.c.h.b16 %v1880
        %v2257 = vunpack.c.l.b16 %v2100
        %v2258 = vunpack.c.l.b16 %v1947
        %v2259 = vunpack.c.h.b16 %v2100
        %v2260 = vunpack.c.h.b16 %v1947
        %v2261 = vunpack.c.l.b16 %v2103
        %v2262 = vunpack.c.l.b16 %v1885
        %v2263 = vunpack.c.h.b16 %v2103
        %v2264 = vunpack.c.h.b16 %v1885
        %v2265 = vunpack.c.l.b16 %v2106
        %v2266 = vunpack.c.l.b16 %v1948
        %v2267 = vunpack.c.h.b16 %v2106
        %v2268 = vunpack.c.h.b16 %v1948
        %v2269 = vunpack.c.l.b16 %v2109
        %v2270 = vunpack.c.l.b16 %v1890
        %v2271 = vunpack.c.h.b16 %v2109
        %v2272 = vunpack.c.h.b16 %v1890
        %v2273 = vunpack.c.l.b16 %v2112
        %v2274 = vunpack.c.l.b16 %v1949
        %v2275 = vunpack.c.h.b16 %v2112
        %v2276 = vunpack.c.h.b16 %v1949
        %v2277 = vunpack.c.l.b16 %v2115
        %v2278 = vunpack.c.l.b16 %v1895
        %v2279 = vunpack.c.h.b16 %v2115
        %v2280 = vunpack.c.h.b16 %v1895
        %v2281 = vunpack.c.l.b16 %v2118
        %v2282 = vunpack.c.l.b16 %v1950
        %v2283 = vunpack.c.h.b16 %v2118
        %v2284 = vunpack.c.h.b16 %v1950
        %v2285 = vunpack.c.l.b16 %v2121
        %v2286 = vunpack.c.l.b16 %v1900
        %v2287 = vunpack.c.h.b16 %v2121
        %v2288 = vunpack.c.h.b16 %v1900
        %v2289 = vunpack.c.l.b16 %v2124
        %v2290 = vunpack.c.l.b16 %v1951
        %v2291 = vunpack.c.h.b16 %v2124
        %v2292 = vunpack.c.h.b16 %v1951
        %v2293 = vunpack.c.l.b16 %v2127
        %v2294 = vunpack.c.l.b16 %v1905
        %v2295 = vunpack.c.h.b16 %v2127
        %v2296 = vunpack.c.h.b16 %v1905
        %v2297 = vunpack.c.l.b16 %v2130
        %v2298 = vunpack.c.l.b16 %v1952
        %v2299 = vunpack.c.h.b16 %v2130
        %v2300 = vunpack.c.h.b16 %v1952
        %v2301 = vunpack.c.l.b16 %v2133
        %v2302 = vunpack.c.l.b16 %v1910
        %v2303 = vunpack.c.h.b16 %v2133
        %v2304 = vunpack.c.h.b16 %v1910
        %v2305 = vunpack.c.l.b16 %v2136
        %v2306 = vunpack.c.l.b16 %v1953
        %v2307 = vunpack.c.h.b16 %v2136
        %v2308 = vunpack.c.h.b16 %v1953
        %v2309 = vunpack.c.l.b16 %v2139
        %v2310 = vunpack.c.l.b16 %v1915
        %v2311 = vunpack.c.h.b16 %v2139
        %v2312 = vunpack.c.h.b16 %v1915
        %v2313 = vunpack.c.l.b16 %v2142
        %v2314 = vunpack.c.l.b16 %v1954
        %v2315 = vunpack.c.h.b16 %v2142
        %v2316 = vunpack.c.h.b16 %v1954
        %v2317 = vunpack.c.l.b16 %v2145
        %v2318 = vunpack.c.l.b16 %v1920
        %v2319 = vunpack.c.h.b16 %v2145
        %v2320 = vunpack.c.h.b16 %v1920
        %v2321 = vunpack.c.l.b16 %v2148
        %v2322 = vunpack.c.l.b16 %v1955
        %v2323 = vunpack.c.h.b16 %v2148
        %v2324 = vunpack.c.h.b16 %v1955
        %v2325 = vpack.c.b16 %v2198, %v2197
        %v2326 = vpack.c.b16 %v2200, %v2199
        %v2327 = vpack.c.b16 %v2202, %v2201
        %v2328 = vpack.c.b16 %v2204, %v2203
        %v2329 = vpack.c.b16 %v2206, %v2205
        %v2330 = vpack.c.b16 %v2208, %v2207
        %v2331 = vpack.c.b16 %v2210, %v2209
        %v2332 = vpack.c.b16 %v2212, %v2211
        %v2333 = vpack.c.b16 %v2214, %v2213
        %v2334 = vpack.c.b16 %v2216, %v2215
        %v2335 = vpack.c.b16 %v2218, %v2217
        %v2336 = vpack.c.b16 %v2220, %v2219
        %v2337 = vpack.c.b16 %v2222, %v2221
        %v2338 = vpack.c.b16 %v2224, %v2223
        %v2339 = vpack.c.b16 %v2226, %v2225
        %v2340 = vpack.c.b16 %v2228, %v2227
        %v2341 = vpack.c.b16 %v2230, %v2229
        %v2342 = vpack.c.b16 %v2232, %v2231
        %v2343 = vpack.c.b16 %v2234, %v2233
        %v2344 = vpack.c.b16 %v2236, %v2235
        %v2345 = vpack.c.b16 %v2238, %v2237
        %v2346 = vpack.c.b16 %v2240, %v2239
        %v2347 = vpack.c.b16 %v2242, %v2241
        %v2348 = vpack.c.b16 %v2244, %v2243
        %v2349 = vpack.c.b16 %v2246, %v2245
        %v2350 = vpack.c.b16 %v2248, %v2247
        %v2351 = vpack.c.b16 %v2250, %v2249
        %v2352 = vpack.c.b16 %v2252, %v2251
        %v2353 = vpack.c.b16 %v2254, %v2253
        %v2354 = vpack.c.b16 %v2256, %v2255
        %v2355 = vpack.c.b16 %v2258, %v2257
        %v2356 = vpack.c.b16 %v2260, %v2259
        %v2357 = vpack.c.b16 %v2262, %v2261
        %v2358 = vpack.c.b16 %v2264, %v2263
        %v2359 = vpack.c.b16 %v2266, %v2265
        %v2360 = vpack.c.b16 %v2268, %v2267
        %v2361 = vpack.c.b16 %v2270, %v2269
        %v2362 = vpack.c.b16 %v2272, %v2271
        %v2363 = vpack.c.b16 %v2274, %v2273
        %v2364 = vpack.c.b16 %v2276, %v2275
        %v2365 = vpack.c.b16 %v2278, %v2277
        %v2366 = vpack.c.b16 %v2280, %v2279
        %v2367 = vpack.c.b16 %v2282, %v2281
        %v2368 = vpack.c.b16 %v2284, %v2283
        %v2369 = vpack.c.b16 %v2286, %v2285
        %v2370 = vpack.c.b16 %v2288, %v2287
        %v2371 = vpack.c.b16 %v2290, %v2289
        %v2372 = vpack.c.b16 %v2292, %v2291
        %v2373 = vpack.c.b16 %v2294, %v2293
        %v2374 = vpack.c.b16 %v2296, %v2295
        %v2375 = vpack.c.b16 %v2298, %v2297
        %v2376 = vpack.c.b16 %v2300, %v2299
        %v2377 = vpack.c.b16 %v2302, %v2301
        %v2378 = vpack.c.b16 %v2304, %v2303
        %v2379 = vpack.c.b16 %v2306, %v2305
        %v2380 = vpack.c.b16 %v2308, %v2307
        %v2381 = vpack.c.b16 %v2310, %v2309
        %v2382 = vpack.c.b16 %v2312, %v2311
        %v2383 = vpack.c.b16 %v2314, %v2313
        %v2384 = vpack.c.b16 %v2316, %v2315
        %v2385 = vpack.c.b16 %v2318, %v2317
        %v2386 = vpack.c.b16 %v2320, %v2319
        %v2387 = vpack.c.b16 %v2322, %v2321
        %v2388 = vpack.c.b16 %v2324, %v2323
        %s2453 = scalar_lea.vmem [#allocation2], 32
        %vm2454 = vcmask 1043456
        %vm2455 = vcmask 523268
        %vm2456 = vmor %vm2455, %vm2454
        %2457 = vst.msk [vmem:[%s2453] sm:$0xff] %vm2456, %v2325
        %2458 = vst.msk [vmem:[%s2453 + $0x8] sm:$0xff] %vm2456, %v2326
        %2459 = vst.msk [vmem:[%s2453 + $0x10] sm:$0xff] %vm2456, %v2327
        %2460 = vst.msk [vmem:[%s2453 + $0x18] sm:$0xff] %vm2456, %v2328
        %2461 = vst.msk [vmem:[%s2453 + $0x20] sm:$0xff] %vm2456, %v2329
        %2462 = vst.msk [vmem:[%s2453 + $0x28] sm:$0xff] %vm2456, %v2330
        %2463 = vst.msk [vmem:[%s2453 + $0x30] sm:$0xff] %vm2456, %v2331
        %2464 = vst.msk [vmem:[%s2453 + $0x38] sm:$0xff] %vm2456, %v2332
        %2465 = vst.msk [vmem:[%s2453 + $0x40] sm:$0xff] %vm2456, %v2333
        %2466 = vst.msk [vmem:[%s2453 + $0x48] sm:$0xff] %vm2456, %v2334
        %2467 = vst.msk [vmem:[%s2453 + $0x50] sm:$0xff] %vm2456, %v2335
        %2468 = vst.msk [vmem:[%s2453 + $0x58] sm:$0xff] %vm2456, %v2336
        %2469 = vst.msk [vmem:[%s2453 + $0x60] sm:$0xff] %vm2456, %v2337
        %2470 = vst.msk [vmem:[%s2453 + $0x68] sm:$0xff] %vm2456, %v2338
        %2471 = vst.msk [vmem:[%s2453 + $0x70] sm:$0xff] %vm2456, %v2339
        %2472 = vst.msk [vmem:[%s2453 + $0x78] sm:$0xff] %vm2456, %v2340
        %2473 = vst.msk [vmem:[%s2453 + $0x80] sm:$0xff] %vm2456, %v2341
        %2474 = vst.msk [vmem:[%s2453 + $0x88] sm:$0xff] %vm2456, %v2342
        %2475 = vst.msk [vmem:[%s2453 + $0x90] sm:$0xff] %vm2456, %v2343
        %2476 = vst.msk [vmem:[%s2453 + $0x98] sm:$0xff] %vm2456, %v2344
        %2477 = vst.msk [vmem:[%s2453 + $0xa0] sm:$0xff] %vm2456, %v2345
        %2478 = vst.msk [vmem:[%s2453 + $0xa8] sm:$0xff] %vm2456, %v2346
        %2479 = vst.msk [vmem:[%s2453 + $0xb0] sm:$0xff] %vm2456, %v2347
        %2480 = vst.msk [vmem:[%s2453 + $0xb8] sm:$0xff] %vm2456, %v2348
        %2481 = vst.msk [vmem:[%s2453 + $0xc0] sm:$0xff] %vm2456, %v2349
        %2482 = vst.msk [vmem:[%s2453 + $0xc8] sm:$0xff] %vm2456, %v2350
        %2483 = vst.msk [vmem:[%s2453 + $0xd0] sm:$0xff] %vm2456, %v2351
        %2484 = vst.msk [vmem:[%s2453 + $0xd8] sm:$0xff] %vm2456, %v2352
        %2485 = vst.msk [vmem:[%s2453 + $0xe0] sm:$0xff] %vm2456, %v2353
        %2486 = vst.msk [vmem:[%s2453 + $0xe8] sm:$0xff] %vm2456, %v2354
        %2487 = vst.msk [vmem:[%s2453 + $0xf0] sm:$0xff] %vm2456, %v2355
        %2488 = vst.msk [vmem:[%s2453 + $0xf8] sm:$0xff] %vm2456, %v2356
        %2489 = vst.msk [vmem:[%s2453 + $0x100] sm:$0xff] %vm2456, %v2357
        %2490 = vst.msk [vmem:[%s2453 + $0x108] sm:$0xff] %vm2456, %v2358
        %2491 = vst.msk [vmem:[%s2453 + $0x110] sm:$0xff] %vm2456, %v2359
        %2492 = vst.msk [vmem:[%s2453 + $0x118] sm:$0xff] %vm2456, %v2360
        %2493 = vst.msk [vmem:[%s2453 + $0x120] sm:$0xff] %vm2456, %v2361
        %2494 = vst.msk [vmem:[%s2453 + $0x128] sm:$0xff] %vm2456, %v2362
        %2495 = vst.msk [vmem:[%s2453 + $0x130] sm:$0xff] %vm2456, %v2363
        %2496 = vst.msk [vmem:[%s2453 + $0x138] sm:$0xff] %vm2456, %v2364
        %2497 = vst.msk [vmem:[%s2453 + $0x140] sm:$0xff] %vm2456, %v2365
        %2498 = vst.msk [vmem:[%s2453 + $0x148] sm:$0xff] %vm2456, %v2366
        %2499 = vst.msk [vmem:[%s2453 + $0x150] sm:$0xff] %vm2456, %v2367
        %2500 = vst.msk [vmem:[%s2453 + $0x158] sm:$0xff] %vm2456, %v2368
        %2501 = vst.msk [vmem:[%s2453 + $0x160] sm:$0xff] %vm2456, %v2369
        %2502 = vst.msk [vmem:[%s2453 + $0x168] sm:$0xff] %vm2456, %v2370
        %2503 = vst.msk [vmem:[%s2453 + $0x170] sm:$0xff] %vm2456, %v2371
        %2504 = vst.msk [vmem:[%s2453 + $0x178] sm:$0xff] %vm2456, %v2372
        %2505 = vst.msk [vmem:[%s2453 + $0x180] sm:$0xff] %vm2456, %v2373
        %2506 = vst.msk [vmem:[%s2453 + $0x188] sm:$0xff] %vm2456, %v2374
        %2507 = vst.msk [vmem:[%s2453 + $0x190] sm:$0xff] %vm2456, %v2375
        %2508 = vst.msk [vmem:[%s2453 + $0x198] sm:$0xff] %vm2456, %v2376
        %2509 = vst.msk [vmem:[%s2453 + $0x1a0] sm:$0xff] %vm2456, %v2377
        %2510 = vst.msk [vmem:[%s2453 + $0x1a8] sm:$0xff] %vm2456, %v2378
        %2511 = vst.msk [vmem:[%s2453 + $0x1b0] sm:$0xff] %vm2456, %v2379
        %2512 = vst.msk [vmem:[%s2453 + $0x1b8] sm:$0xff] %vm2456, %v2380
        %2513 = vst.msk [vmem:[%s2453 + $0x1c0] sm:$0xff] %vm2456, %v2381
        %2514 = vst.msk [vmem:[%s2453 + $0x1c8] sm:$0xff] %vm2456, %v2382
        %2515 = vst.msk [vmem:[%s2453 + $0x1d0] sm:$0xff] %vm2456, %v2383
        %2516 = vst.msk [vmem:[%s2453 + $0x1d8] sm:$0xff] %vm2456, %v2384
        %2517 = vst.msk [vmem:[%s2453 + $0x1e0] sm:$0xff] %vm2456, %v2385
        %2518 = vst.msk [vmem:[%s2453 + $0x1e8] sm:$0xff] %vm2456, %v2386
        %2519 = vst.msk [vmem:[%s2453 + $0x1f0] sm:$0xff] %vm2456, %v2387
        %2520 = vst.msk [vmem:[%s2453 + $0x1f8] sm:$0xff] %vm2456, %v2388
        %v2521 = vpack.c.bf16 %v1449, %v1448
        %v2522 = vpack.c.bf16 %v1451, %v1450
        %v2524 = vshrl.u32 %v2521, 16
        %v2526 = vrot.slane %v2524, 7
        %v2527 = vshll.u32 %v2521, 16
        %v2529 = vor.u32 %v2526, %v2527
        %v2531 = vshrl.u32 %v2522, 16
        %v2533 = vrot.slane %v2531, 7
        %v2534 = vshll.u32 %v2522, 16
        %v2536 = vor.u32 %v2533, %v2534
        %v2537 = vsel %vm1566, %v2526, %v2536
        %v2539 = vsel %vm1824, 0, %v2529
        %v2540 = vrot.slane %v2527, 1
        %v2541 = vor.u32 %v2524, %v2540
        %v2542 = vrot.slane %v2534, 1
        %v2543 = vsel %vm1841, %v2541, %v2542
        %v2544 = vor.u32 %v2531, %v2542
        %v2546 = vsel %vm1939, %v2544, 0
        %2549 = vrot.lane.b32.xlu0 %v2521, 64
        %v2550 = vpop.permute.xlu0 %2549
        %2551 = vrot.lane.b32.xlu0 %v2522, 64
        %v2552 = vpop.permute.xlu0 %2551
        %v2555 = vsel %vm2052, %v2539, %v2550
        %v2558 = vsel %vm2052, %v2537, %v2552
        %v2562 = vunpack.c.l.b16 %v2555
        %v2563 = vunpack.c.l.b16 %v2543
        %v2564 = vunpack.c.h.b16 %v2555
        %v2565 = vunpack.c.h.b16 %v2543
        %v2566 = vunpack.c.l.b16 %v2558
        %v2567 = vunpack.c.l.b16 %v2546
        %v2568 = vunpack.c.h.b16 %v2558
        %v2569 = vunpack.c.h.b16 %v2546
        %v2570 = vpack.c.b16 %v2563, %v2562
        %v2571 = vpack.c.b16 %v2565, %v2564
        %v2572 = vpack.c.b16 %v2567, %v2566
        %v2573 = vpack.c.b16 %v2569, %v2568
        %2578 = vst.msk [vmem:[#allocation2] sm:$0xff] %vm2456, %v2570
        %2579 = vst.msk [vmem:[#allocation2 + $0x8] sm:$0xff] %vm2456, %v2571
        %2580 = vst.msk [vmem:[#allocation2 + $0x10] sm:$0xff] %vm2456, %v2572
        %2581 = vst.msk [vmem:[#allocation2 + $0x18] sm:$0xff] %vm2456, %v2573
        %v2582 = vpack.c.bf16 %v1531, %v1530
        %v2583 = vpack.c.bf16 %v1533, %v1532
        %v2585 = vshrl.u32 %v2582, 16
        %v2587 = vrot.slane %v2585, 7
        %v2588 = vshll.u32 %v2582, 16
        %v2590 = vor.u32 %v2587, %v2588
        %v2592 = vshrl.u32 %v2583, 16
        %v2594 = vrot.slane %v2592, 7
        %v2595 = vshll.u32 %v2583, 16
        %v2597 = vor.u32 %v2594, %v2595
        %v2598 = vsel %vm1566, %v2587, %v2597
        %v2600 = vsel %vm1824, 0, %v2590
        %v2601 = vrot.slane %v2588, 1
        %v2602 = vor.u32 %v2585, %v2601
        %v2603 = vrot.slane %v2595, 1
        %v2604 = vsel %vm1841, %v2602, %v2603
        %v2605 = vor.u32 %v2592, %v2603
        %v2607 = vsel %vm1939, %v2605, 0
        %2610 = vrot.lane.b32.xlu0 %v2582, 64
        %v2611 = vpop.permute.xlu0 %2610
        %2612 = vrot.lane.b32.xlu0 %v2583, 64
        %v2613 = vpop.permute.xlu0 %2612
        %v2616 = vsel %vm2052, %v2600, %v2611
        %v2619 = vsel %vm2052, %v2598, %v2613
        %v2623 = vunpack.c.l.b16 %v2616
        %v2624 = vunpack.c.l.b16 %v2604
        %v2625 = vunpack.c.h.b16 %v2616
        %v2626 = vunpack.c.h.b16 %v2604
        %v2627 = vunpack.c.l.b16 %v2619
        %v2628 = vunpack.c.l.b16 %v2607
        %v2629 = vunpack.c.h.b16 %v2619
        %v2630 = vunpack.c.h.b16 %v2607
        %v2631 = vpack.c.b16 %v2624, %v2623
        %v2632 = vpack.c.b16 %v2626, %v2625
        %v2633 = vpack.c.b16 %v2628, %v2627
        %v2634 = vpack.c.b16 %v2630, %v2629
        %s2639 = scalar_lea.vmem [#allocation2], 544
        %2640 = vst.msk [vmem:[%s2639] sm:$0xff] %vm2456, %v2631
        %2641 = vst.msk [vmem:[%s2639 + $0x8] sm:$0xff] %vm2456, %v2632
        %2642 = vst.msk [vmem:[%s2639 + $0x10] sm:$0xff] %vm2456, %v2633
        %2643 = vst.msk [vmem:[%s2639 + $0x18] sm:$0xff] %vm2456, %v2634
        %v2644 = vld [vmem:[#allocation2] sm:$0xff]
        %v2645 = vld [vmem:[#allocation2 + $0x8] sm:$0xff]
        %v2646 = vld [vmem:[#allocation2 + $0x10] sm:$0xff]
        %v2647 = vld [vmem:[#allocation2 + $0x18] sm:$0xff]
        %v2648 = vld [vmem:[#allocation2 + $0x20] sm:$0xff]
        %v2649 = vld [vmem:[#allocation2 + $0x28] sm:$0xff]
        %v2650 = vld [vmem:[#allocation2 + $0x30] sm:$0xff]
        %v2651 = vld [vmem:[#allocation2 + $0x38] sm:$0xff]
        %v2652 = vld [vmem:[#allocation2 + $0x40] sm:$0xff]
        %v2653 = vld [vmem:[#allocation2 + $0x48] sm:$0xff]
        %v2654 = vld [vmem:[#allocation2 + $0x50] sm:$0xff]
        %v2655 = vld [vmem:[#allocation2 + $0x58] sm:$0xff]
        %v2656 = vld [vmem:[#allocation2 + $0x60] sm:$0xff]
        %v2657 = vld [vmem:[#allocation2 + $0x68] sm:$0xff]
        %v2658 = vld [vmem:[#allocation2 + $0x70] sm:$0xff]
        %v2659 = vld [vmem:[#allocation2 + $0x78] sm:$0xff]
        %v2660 = vld [vmem:[#allocation2 + $0x80] sm:$0xff]
        %v2661 = vld [vmem:[#allocation2 + $0x88] sm:$0xff]
        %v2662 = vld [vmem:[#allocation2 + $0x90] sm:$0xff]
        %v2663 = vld [vmem:[#allocation2 + $0x98] sm:$0xff]
        %v2664 = vld [vmem:[#allocation2 + $0xa0] sm:$0xff]
        %v2665 = vld [vmem:[#allocation2 + $0xa8] sm:$0xff]
        %v2666 = vld [vmem:[#allocation2 + $0xb0] sm:$0xff]
        %v2667 = vld [vmem:[#allocation2 + $0xb8] sm:$0xff]
        %v2668 = vld [vmem:[#allocation2 + $0xc0] sm:$0xff]
        %v2669 = vld [vmem:[#allocation2 + $0xc8] sm:$0xff]
        %v2670 = vld [vmem:[#allocation2 + $0xd0] sm:$0xff]
        %v2671 = vld [vmem:[#allocation2 + $0xd8] sm:$0xff]
        %v2672 = vld [vmem:[#allocation2 + $0xe0] sm:$0xff]
        %v2673 = vld [vmem:[#allocation2 + $0xe8] sm:$0xff]
        %v2674 = vld [vmem:[#allocation2 + $0xf0] sm:$0xff]
        %v2675 = vld [vmem:[#allocation2 + $0xf8] sm:$0xff]
        %v2676 = vld [vmem:[#allocation2 + $0x100] sm:$0xff]
        %v2677 = vld [vmem:[#allocation2 + $0x108] sm:$0xff]
        %v2678 = vld [vmem:[#allocation2 + $0x110] sm:$0xff]
        %v2679 = vld [vmem:[#allocation2 + $0x118] sm:$0xff]
        %v2680 = vld [vmem:[#allocation2 + $0x120] sm:$0xff]
        %v2681 = vld [vmem:[#allocation2 + $0x128] sm:$0xff]
        %v2682 = vld [vmem:[#allocation2 + $0x130] sm:$0xff]
        %v2683 = vld [vmem:[#allocation2 + $0x138] sm:$0xff]
        %v2684 = vld [vmem:[#allocation2 + $0x140] sm:$0xff]
        %v2685 = vld [vmem:[#allocation2 + $0x148] sm:$0xff]
        %v2686 = vld [vmem:[#allocation2 + $0x150] sm:$0xff]
        %v2687 = vld [vmem:[#allocation2 + $0x158] sm:$0xff]
        %v2688 = vld [vmem:[#allocation2 + $0x160] sm:$0xff]
        %v2689 = vld [vmem:[#allocation2 + $0x168] sm:$0xff]
        %v2690 = vld [vmem:[#allocation2 + $0x170] sm:$0xff]
        %v2691 = vld [vmem:[#allocation2 + $0x178] sm:$0xff]
        %v2692 = vld [vmem:[#allocation2 + $0x180] sm:$0xff]
        %v2693 = vld [vmem:[#allocation2 + $0x188] sm:$0xff]
        %v2694 = vld [vmem:[#allocation2 + $0x190] sm:$0xff]
        %v2695 = vld [vmem:[#allocation2 + $0x198] sm:$0xff]
        %v2696 = vld [vmem:[#allocation2 + $0x1a0] sm:$0xff]
        %v2697 = vld [vmem:[#allocation2 + $0x1a8] sm:$0xff]
        %v2698 = vld [vmem:[#allocation2 + $0x1b0] sm:$0xff]
        %v2699 = vld [vmem:[#allocation2 + $0x1b8] sm:$0xff]
        %v2700 = vld [vmem:[#allocation2 + $0x1c0] sm:$0xff]
        %v2701 = vld [vmem:[#allocation2 + $0x1c8] sm:$0xff]
        %v2702 = vld [vmem:[#allocation2 + $0x1d0] sm:$0xff]
        %v2703 = vld [vmem:[#allocation2 + $0x1d8] sm:$0xff]
        %v2704 = vld [vmem:[#allocation2 + $0x1e0] sm:$0xff]
        %v2705 = vld [vmem:[#allocation2 + $0x1e8] sm:$0xff]
        %v2706 = vld [vmem:[#allocation2 + $0x1f0] sm:$0xff]
        %v2707 = vld [vmem:[#allocation2 + $0x1f8] sm:$0xff]
        %v2708 = vld [vmem:[%s4] sm:$0xf]
        %v2709 = vld [vmem:[%s4 + $0x4] sm:$0xf]
        %v2710 = vld [vmem:[%s4 + $0x8] sm:$0xf]
        %v2711 = vld [vmem:[%s4 + $0xc] sm:$0xf]
        %v2712 = vld [vmem:[%s4 + $0x10] sm:$0xf]
        %v2713 = vld [vmem:[%s4 + $0x14] sm:$0xf]
        %v2714 = vld [vmem:[%s4 + $0x18] sm:$0xf]
        %v2715 = vld [vmem:[%s4 + $0x1c] sm:$0xf]
        %v2716 = vld [vmem:[%s4 + $0x20] sm:$0xf]
        %v2717 = vld [vmem:[%s4 + $0x24] sm:$0xf]
        %v2718 = vld [vmem:[%s4 + $0x28] sm:$0xf]
        %v2719 = vld [vmem:[%s4 + $0x2c] sm:$0xf]
        %v2720 = vld [vmem:[%s4 + $0x30] sm:$0xf]
        %v2721 = vld [vmem:[%s4 + $0x34] sm:$0xf]
        %v2722 = vld [vmem:[%s4 + $0x38] sm:$0xf]
        %v2723 = vld [vmem:[%s4 + $0x3c] sm:$0xf]
        %v2724 = vld [vmem:[%s4 + $0x40] sm:$0xf]
        %v2725 = vld [vmem:[%s4 + $0x44] sm:$0xf]
        %v2726 = vld [vmem:[%s4 + $0x48] sm:$0xf]
        %v2727 = vld [vmem:[%s4 + $0x4c] sm:$0xf]
        %v2728 = vld [vmem:[%s4 + $0x50] sm:$0xf]
        %v2729 = vld [vmem:[%s4 + $0x54] sm:$0xf]
        %v2730 = vld [vmem:[%s4 + $0x58] sm:$0xf]
        %v2731 = vld [vmem:[%s4 + $0x5c] sm:$0xf]
        %v2732 = vld [vmem:[%s2453] sm:$0xff]
        %v2733 = vld [vmem:[%s2453 + $0x8] sm:$0xff]
        %v2734 = vld [vmem:[%s2453 + $0x10] sm:$0xff]
        %v2735 = vld [vmem:[%s2453 + $0x18] sm:$0xff]
        %v2736 = vld [vmem:[%s2453 + $0x20] sm:$0xff]
        %v2737 = vld [vmem:[%s2453 + $0x28] sm:$0xff]
        %v2738 = vld [vmem:[%s2453 + $0x30] sm:$0xff]
        %v2739 = vld [vmem:[%s2453 + $0x38] sm:$0xff]
        %v2740 = vld [vmem:[%s2453 + $0x40] sm:$0xff]
        %v2741 = vld [vmem:[%s2453 + $0x48] sm:$0xff]
        %v2742 = vld [vmem:[%s2453 + $0x50] sm:$0xff]
        %v2743 = vld [vmem:[%s2453 + $0x58] sm:$0xff]
        %v2744 = vld [vmem:[%s2453 + $0x60] sm:$0xff]
        %v2745 = vld [vmem:[%s2453 + $0x68] sm:$0xff]
        %v2746 = vld [vmem:[%s2453 + $0x70] sm:$0xff]
        %v2747 = vld [vmem:[%s2453 + $0x78] sm:$0xff]
        %v2748 = vld [vmem:[%s2453 + $0x80] sm:$0xff]
        %v2749 = vld [vmem:[%s2453 + $0x88] sm:$0xff]
        %v2750 = vld [vmem:[%s2453 + $0x90] sm:$0xff]
        %v2751 = vld [vmem:[%s2453 + $0x98] sm:$0xff]
        %v2752 = vld [vmem:[%s2453 + $0xa0] sm:$0xff]
        %v2753 = vld [vmem:[%s2453 + $0xa8] sm:$0xff]
        %v2754 = vld [vmem:[%s2453 + $0xb0] sm:$0xff]
        %v2755 = vld [vmem:[%s2453 + $0xb8] sm:$0xff]
        %v2756 = vld [vmem:[%s2453 + $0xc0] sm:$0xff]
        %v2757 = vld [vmem:[%s2453 + $0xc8] sm:$0xff]
        %v2758 = vld [vmem:[%s2453 + $0xd0] sm:$0xff]
        %v2759 = vld [vmem:[%s2453 + $0xd8] sm:$0xff]
        %v2760 = vld [vmem:[%s2453 + $0xe0] sm:$0xff]
        %v2761 = vld [vmem:[%s2453 + $0xe8] sm:$0xff]
        %v2762 = vld [vmem:[%s2453 + $0xf0] sm:$0xff]
        %v2763 = vld [vmem:[%s2453 + $0xf8] sm:$0xff]
        %v2764 = vld [vmem:[%s2453 + $0x100] sm:$0xff]
        %v2765 = vld [vmem:[%s2453 + $0x108] sm:$0xff]
        %v2766 = vld [vmem:[%s2453 + $0x110] sm:$0xff]
        %v2767 = vld [vmem:[%s2453 + $0x118] sm:$0xff]
        %v2768 = vld [vmem:[%s2453 + $0x120] sm:$0xff]
        %v2769 = vld [vmem:[%s2453 + $0x128] sm:$0xff]
        %v2770 = vld [vmem:[%s2453 + $0x130] sm:$0xff]
        %v2771 = vld [vmem:[%s2453 + $0x138] sm:$0xff]
        %v2772 = vld [vmem:[%s2453 + $0x140] sm:$0xff]
        %v2773 = vld [vmem:[%s2453 + $0x148] sm:$0xff]
        %v2774 = vld [vmem:[%s2453 + $0x150] sm:$0xff]
        %v2775 = vld [vmem:[%s2453 + $0x158] sm:$0xff]
        %v2776 = vld [vmem:[%s2453 + $0x160] sm:$0xff]
        %v2777 = vld [vmem:[%s2453 + $0x168] sm:$0xff]
        %v2778 = vld [vmem:[%s2453 + $0x170] sm:$0xff]
        %v2779 = vld [vmem:[%s2453 + $0x178] sm:$0xff]
        %v2780 = vld [vmem:[%s2453 + $0x180] sm:$0xff]
        %v2781 = vld [vmem:[%s2453 + $0x188] sm:$0xff]
        %v2782 = vld [vmem:[%s2453 + $0x190] sm:$0xff]
        %v2783 = vld [vmem:[%s2453 + $0x198] sm:$0xff]
        %v2784 = vld [vmem:[%s2453 + $0x1a0] sm:$0xff]
        %v2785 = vld [vmem:[%s2453 + $0x1a8] sm:$0xff]
        %v2786 = vld [vmem:[%s2453 + $0x1b0] sm:$0xff]
        %v2787 = vld [vmem:[%s2453 + $0x1b8] sm:$0xff]
        %v2788 = vld [vmem:[%s2453 + $0x1c0] sm:$0xff]
        %v2789 = vld [vmem:[%s2453 + $0x1c8] sm:$0xff]
        %v2790 = vld [vmem:[%s2453 + $0x1d0] sm:$0xff]
        %v2791 = vld [vmem:[%s2453 + $0x1d8] sm:$0xff]
        %v2792 = vld [vmem:[%s2453 + $0x1e0] sm:$0xff]
        %v2793 = vld [vmem:[%s2453 + $0x1e8] sm:$0xff]
        %v2794 = vld [vmem:[%s2453 + $0x1f0] sm:$0xff]
        %v2795 = vld [vmem:[%s2453 + $0x1f8] sm:$0xff]
        %s2796 = scalar_lea.vmem %s4, 96
        %v2797 = vld [vmem:[%s2796] sm:$0xf]
        %v2798 = vld [vmem:[%s2796 + $0x4] sm:$0xf]
        %v2799 = vld [vmem:[%s2796 + $0x8] sm:$0xf]
        %v2800 = vld [vmem:[%s2796 + $0xc] sm:$0xf]
        %v2801 = vld [vmem:[%s2796 + $0x10] sm:$0xf]
        %v2802 = vld [vmem:[%s2796 + $0x14] sm:$0xf]
        %v2803 = vld [vmem:[%s2796 + $0x18] sm:$0xf]
        %v2804 = vld [vmem:[%s2796 + $0x1c] sm:$0xf]
        %v2805 = vld [vmem:[%s2796 + $0x20] sm:$0xf]
        %v2806 = vld [vmem:[%s2796 + $0x24] sm:$0xf]
        %v2807 = vld [vmem:[%s2796 + $0x28] sm:$0xf]
        %v2808 = vld [vmem:[%s2796 + $0x2c] sm:$0xf]
        %v2809 = vld [vmem:[%s2796 + $0x30] sm:$0xf]
        %v2810 = vld [vmem:[%s2796 + $0x34] sm:$0xf]
        %v2811 = vld [vmem:[%s2796 + $0x38] sm:$0xf]
        %v2812 = vld [vmem:[%s2796 + $0x3c] sm:$0xf]
        %v2813 = vld [vmem:[%s2796 + $0x40] sm:$0xf]
        %v2814 = vld [vmem:[%s2796 + $0x44] sm:$0xf]
        %v2815 = vld [vmem:[%s2796 + $0x48] sm:$0xf]
        %v2816 = vld [vmem:[%s2796 + $0x4c] sm:$0xf]
        %v2817 = vld [vmem:[%s2796 + $0x50] sm:$0xf]
        %v2818 = vld [vmem:[%s2796 + $0x54] sm:$0xf]
        %v2819 = vld [vmem:[%s2796 + $0x58] sm:$0xf]
        %v2820 = vld [vmem:[%s2796 + $0x5c] sm:$0xf]
        %v2885 = vunpack.c.l.b16 %v2732
        %v2886 = vunpack.c.h.b16 %v2732
        %v2887 = vunpack.c.l.b16 %v2733
        %v2888 = vunpack.c.h.b16 %v2733
        %v2889 = vunpack.c.l.b16 %v2734
        %v2890 = vunpack.c.h.b16 %v2734
        %v2891 = vunpack.c.l.b16 %v2735
        %v2892 = vunpack.c.h.b16 %v2735
        %v2893 = vunpack.c.l.b16 %v2736
        %v2894 = vunpack.c.h.b16 %v2736
        %v2895 = vunpack.c.l.b16 %v2737
        %v2896 = vunpack.c.h.b16 %v2737
        %v2897 = vunpack.c.l.b16 %v2738
        %v2898 = vunpack.c.h.b16 %v2738
        %v2899 = vunpack.c.l.b16 %v2739
        %v2900 = vunpack.c.h.b16 %v2739
        %v2901 = vunpack.c.l.b16 %v2740
        %v2902 = vunpack.c.h.b16 %v2740
        %v2903 = vunpack.c.l.b16 %v2741
        %v2904 = vunpack.c.h.b16 %v2741
        %v2905 = vunpack.c.l.b16 %v2742
        %v2906 = vunpack.c.h.b16 %v2742
        %v2907 = vunpack.c.l.b16 %v2743
        %v2908 = vunpack.c.h.b16 %v2743
        %v2909 = vunpack.c.l.b16 %v2744
        %v2910 = vunpack.c.h.b16 %v2744
        %v2911 = vunpack.c.l.b16 %v2745
        %v2912 = vunpack.c.h.b16 %v2745
        %v2913 = vunpack.c.l.b16 %v2746
        %v2914 = vunpack.c.h.b16 %v2746
        %v2915 = vunpack.c.l.b16 %v2747
        %v2916 = vunpack.c.h.b16 %v2747
        %v2917 = vunpack.c.l.b16 %v2748
        %v2918 = vunpack.c.h.b16 %v2748
        %v2919 = vunpack.c.l.b16 %v2749
        %v2920 = vunpack.c.h.b16 %v2749
        %v2921 = vunpack.c.l.b16 %v2750
        %v2922 = vunpack.c.h.b16 %v2750
        %v2923 = vunpack.c.l.b16 %v2751
        %v2924 = vunpack.c.h.b16 %v2751
        %v2925 = vunpack.c.l.b16 %v2752
        %v2926 = vunpack.c.h.b16 %v2752
        %v2927 = vunpack.c.l.b16 %v2753
        %v2928 = vunpack.c.h.b16 %v2753
        %v2929 = vunpack.c.l.b16 %v2754
        %v2930 = vunpack.c.h.b16 %v2754
        %v2931 = vunpack.c.l.b16 %v2755
        %v2932 = vunpack.c.h.b16 %v2755
        %v2933 = vunpack.c.l.b16 %v2756
        %v2934 = vunpack.c.h.b16 %v2756
        %v2935 = vunpack.c.l.b16 %v2757
        %v2936 = vunpack.c.h.b16 %v2757
        %v2937 = vunpack.c.l.b16 %v2758
        %v2938 = vunpack.c.h.b16 %v2758
        %v2939 = vunpack.c.l.b16 %v2759
        %v2940 = vunpack.c.h.b16 %v2759
        %v2941 = vunpack.c.l.b16 %v2760
        %v2942 = vunpack.c.h.b16 %v2760
        %v2943 = vunpack.c.l.b16 %v2761
        %v2944 = vunpack.c.h.b16 %v2761
        %v2945 = vunpack.c.l.b16 %v2762
        %v2946 = vunpack.c.h.b16 %v2762
        %v2947 = vunpack.c.l.b16 %v2763
        %v2948 = vunpack.c.h.b16 %v2763
        %v2949 = vunpack.c.l.b16 %v2764
        %v2950 = vunpack.c.h.b16 %v2764
        %v2951 = vunpack.c.l.b16 %v2765
        %v2952 = vunpack.c.h.b16 %v2765
        %v2953 = vunpack.c.l.b16 %v2766
        %v2954 = vunpack.c.h.b16 %v2766
        %v2955 = vunpack.c.l.b16 %v2767
        %v2956 = vunpack.c.h.b16 %v2767
        %v2957 = vunpack.c.l.b16 %v2768
        %v2958 = vunpack.c.h.b16 %v2768
        %v2959 = vunpack.c.l.b16 %v2769
        %v2960 = vunpack.c.h.b16 %v2769
        %v2961 = vunpack.c.l.b16 %v2770
        %v2962 = vunpack.c.h.b16 %v2770
        %v2963 = vunpack.c.l.b16 %v2771
        %v2964 = vunpack.c.h.b16 %v2771
        %v2965 = vunpack.c.l.b16 %v2772
        %v2966 = vunpack.c.h.b16 %v2772
        %v2967 = vunpack.c.l.b16 %v2773
        %v2968 = vunpack.c.h.b16 %v2773
        %v2969 = vunpack.c.l.b16 %v2774
        %v2970 = vunpack.c.h.b16 %v2774
        %v2971 = vunpack.c.l.b16 %v2775
        %v2972 = vunpack.c.h.b16 %v2775
        %v2973 = vunpack.c.l.b16 %v2776
        %v2974 = vunpack.c.h.b16 %v2776
        %v2975 = vunpack.c.l.b16 %v2777
        %v2976 = vunpack.c.h.b16 %v2777
        %v2977 = vunpack.c.l.b16 %v2778
        %v2978 = vunpack.c.h.b16 %v2778
        %v2979 = vunpack.c.l.b16 %v2779
        %v2980 = vunpack.c.h.b16 %v2779
        %v2981 = vunpack.c.l.b16 %v2780
        %v2982 = vunpack.c.h.b16 %v2780
        %v2983 = vunpack.c.l.b16 %v2781
        %v2984 = vunpack.c.h.b16 %v2781
        %v2985 = vunpack.c.l.b16 %v2782
        %v2986 = vunpack.c.h.b16 %v2782
        %v2987 = vunpack.c.l.b16 %v2783
        %v2988 = vunpack.c.h.b16 %v2783
        %v2989 = vunpack.c.l.b16 %v2784
        %v2990 = vunpack.c.h.b16 %v2784
        %v2991 = vunpack.c.l.b16 %v2785
        %v2992 = vunpack.c.h.b16 %v2785
        %v2993 = vunpack.c.l.b16 %v2786
        %v2994 = vunpack.c.h.b16 %v2786
        %v2995 = vunpack.c.l.b16 %v2787
        %v2996 = vunpack.c.h.b16 %v2787
        %v2997 = vunpack.c.l.b16 %v2788
        %v2998 = vunpack.c.h.b16 %v2788
        %v2999 = vunpack.c.l.b16 %v2789
        %v3000 = vunpack.c.h.b16 %v2789
        %v3001 = vunpack.c.l.b16 %v2790
        %v3002 = vunpack.c.h.b16 %v2790
        %v3003 = vunpack.c.l.b16 %v2791
        %v3004 = vunpack.c.h.b16 %v2791
        %v3005 = vunpack.c.l.b16 %v2792
        %v3006 = vunpack.c.h.b16 %v2792
        %v3007 = vunpack.c.l.b16 %v2793
        %v3008 = vunpack.c.h.b16 %v2793
        %v3009 = vunpack.c.l.b16 %v2794
        %v3010 = vunpack.c.h.b16 %v2794
        %v3011 = vunpack.c.l.b16 %v2795
        %v3012 = vunpack.c.h.b16 %v2795
        %v3013 = vpack.c.b16 %v2887, %v2885
        %v3014 = vpack.c.b16 %v2888, %v2886
        %v3015 = vpack.c.b16 %v2891, %v2889
        %v3016 = vpack.c.b16 %v2892, %v2890
        %v3017 = vpack.c.b16 %v2895, %v2893
        %v3018 = vpack.c.b16 %v2896, %v2894
        %v3019 = vpack.c.b16 %v2899, %v2897
        %v3020 = vpack.c.b16 %v2900, %v2898
        %v3021 = vpack.c.b16 %v2903, %v2901
        %v3022 = vpack.c.b16 %v2904, %v2902
        %v3023 = vpack.c.b16 %v2907, %v2905
        %v3024 = vpack.c.b16 %v2908, %v2906
        %v3025 = vpack.c.b16 %v2911, %v2909
        %v3026 = vpack.c.b16 %v2912, %v2910
        %v3027 = vpack.c.b16 %v2915, %v2913
        %v3028 = vpack.c.b16 %v2916, %v2914
        %v3029 = vpack.c.b16 %v2919, %v2917
        %v3030 = vpack.c.b16 %v2920, %v2918
        %v3031 = vpack.c.b16 %v2923, %v2921
        %v3032 = vpack.c.b16 %v2924, %v2922
        %v3033 = vpack.c.b16 %v2927, %v2925
        %v3034 = vpack.c.b16 %v2928, %v2926
        %v3035 = vpack.c.b16 %v2931, %v2929
        %v3036 = vpack.c.b16 %v2932, %v2930
        %v3037 = vpack.c.b16 %v2935, %v2933
        %v3038 = vpack.c.b16 %v2936, %v2934
        %v3039 = vpack.c.b16 %v2939, %v2937
        %v3040 = vpack.c.b16 %v2940, %v2938
        %v3041 = vpack.c.b16 %v2943, %v2941
        %v3042 = vpack.c.b16 %v2944, %v2942
        %v3043 = vpack.c.b16 %v2947, %v2945
        %v3044 = vpack.c.b16 %v2948, %v2946
        %v3045 = vpack.c.b16 %v2951, %v2949
        %v3046 = vpack.c.b16 %v2952, %v2950
        %v3047 = vpack.c.b16 %v2955, %v2953
        %v3048 = vpack.c.b16 %v2956, %v2954
        %v3049 = vpack.c.b16 %v2959, %v2957
        %v3050 = vpack.c.b16 %v2960, %v2958
        %v3051 = vpack.c.b16 %v2963, %v2961
        %v3052 = vpack.c.b16 %v2964, %v2962
        %v3053 = vpack.c.b16 %v2967, %v2965
        %v3054 = vpack.c.b16 %v2968, %v2966
        %v3055 = vpack.c.b16 %v2971, %v2969
        %v3056 = vpack.c.b16 %v2972, %v2970
        %v3057 = vpack.c.b16 %v2975, %v2973
        %v3058 = vpack.c.b16 %v2976, %v2974
        %v3059 = vpack.c.b16 %v2979, %v2977
        %v3060 = vpack.c.b16 %v2980, %v2978
        %v3061 = vpack.c.b16 %v2983, %v2981
        %v3062 = vpack.c.b16 %v2984, %v2982
        %v3063 = vpack.c.b16 %v2987, %v2985
        %v3064 = vpack.c.b16 %v2988, %v2986
        %v3065 = vpack.c.b16 %v2991, %v2989
        %v3066 = vpack.c.b16 %v2992, %v2990
        %v3067 = vpack.c.b16 %v2995, %v2993
        %v3068 = vpack.c.b16 %v2996, %v2994
        %v3069 = vpack.c.b16 %v2999, %v2997
        %v3070 = vpack.c.b16 %v3000, %v2998
        %v3071 = vpack.c.b16 %v3003, %v3001
        %v3072 = vpack.c.b16 %v3004, %v3002
        %v3073 = vpack.c.b16 %v3007, %v3005
        %v3074 = vpack.c.b16 %v3008, %v3006
        %v3075 = vpack.c.b16 %v3011, %v3009
        %v3076 = vpack.c.b16 %v3012, %v3010
        %v3133 = vunpack.c.l.b16 %v2797
        %v3134 = vunpack.c.l.b16 %v2798
        %v3135 = vunpack.c.l.b16 %v2799
        %v3136 = vunpack.c.l.b16 %v2800
        %v3137 = vunpack.c.l.b16 %v2801
        %v3138 = vunpack.c.l.b16 %v2802
        %v3139 = vunpack.c.l.b16 %v2803
        %v3140 = vunpack.c.l.b16 %v2804
        %v3141 = vunpack.c.l.b16 %v2805
        %v3142 = vunpack.c.l.b16 %v2806
        %v3143 = vunpack.c.l.b16 %v2807
        %v3144 = vunpack.c.l.b16 %v2808
        %v3145 = vunpack.c.l.b16 %v2809
        %v3146 = vunpack.c.l.b16 %v2810
        %v3147 = vunpack.c.l.b16 %v2811
        %v3148 = vunpack.c.l.b16 %v2812
        %v3149 = vunpack.c.l.b16 %v2813
        %v3150 = vunpack.c.l.b16 %v2814
        %v3151 = vunpack.c.l.b16 %v2815
        %v3152 = vunpack.c.l.b16 %v2816
        %v3153 = vunpack.c.l.b16 %v2817
        %v3154 = vunpack.c.l.b16 %v2818
        %v3155 = vunpack.c.l.b16 %v2819
        %v3156 = vunpack.c.l.b16 %v2820
        %v3157 = vpack.c.b16 %v3134, %v3133
        %v3158 = vpack.c.b16 %v3136, %v3135
        %v3159 = vpack.c.b16 %v3138, %v3137
        %v3160 = vpack.c.b16 %v3140, %v3139
        %v3161 = vpack.c.b16 %v3142, %v3141
        %v3162 = vpack.c.b16 %v3144, %v3143
        %v3163 = vpack.c.b16 %v3146, %v3145
        %v3164 = vpack.c.b16 %v3148, %v3147
        %v3165 = vpack.c.b16 %v3150, %v3149
        %v3166 = vpack.c.b16 %v3152, %v3151
        %v3167 = vpack.c.b16 %v3154, %v3153
        %v3168 = vpack.c.b16 %v3156, %v3155
        %v3182 = vsel %vm2052, %v3014, 0
        %v3185 = vsel %vm2052, %v3016, 0
        %v3188 = vsel %vm2052, %v3018, 0
        %v3191 = vsel %vm2052, %v3020, 0
        %v3194 = vsel %vm2052, %v3022, 0
        %v3197 = vsel %vm2052, %v3024, 0
        %v3200 = vsel %vm2052, %v3026, 0
        %v3203 = vsel %vm2052, %v3028, 0
        %v3206 = vsel %vm2052, %v3030, 0
        %v3209 = vsel %vm2052, %v3032, 0
        %v3212 = vsel %vm2052, %v3034, 0
        %v3215 = vsel %vm2052, %v3036, 0
        %v3218 = vsel %vm2052, %v3038, 0
        %v3221 = vsel %vm2052, %v3040, 0
        %v3224 = vsel %vm2052, %v3042, 0
        %v3227 = vsel %vm2052, %v3044, 0
        %v3230 = vsel %vm2052, %v3046, 0
        %v3233 = vsel %vm2052, %v3048, 0
        %v3236 = vsel %vm2052, %v3050, 0
        %v3239 = vsel %vm2052, %v3052, 0
        %v3242 = vsel %vm2052, %v3054, 0
        %v3245 = vsel %vm2052, %v3056, 0
        %v3248 = vsel %vm2052, %v3058, 0
        %v3251 = vsel %vm2052, %v3060, 0
        %v3254 = vsel %vm2052, %v3062, 0
        %v3257 = vsel %vm2052, %v3064, 0
        %v3260 = vsel %vm2052, %v3066, 0
        %v3263 = vsel %vm2052, %v3068, 0
        %v3266 = vsel %vm2052, %v3070, 0
        %v3269 = vsel %vm2052, %v3072, 0
        %v3272 = vsel %vm2052, %v3074, 0
        %v3275 = vsel %vm2052, %v3076, 0
        %3277 = vmatprep.subr.bf16.mxu0 0
        %3278 = vmatpush1.bf16.msra.mxu0 %v3164
        %3279 = vmatprep.subr.bf16.mxu0 0
        %3280 = vmatpush1.bf16.msra.mxu0 %v3163
        %3281 = vmatprep.subr.bf16.mxu0 0
        %3282 = vmatpush1.bf16.msra.mxu0 %v3162
        %3283 = vmatprep.subr.bf16.mxu0 0
        %3284 = vmatpush1.bf16.msra.mxu0 %v3161
        %3285 = vmatprep.subr.bf16.mxu0 0
        %3286 = vmatpush1.bf16.msra.mxu0 %v3160
        %3287 = vmatprep.subr.bf16.mxu0 0
        %3288 = vmatpush1.bf16.msra.mxu0 %v3159
        %3289 = vmatprep.subr.bf16.mxu0 0
        %3290 = vmatpush1.bf16.msra.mxu0 %v3158
        %3291 = vmatprep.subr.bf16.mxu0 0
        %3292 = vmatpush1.bf16.msra.mxu0 %v3157
        %3293 = vmatprep.subr.bf16.mxu0 0
        %3294 = vmatpush2.bf16.msra.mxu0 0
        %3295 = vmatprep.subr.bf16.mxu0 0
        %3296 = vmatpush2.bf16.msra.mxu0 0
        %3297 = vmatprep.subr.bf16.mxu0 0
        %3298 = vmatpush2.bf16.msra.mxu0 0
        %3299 = vmatprep.subr.bf16.mxu0 0
        %3300 = vmatpush2.bf16.msra.mxu0 0
        %3301 = vmatprep.subr.bf16.mxu0 0
        %3302 = vmatpush2.bf16.msra.mxu0 %v3168
        %3303 = vmatprep.subr.bf16.mxu0 0
        %3304 = vmatpush2.bf16.msra.mxu0 %v3167
        %3305 = vmatprep.subr.bf16.mxu0 0
        %3306 = vmatpush2.bf16.msra.mxu0 %v3166
        %3307 = vmatprep.subr.bf16.mxu0 0
        %3308 = vmatpush2.bf16.msra.mxu0 %v3165
        %3309 = vmatprep.mubr.bf16.mxu0 %v3182
        %3310 = vmatmul.mubr.bf16.gmra.mxu0 %v3013
        %v3311 = vpop.f32.mrf.mxu0
        %v3312 = vadd.f32 0.0, %v3311
        %v3313 = vpop.f32.mrf.mxu0
        %v3314 = vpop.f32.mrf.mxu0
        %v3315 = vadd.f32 0.0, %v3314
        %v3316 = vpop.f32.mrf.mxu0
        %3317 = vmatprep.mubr.bf16.mxu0 %v3185
        %3318 = vmatmul.mubr.bf16.gmra.mxu0 %v3015
        %v3319 = vpop.f32.mrf.mxu0
        %v3320 = vadd.f32 0.0, %v3319
        %v3321 = vpop.f32.mrf.mxu0
        %v3322 = vpop.f32.mrf.mxu0
        %v3323 = vadd.f32 0.0, %v3322
        %v3324 = vpop.f32.mrf.mxu0
        %3325 = vmatprep.mubr.bf16.mxu0 %v3188
        %3326 = vmatmul.mubr.bf16.gmra.mxu0 %v3017
        %v3327 = vpop.f32.mrf.mxu0
        %v3328 = vadd.f32 0.0, %v3327
        %v3329 = vpop.f32.mrf.mxu0
        %v3330 = vpop.f32.mrf.mxu0
        %v3331 = vadd.f32 0.0, %v3330
        %v3332 = vpop.f32.mrf.mxu0
        %3333 = vmatprep.mubr.bf16.mxu0 %v3191
        %3334 = vmatmul.mubr.bf16.gmra.mxu0 %v3019
        %v3335 = vpop.f32.mrf.mxu0
        %v3336 = vadd.f32 0.0, %v3335
        %v3337 = vpop.f32.mrf.mxu0
        %v3338 = vpop.f32.mrf.mxu0
        %v3339 = vadd.f32 0.0, %v3338
        %v3340 = vpop.f32.mrf.mxu0
        %3341 = vmatprep.mubr.bf16.mxu0 %v3194
        %3342 = vmatmul.mubr.bf16.gmra.mxu0 %v3021
        %v3343 = vpop.f32.mrf.mxu0
        %v3344 = vadd.f32 0.0, %v3343
        %v3345 = vpop.f32.mrf.mxu0
        %v3346 = vpop.f32.mrf.mxu0
        %v3347 = vadd.f32 0.0, %v3346
        %v3348 = vpop.f32.mrf.mxu0
        %3349 = vmatprep.mubr.bf16.mxu0 %v3197
        %3350 = vmatmul.mubr.bf16.gmra.mxu0 %v3023
        %v3351 = vpop.f32.mrf.mxu0
        %v3352 = vadd.f32 0.0, %v3351
        %v3353 = vpop.f32.mrf.mxu0
        %v3354 = vpop.f32.mrf.mxu0
        %v3355 = vadd.f32 0.0, %v3354
        %v3356 = vpop.f32.mrf.mxu0
        %3357 = vmatprep.mubr.bf16.mxu0 %v3200
        %3358 = vmatmul.mubr.bf16.gmra.mxu0 %v3025
        %v3359 = vpop.f32.mrf.mxu0
        %v3360 = vadd.f32 0.0, %v3359
        %v3361 = vpop.f32.mrf.mxu0
        %v3362 = vpop.f32.mrf.mxu0
        %v3363 = vadd.f32 0.0, %v3362
        %v3364 = vpop.f32.mrf.mxu0
        %3365 = vmatprep.mubr.bf16.mxu0 %v3203
        %3366 = vmatmul.mubr.bf16.gmra.mxu0 %v3027
        %v3367 = vpop.f32.mrf.mxu0
        %v3368 = vadd.f32 0.0, %v3367
        %v3369 = vpop.f32.mrf.mxu0
        %v3370 = vpop.f32.mrf.mxu0
        %v3371 = vadd.f32 0.0, %v3370
        %v3372 = vpop.f32.mrf.mxu0
        %3373 = vmatprep.mubr.bf16.mxu0 %v3206
        %3374 = vmatmul.mubr.bf16.gmra.mxu0 %v3029
        %v3375 = vpop.f32.mrf.mxu0
        %v3376 = vadd.f32 0.0, %v3375
        %v3377 = vpop.f32.mrf.mxu0
        %v3378 = vpop.f32.mrf.mxu0
        %v3379 = vadd.f32 0.0, %v3378
        %v3380 = vpop.f32.mrf.mxu0
        %3381 = vmatprep.mubr.bf16.mxu0 %v3209
        %3382 = vmatmul.mubr.bf16.gmra.mxu0 %v3031
        %v3383 = vpop.f32.mrf.mxu0
        %v3384 = vadd.f32 0.0, %v3383
        %v3385 = vpop.f32.mrf.mxu0
        %v3386 = vpop.f32.mrf.mxu0
        %v3387 = vadd.f32 0.0, %v3386
        %v3388 = vpop.f32.mrf.mxu0
        %3389 = vmatprep.mubr.bf16.mxu0 %v3212
        %3390 = vmatmul.mubr.bf16.gmra.mxu0 %v3033
        %v3391 = vpop.f32.mrf.mxu0
        %v3392 = vadd.f32 0.0, %v3391
        %v3393 = vpop.f32.mrf.mxu0
        %v3394 = vpop.f32.mrf.mxu0
        %v3395 = vadd.f32 0.0, %v3394
        %v3396 = vpop.f32.mrf.mxu0
        %3397 = vmatprep.mubr.bf16.mxu0 %v3215
        %3398 = vmatmul.mubr.bf16.gmra.mxu0 %v3035
        %v3399 = vpop.f32.mrf.mxu0
        %v3400 = vadd.f32 0.0, %v3399
        %v3401 = vpop.f32.mrf.mxu0
        %v3402 = vpop.f32.mrf.mxu0
        %v3403 = vadd.f32 0.0, %v3402
        %v3404 = vpop.f32.mrf.mxu0
        %3405 = vmatprep.mubr.bf16.mxu0 %v3218
        %3406 = vmatmul.mubr.bf16.gmra.mxu0 %v3037
        %v3407 = vpop.f32.mrf.mxu0
        %v3408 = vadd.f32 0.0, %v3407
        %v3409 = vpop.f32.mrf.mxu0
        %v3410 = vpop.f32.mrf.mxu0
        %v3411 = vadd.f32 0.0, %v3410
        %v3412 = vpop.f32.mrf.mxu0
        %3413 = vmatprep.mubr.bf16.mxu0 %v3221
        %3414 = vmatmul.mubr.bf16.gmra.mxu0 %v3039
        %v3415 = vpop.f32.mrf.mxu0
        %v3416 = vadd.f32 0.0, %v3415
        %v3417 = vpop.f32.mrf.mxu0
        %v3418 = vpop.f32.mrf.mxu0
        %v3419 = vadd.f32 0.0, %v3418
        %v3420 = vpop.f32.mrf.mxu0
        %3421 = vmatprep.mubr.bf16.mxu0 %v3224
        %3422 = vmatmul.mubr.bf16.gmra.mxu0 %v3041
        %v3423 = vpop.f32.mrf.mxu0
        %v3424 = vadd.f32 0.0, %v3423
        %v3425 = vpop.f32.mrf.mxu0
        %v3426 = vpop.f32.mrf.mxu0
        %v3427 = vadd.f32 0.0, %v3426
        %v3428 = vpop.f32.mrf.mxu0
        %3429 = vmatprep.mubr.bf16.mxu0 %v3227
        %3430 = vmatmul.mubr.bf16.gmra.mxu0 %v3043
        %v3431 = vpop.f32.mrf.mxu0
        %v3432 = vadd.f32 0.0, %v3431
        %v3433 = vpop.f32.mrf.mxu0
        %v3434 = vpop.f32.mrf.mxu0
        %v3435 = vadd.f32 0.0, %v3434
        %v3436 = vpop.f32.mrf.mxu0
        %3437 = vmatprep.mubr.bf16.mxu0 %v3230
        %3438 = vmatmul.mubr.bf16.gmra.mxu0 %v3045
        %v3439 = vpop.f32.mrf.mxu0
        %v3440 = vadd.f32 0.0, %v3439
        %v3441 = vpop.f32.mrf.mxu0
        %v3442 = vpop.f32.mrf.mxu0
        %v3443 = vadd.f32 0.0, %v3442
        %v3444 = vpop.f32.mrf.mxu0
        %3445 = vmatprep.mubr.bf16.mxu0 %v3233
        %3446 = vmatmul.mubr.bf16.gmra.mxu0 %v3047
        %v3447 = vpop.f32.mrf.mxu0
        %v3448 = vadd.f32 0.0, %v3447
        %v3449 = vpop.f32.mrf.mxu0
        %v3450 = vpop.f32.mrf.mxu0
        %v3451 = vadd.f32 0.0, %v3450
        %v3452 = vpop.f32.mrf.mxu0
        %3453 = vmatprep.mubr.bf16.mxu0 %v3236
        %3454 = vmatmul.mubr.bf16.gmra.mxu0 %v3049
        %v3455 = vpop.f32.mrf.mxu0
        %v3456 = vadd.f32 0.0, %v3455
        %v3457 = vpop.f32.mrf.mxu0
        %v3458 = vpop.f32.mrf.mxu0
        %v3459 = vadd.f32 0.0, %v3458
        %v3460 = vpop.f32.mrf.mxu0
        %3461 = vmatprep.mubr.bf16.mxu0 %v3239
        %3462 = vmatmul.mubr.bf16.gmra.mxu0 %v3051
        %v3463 = vpop.f32.mrf.mxu0
        %v3464 = vadd.f32 0.0, %v3463
        %v3465 = vpop.f32.mrf.mxu0
        %v3466 = vpop.f32.mrf.mxu0
        %v3467 = vadd.f32 0.0, %v3466
        %v3468 = vpop.f32.mrf.mxu0
        %3469 = vmatprep.mubr.bf16.mxu0 %v3242
        %3470 = vmatmul.mubr.bf16.gmra.mxu0 %v3053
        %v3471 = vpop.f32.mrf.mxu0
        %v3472 = vadd.f32 0.0, %v3471
        %v3473 = vpop.f32.mrf.mxu0
        %v3474 = vpop.f32.mrf.mxu0
        %v3475 = vadd.f32 0.0, %v3474
        %v3476 = vpop.f32.mrf.mxu0
        %3477 = vmatprep.mubr.bf16.mxu0 %v3245
        %3478 = vmatmul.mubr.bf16.gmra.mxu0 %v3055
        %v3479 = vpop.f32.mrf.mxu0
        %v3480 = vadd.f32 0.0, %v3479
        %v3481 = vpop.f32.mrf.mxu0
        %v3482 = vpop.f32.mrf.mxu0
        %v3483 = vadd.f32 0.0, %v3482
        %v3484 = vpop.f32.mrf.mxu0
        %3485 = vmatprep.mubr.bf16.mxu0 %v3248
        %3486 = vmatmul.mubr.bf16.gmra.mxu0 %v3057
        %v3487 = vpop.f32.mrf.mxu0
        %v3488 = vadd.f32 0.0, %v3487
        %v3489 = vpop.f32.mrf.mxu0
        %v3490 = vpop.f32.mrf.mxu0
        %v3491 = vadd.f32 0.0, %v3490
        %v3492 = vpop.f32.mrf.mxu0
        %3493 = vmatprep.mubr.bf16.mxu0 %v3251
        %3494 = vmatmul.mubr.bf16.gmra.mxu0 %v3059
        %v3495 = vpop.f32.mrf.mxu0
        %v3496 = vadd.f32 0.0, %v3495
        %v3497 = vpop.f32.mrf.mxu0
        %v3498 = vpop.f32.mrf.mxu0
        %v3499 = vadd.f32 0.0, %v3498
        %v3500 = vpop.f32.mrf.mxu0
        %3501 = vmatprep.mubr.bf16.mxu0 %v3254
        %3502 = vmatmul.mubr.bf16.gmra.mxu0 %v3061
        %v3503 = vpop.f32.mrf.mxu0
        %v3504 = vadd.f32 0.0, %v3503
        %v3505 = vpop.f32.mrf.mxu0
        %v3506 = vpop.f32.mrf.mxu0
        %v3507 = vadd.f32 0.0, %v3506
        %v3508 = vpop.f32.mrf.mxu0
        %3509 = vmatprep.mubr.bf16.mxu0 %v3257
        %3510 = vmatmul.mubr.bf16.gmra.mxu0 %v3063
        %v3511 = vpop.f32.mrf.mxu0
        %v3512 = vadd.f32 0.0, %v3511
        %v3513 = vpop.f32.mrf.mxu0
        %v3514 = vpop.f32.mrf.mxu0
        %v3515 = vadd.f32 0.0, %v3514
        %v3516 = vpop.f32.mrf.mxu0
        %3517 = vmatprep.mubr.bf16.mxu0 %v3260
        %3518 = vmatmul.mubr.bf16.gmra.mxu0 %v3065
        %v3519 = vpop.f32.mrf.mxu0
        %v3520 = vadd.f32 0.0, %v3519
        %v3521 = vpop.f32.mrf.mxu0
        %v3522 = vpop.f32.mrf.mxu0
        %v3523 = vadd.f32 0.0, %v3522
        %v3524 = vpop.f32.mrf.mxu0
        %3525 = vmatprep.mubr.bf16.mxu0 %v3263
        %3526 = vmatmul.mubr.bf16.gmra.mxu0 %v3067
        %v3527 = vpop.f32.mrf.mxu0
        %v3528 = vadd.f32 0.0, %v3527
        %v3529 = vpop.f32.mrf.mxu0
        %v3530 = vpop.f32.mrf.mxu0
        %v3531 = vadd.f32 0.0, %v3530
        %v3532 = vpop.f32.mrf.mxu0
        %3533 = vmatprep.mubr.bf16.mxu0 %v3266
        %3534 = vmatmul.mubr.bf16.gmra.mxu0 %v3069
        %v3535 = vpop.f32.mrf.mxu0
        %v3536 = vadd.f32 0.0, %v3535
        %v3537 = vpop.f32.mrf.mxu0
        %v3538 = vpop.f32.mrf.mxu0
        %v3539 = vadd.f32 0.0, %v3538
        %v3540 = vpop.f32.mrf.mxu0
        %3541 = vmatprep.mubr.bf16.mxu0 %v3269
        %3542 = vmatmul.mubr.bf16.gmra.mxu0 %v3071
        %v3543 = vpop.f32.mrf.mxu0
        %v3544 = vadd.f32 0.0, %v3543
        %v3545 = vpop.f32.mrf.mxu0
        %v3546 = vpop.f32.mrf.mxu0
        %v3547 = vadd.f32 0.0, %v3546
        %v3548 = vpop.f32.mrf.mxu0
        %3549 = vmatprep.mubr.bf16.mxu0 %v3272
        %3550 = vmatmul.mubr.bf16.gmra.mxu0 %v3073
        %v3551 = vpop.f32.mrf.mxu0
        %v3552 = vadd.f32 0.0, %v3551
        %v3553 = vpop.f32.mrf.mxu0
        %v3554 = vpop.f32.mrf.mxu0
        %v3555 = vadd.f32 0.0, %v3554
        %v3556 = vpop.f32.mrf.mxu0
        %3557 = vmatprep.mubr.bf16.mxu0 %v3275
        %3558 = vmatmul.mubr.bf16.gmra.mxu0 %v3075
        %v3559 = vpop.f32.mrf.mxu0
        %v3560 = vadd.f32 0.0, %v3559
        %v3561 = vpop.f32.mrf.mxu0
        %v3562 = vpop.f32.mrf.mxu0
        %v3563 = vadd.f32 0.0, %v3562
        %v3564 = vpop.f32.mrf.mxu0
        %3565 = vdwg.mxu0
        %v3630 = vunpack.c.l.b16 %v2644
        %v3631 = vunpack.c.h.b16 %v2644
        %v3632 = vunpack.c.l.b16 %v2645
        %v3633 = vunpack.c.h.b16 %v2645
        %v3634 = vunpack.c.l.b16 %v2646
        %v3635 = vunpack.c.h.b16 %v2646
        %v3636 = vunpack.c.l.b16 %v2647
        %v3637 = vunpack.c.h.b16 %v2647
        %v3638 = vunpack.c.l.b16 %v2648
        %v3639 = vunpack.c.h.b16 %v2648
        %v3640 = vunpack.c.l.b16 %v2649
        %v3641 = vunpack.c.h.b16 %v2649
        %v3642 = vunpack.c.l.b16 %v2650
        %v3643 = vunpack.c.h.b16 %v2650
        %v3644 = vunpack.c.l.b16 %v2651
        %v3645 = vunpack.c.h.b16 %v2651
        %v3646 = vunpack.c.l.b16 %v2652
        %v3647 = vunpack.c.h.b16 %v2652
        %v3648 = vunpack.c.l.b16 %v2653
        %v3649 = vunpack.c.h.b16 %v2653
        %v3650 = vunpack.c.l.b16 %v2654
        %v3651 = vunpack.c.h.b16 %v2654
        %v3652 = vunpack.c.l.b16 %v2655
        %v3653 = vunpack.c.h.b16 %v2655
        %v3654 = vunpack.c.l.b16 %v2656
        %v3655 = vunpack.c.h.b16 %v2656
        %v3656 = vunpack.c.l.b16 %v2657
        %v3657 = vunpack.c.h.b16 %v2657
        %v3658 = vunpack.c.l.b16 %v2658
        %v3659 = vunpack.c.h.b16 %v2658
        %v3660 = vunpack.c.l.b16 %v2659
        %v3661 = vunpack.c.h.b16 %v2659
        %v3662 = vunpack.c.l.b16 %v2660
        %v3663 = vunpack.c.h.b16 %v2660
        %v3664 = vunpack.c.l.b16 %v2661
        %v3665 = vunpack.c.h.b16 %v2661
        %v3666 = vunpack.c.l.b16 %v2662
        %v3667 = vunpack.c.h.b16 %v2662
        %v3668 = vunpack.c.l.b16 %v2663
        %v3669 = vunpack.c.h.b16 %v2663
        %v3670 = vunpack.c.l.b16 %v2664
        %v3671 = vunpack.c.h.b16 %v2664
        %v3672 = vunpack.c.l.b16 %v2665
        %v3673 = vunpack.c.h.b16 %v2665
        %v3674 = vunpack.c.l.b16 %v2666
        %v3675 = vunpack.c.h.b16 %v2666
        %v3676 = vunpack.c.l.b16 %v2667
        %v3677 = vunpack.c.h.b16 %v2667
        %v3678 = vunpack.c.l.b16 %v2668
        %v3679 = vunpack.c.h.b16 %v2668
        %v3680 = vunpack.c.l.b16 %v2669
        %v3681 = vunpack.c.h.b16 %v2669
        %v3682 = vunpack.c.l.b16 %v2670
        %v3683 = vunpack.c.h.b16 %v2670
        %v3684 = vunpack.c.l.b16 %v2671
        %v3685 = vunpack.c.h.b16 %v2671
        %v3686 = vunpack.c.l.b16 %v2672
        %v3687 = vunpack.c.h.b16 %v2672
        %v3688 = vunpack.c.l.b16 %v2673
        %v3689 = vunpack.c.h.b16 %v2673
        %v3690 = vunpack.c.l.b16 %v2674
        %v3691 = vunpack.c.h.b16 %v2674
        %v3692 = vunpack.c.l.b16 %v2675
        %v3693 = vunpack.c.h.b16 %v2675
        %v3694 = vunpack.c.l.b16 %v2676
        %v3695 = vunpack.c.h.b16 %v2676
        %v3696 = vunpack.c.l.b16 %v2677
        %v3697 = vunpack.c.h.b16 %v2677
        %v3698 = vunpack.c.l.b16 %v2678
        %v3699 = vunpack.c.h.b16 %v2678
        %v3700 = vunpack.c.l.b16 %v2679
        %v3701 = vunpack.c.h.b16 %v2679
        %v3702 = vunpack.c.l.b16 %v2680
        %v3703 = vunpack.c.h.b16 %v2680
        %v3704 = vunpack.c.l.b16 %v2681
        %v3705 = vunpack.c.h.b16 %v2681
        %v3706 = vunpack.c.l.b16 %v2682
        %v3707 = vunpack.c.h.b16 %v2682
        %v3708 = vunpack.c.l.b16 %v2683
        %v3709 = vunpack.c.h.b16 %v2683
        %v3710 = vunpack.c.l.b16 %v2684
        %v3711 = vunpack.c.h.b16 %v2684
        %v3712 = vunpack.c.l.b16 %v2685
        %v3713 = vunpack.c.h.b16 %v2685
        %v3714 = vunpack.c.l.b16 %v2686
        %v3715 = vunpack.c.h.b16 %v2686
        %v3716 = vunpack.c.l.b16 %v2687
        %v3717 = vunpack.c.h.b16 %v2687
        %v3718 = vunpack.c.l.b16 %v2688
        %v3719 = vunpack.c.h.b16 %v2688
        %v3720 = vunpack.c.l.b16 %v2689
        %v3721 = vunpack.c.h.b16 %v2689
        %v3722 = vunpack.c.l.b16 %v2690
        %v3723 = vunpack.c.h.b16 %v2690
        %v3724 = vunpack.c.l.b16 %v2691
        %v3725 = vunpack.c.h.b16 %v2691
        %v3726 = vunpack.c.l.b16 %v2692
        %v3727 = vunpack.c.h.b16 %v2692
        %v3728 = vunpack.c.l.b16 %v2693
        %v3729 = vunpack.c.h.b16 %v2693
        %v3730 = vunpack.c.l.b16 %v2694
        %v3731 = vunpack.c.h.b16 %v2694
        %v3732 = vunpack.c.l.b16 %v2695
        %v3733 = vunpack.c.h.b16 %v2695
        %v3734 = vunpack.c.l.b16 %v2696
        %v3735 = vunpack.c.h.b16 %v2696
        %v3736 = vunpack.c.l.b16 %v2697
        %v3737 = vunpack.c.h.b16 %v2697
        %v3738 = vunpack.c.l.b16 %v2698
        %v3739 = vunpack.c.h.b16 %v2698
        %v3740 = vunpack.c.l.b16 %v2699
        %v3741 = vunpack.c.h.b16 %v2699
        %v3742 = vunpack.c.l.b16 %v2700
        %v3743 = vunpack.c.h.b16 %v2700
        %v3744 = vunpack.c.l.b16 %v2701
        %v3745 = vunpack.c.h.b16 %v2701
        %v3746 = vunpack.c.l.b16 %v2702
        %v3747 = vunpack.c.h.b16 %v2702
        %v3748 = vunpack.c.l.b16 %v2703
        %v3749 = vunpack.c.h.b16 %v2703
        %v3750 = vunpack.c.l.b16 %v2704
        %v3751 = vunpack.c.h.b16 %v2704
        %v3752 = vunpack.c.l.b16 %v2705
        %v3753 = vunpack.c.h.b16 %v2705
        %v3754 = vunpack.c.l.b16 %v2706
        %v3755 = vunpack.c.h.b16 %v2706
        %v3756 = vunpack.c.l.b16 %v2707
        %v3757 = vunpack.c.h.b16 %v2707
        %v3758 = vpack.c.b16 %v3632, %v3630
        %v3759 = vpack.c.b16 %v3633, %v3631
        %v3760 = vpack.c.b16 %v3636, %v3634
        %v3761 = vpack.c.b16 %v3637, %v3635
        %v3762 = vpack.c.b16 %v3640, %v3638
        %v3763 = vpack.c.b16 %v3641, %v3639
        %v3764 = vpack.c.b16 %v3644, %v3642
        %v3765 = vpack.c.b16 %v3645, %v3643
        %v3766 = vpack.c.b16 %v3648, %v3646
        %v3767 = vpack.c.b16 %v3649, %v3647
        %v3768 = vpack.c.b16 %v3652, %v3650
        %v3769 = vpack.c.b16 %v3653, %v3651
        %v3770 = vpack.c.b16 %v3656, %v3654
        %v3771 = vpack.c.b16 %v3657, %v3655
        %v3772 = vpack.c.b16 %v3660, %v3658
        %v3773 = vpack.c.b16 %v3661, %v3659
        %v3774 = vpack.c.b16 %v3664, %v3662
        %v3775 = vpack.c.b16 %v3665, %v3663
        %v3776 = vpack.c.b16 %v3668, %v3666
        %v3777 = vpack.c.b16 %v3669, %v3667
        %v3778 = vpack.c.b16 %v3672, %v3670
        %v3779 = vpack.c.b16 %v3673, %v3671
        %v3780 = vpack.c.b16 %v3676, %v3674
        %v3781 = vpack.c.b16 %v3677, %v3675
        %v3782 = vpack.c.b16 %v3680, %v3678
        %v3783 = vpack.c.b16 %v3681, %v3679
        %v3784 = vpack.c.b16 %v3684, %v3682
        %v3785 = vpack.c.b16 %v3685, %v3683
        %v3786 = vpack.c.b16 %v3688, %v3686
        %v3787 = vpack.c.b16 %v3689, %v3687
        %v3788 = vpack.c.b16 %v3692, %v3690
        %v3789 = vpack.c.b16 %v3693, %v3691
        %v3790 = vpack.c.b16 %v3696, %v3694
        %v3791 = vpack.c.b16 %v3697, %v3695
        %v3792 = vpack.c.b16 %v3700, %v3698
        %v3793 = vpack.c.b16 %v3701, %v3699
        %v3794 = vpack.c.b16 %v3704, %v3702
        %v3795 = vpack.c.b16 %v3705, %v3703
        %v3796 = vpack.c.b16 %v3708, %v3706
        %v3797 = vpack.c.b16 %v3709, %v3707
        %v3798 = vpack.c.b16 %v3712, %v3710
        %v3799 = vpack.c.b16 %v3713, %v3711
        %v3800 = vpack.c.b16 %v3716, %v3714
        %v3801 = vpack.c.b16 %v3717, %v3715
        %v3802 = vpack.c.b16 %v3720, %v3718
        %v3803 = vpack.c.b16 %v3721, %v3719
        %v3804 = vpack.c.b16 %v3724, %v3722
        %v3805 = vpack.c.b16 %v3725, %v3723
        %v3806 = vpack.c.b16 %v3728, %v3726
        %v3807 = vpack.c.b16 %v3729, %v3727
        %v3808 = vpack.c.b16 %v3732, %v3730
        %v3809 = vpack.c.b16 %v3733, %v3731
        %v3810 = vpack.c.b16 %v3736, %v3734
        %v3811 = vpack.c.b16 %v3737, %v3735
        %v3812 = vpack.c.b16 %v3740, %v3738
        %v3813 = vpack.c.b16 %v3741, %v3739
        %v3814 = vpack.c.b16 %v3744, %v3742
        %v3815 = vpack.c.b16 %v3745, %v3743
        %v3816 = vpack.c.b16 %v3748, %v3746
        %v3817 = vpack.c.b16 %v3749, %v3747
        %v3818 = vpack.c.b16 %v3752, %v3750
        %v3819 = vpack.c.b16 %v3753, %v3751
        %v3820 = vpack.c.b16 %v3756, %v3754
        %v3821 = vpack.c.b16 %v3757, %v3755
        %v3878 = vunpack.c.l.b16 %v2708
        %v3879 = vunpack.c.l.b16 %v2709
        %v3880 = vunpack.c.l.b16 %v2710
        %v3881 = vunpack.c.l.b16 %v2711
        %v3882 = vunpack.c.l.b16 %v2712
        %v3883 = vunpack.c.l.b16 %v2713
        %v3884 = vunpack.c.l.b16 %v2714
        %v3885 = vunpack.c.l.b16 %v2715
        %v3886 = vunpack.c.l.b16 %v2716
        %v3887 = vunpack.c.l.b16 %v2717
        %v3888 = vunpack.c.l.b16 %v2718
        %v3889 = vunpack.c.l.b16 %v2719
        %v3890 = vunpack.c.l.b16 %v2720
        %v3891 = vunpack.c.l.b16 %v2721
        %v3892 = vunpack.c.l.b16 %v2722
        %v3893 = vunpack.c.l.b16 %v2723
        %v3894 = vunpack.c.l.b16 %v2724
        %v3895 = vunpack.c.l.b16 %v2725
        %v3896 = vunpack.c.l.b16 %v2726
        %v3897 = vunpack.c.l.b16 %v2727
        %v3898 = vunpack.c.l.b16 %v2728
        %v3899 = vunpack.c.l.b16 %v2729
        %v3900 = vunpack.c.l.b16 %v2730
        %v3901 = vunpack.c.l.b16 %v2731
        %v3902 = vpack.c.b16 %v3879, %v3878
        %v3903 = vpack.c.b16 %v3881, %v3880
        %v3904 = vpack.c.b16 %v3883, %v3882
        %v3905 = vpack.c.b16 %v3885, %v3884
        %v3906 = vpack.c.b16 %v3887, %v3886
        %v3907 = vpack.c.b16 %v3889, %v3888
        %v3908 = vpack.c.b16 %v3891, %v3890
        %v3909 = vpack.c.b16 %v3893, %v3892
        %v3910 = vpack.c.b16 %v3895, %v3894
        %v3911 = vpack.c.b16 %v3897, %v3896
        %v3912 = vpack.c.b16 %v3899, %v3898
        %v3913 = vpack.c.b16 %v3901, %v3900
        %v3927 = vsel %vm2052, %v3759, 0
        %v3930 = vsel %vm2052, %v3761, 0
        %v3933 = vsel %vm2052, %v3763, 0
        %v3936 = vsel %vm2052, %v3765, 0
        %v3939 = vsel %vm2052, %v3767, 0
        %v3942 = vsel %vm2052, %v3769, 0
        %v3945 = vsel %vm2052, %v3771, 0
        %v3948 = vsel %vm2052, %v3773, 0
        %v3951 = vsel %vm2052, %v3775, 0
        %v3954 = vsel %vm2052, %v3777, 0
        %v3957 = vsel %vm2052, %v3779, 0
        %v3960 = vsel %vm2052, %v3781, 0
        %v3963 = vsel %vm2052, %v3783, 0
        %v3966 = vsel %vm2052, %v3785, 0
        %v3969 = vsel %vm2052, %v3787, 0
        %v3972 = vsel %vm2052, %v3789, 0
        %v3975 = vsel %vm2052, %v3791, 0
        %v3978 = vsel %vm2052, %v3793, 0
        %v3981 = vsel %vm2052, %v3795, 0
        %v3984 = vsel %vm2052, %v3797, 0
        %v3987 = vsel %vm2052, %v3799, 0
        %v3990 = vsel %vm2052, %v3801, 0
        %v3993 = vsel %vm2052, %v3803, 0
        %v3996 = vsel %vm2052, %v3805, 0
        %v3999 = vsel %vm2052, %v3807, 0
        %v4002 = vsel %vm2052, %v3809, 0
        %v4005 = vsel %vm2052, %v3811, 0
        %v4008 = vsel %vm2052, %v3813, 0
        %v4011 = vsel %vm2052, %v3815, 0
        %v4014 = vsel %vm2052, %v3817, 0
        %v4017 = vsel %vm2052, %v3819, 0
        %v4020 = vsel %vm2052, %v3821, 0
        %4022 = vmatprep.subr.bf16.mxu0 0
        %4023 = vmatpush1.bf16.msra.mxu0 %v3909
        %4024 = vmatprep.subr.bf16.mxu0 0
        %4025 = vmatpush1.bf16.msra.mxu0 %v3908
        %4026 = vmatprep.subr.bf16.mxu0 0
        %4027 = vmatpush1.bf16.msra.mxu0 %v3907
        %4028 = vmatprep.subr.bf16.mxu0 0
        %4029 = vmatpush1.bf16.msra.mxu0 %v3906
        %4030 = vmatprep.subr.bf16.mxu0 0
        %4031 = vmatpush1.bf16.msra.mxu0 %v3905
        %4032 = vmatprep.subr.bf16.mxu0 0
        %4033 = vmatpush1.bf16.msra.mxu0 %v3904
        %4034 = vmatprep.subr.bf16.mxu0 0
        %4035 = vmatpush1.bf16.msra.mxu0 %v3903
        %4036 = vmatprep.subr.bf16.mxu0 0
        %4037 = vmatpush1.bf16.msra.mxu0 %v3902
        %4038 = vmatprep.subr.bf16.mxu0 0
        %4039 = vmatpush2.bf16.msra.mxu0 0
        %4040 = vmatprep.subr.bf16.mxu0 0
        %4041 = vmatpush2.bf16.msra.mxu0 0
        %4042 = vmatprep.subr.bf16.mxu0 0
        %4043 = vmatpush2.bf16.msra.mxu0 0
        %4044 = vmatprep.subr.bf16.mxu0 0
        %4045 = vmatpush2.bf16.msra.mxu0 0
        %4046 = vmatprep.subr.bf16.mxu0 0
        %4047 = vmatpush2.bf16.msra.mxu0 %v3913
        %4048 = vmatprep.subr.bf16.mxu0 0
        %4049 = vmatpush2.bf16.msra.mxu0 %v3912
        %4050 = vmatprep.subr.bf16.mxu0 0
        %4051 = vmatpush2.bf16.msra.mxu0 %v3911
        %4052 = vmatprep.subr.bf16.mxu0 0
        %4053 = vmatpush2.bf16.msra.mxu0 %v3910
        %4054 = vmatprep.mubr.bf16.mxu0 %v3927
        %4055 = vmatmul.mubr.bf16.gmra.mxu0 %v3758
        %v4056 = vpop.f32.mrf.mxu0
        %v4057 = vadd.f32 %v3312, %v4056
        %v4058 = vpop.f32.mrf.mxu0
        %v4059 = vpop.f32.mrf.mxu0
        %v4060 = vadd.f32 %v3315, %v4059
        %v4061 = vpop.f32.mrf.mxu0
        %4062 = vmatprep.mubr.bf16.mxu0 %v3930
        %4063 = vmatmul.mubr.bf16.gmra.mxu0 %v3760
        %v4064 = vpop.f32.mrf.mxu0
        %v4065 = vadd.f32 %v3320, %v4064
        %v4066 = vpop.f32.mrf.mxu0
        %v4067 = vpop.f32.mrf.mxu0
        %v4068 = vadd.f32 %v3323, %v4067
        %v4069 = vpop.f32.mrf.mxu0
        %4070 = vmatprep.mubr.bf16.mxu0 %v3933
        %4071 = vmatmul.mubr.bf16.gmra.mxu0 %v3762
        %v4072 = vpop.f32.mrf.mxu0
        %v4073 = vadd.f32 %v3328, %v4072
        %v4074 = vpop.f32.mrf.mxu0
        %v4075 = vpop.f32.mrf.mxu0
        %v4076 = vadd.f32 %v3331, %v4075
        %v4077 = vpop.f32.mrf.mxu0
        %4078 = vmatprep.mubr.bf16.mxu0 %v3936
        %4079 = vmatmul.mubr.bf16.gmra.mxu0 %v3764
        %v4080 = vpop.f32.mrf.mxu0
        %v4081 = vadd.f32 %v3336, %v4080
        %v4082 = vpop.f32.mrf.mxu0
        %v4083 = vpop.f32.mrf.mxu0
        %v4084 = vadd.f32 %v3339, %v4083
        %v4085 = vpop.f32.mrf.mxu0
        %4086 = vmatprep.mubr.bf16.mxu0 %v3939
        %4087 = vmatmul.mubr.bf16.gmra.mxu0 %v3766
        %v4088 = vpop.f32.mrf.mxu0
        %v4089 = vadd.f32 %v3344, %v4088
        %v4090 = vpop.f32.mrf.mxu0
        %v4091 = vpop.f32.mrf.mxu0
        %v4092 = vadd.f32 %v3347, %v4091
        %v4093 = vpop.f32.mrf.mxu0
        %4094 = vmatprep.mubr.bf16.mxu0 %v3942
        %4095 = vmatmul.mubr.bf16.gmra.mxu0 %v3768
        %v4096 = vpop.f32.mrf.mxu0
        %v4097 = vadd.f32 %v3352, %v4096
        %v4098 = vpop.f32.mrf.mxu0
        %v4099 = vpop.f32.mrf.mxu0
        %v4100 = vadd.f32 %v3355, %v4099
        %v4101 = vpop.f32.mrf.mxu0
        %4102 = vmatprep.mubr.bf16.mxu0 %v3945
        %4103 = vmatmul.mubr.bf16.gmra.mxu0 %v3770
        %v4104 = vpop.f32.mrf.mxu0
        %v4105 = vadd.f32 %v3360, %v4104
        %v4106 = vpop.f32.mrf.mxu0
        %v4107 = vpop.f32.mrf.mxu0
        %v4108 = vadd.f32 %v3363, %v4107
        %v4109 = vpop.f32.mrf.mxu0
        %4110 = vmatprep.mubr.bf16.mxu0 %v3948
        %4111 = vmatmul.mubr.bf16.gmra.mxu0 %v3772
        %v4112 = vpop.f32.mrf.mxu0
        %v4113 = vadd.f32 %v3368, %v4112
        %v4114 = vpop.f32.mrf.mxu0
        %v4115 = vpop.f32.mrf.mxu0
        %v4116 = vadd.f32 %v3371, %v4115
        %v4117 = vpop.f32.mrf.mxu0
        %4118 = vmatprep.mubr.bf16.mxu0 %v3951
        %4119 = vmatmul.mubr.bf16.gmra.mxu0 %v3774
        %v4120 = vpop.f32.mrf.mxu0
        %v4121 = vadd.f32 %v3376, %v4120
        %v4122 = vpop.f32.mrf.mxu0
        %v4123 = vpop.f32.mrf.mxu0
        %v4124 = vadd.f32 %v3379, %v4123
        %v4125 = vpop.f32.mrf.mxu0
        %4126 = vmatprep.mubr.bf16.mxu0 %v3954
        %4127 = vmatmul.mubr.bf16.gmra.mxu0 %v3776
        %v4128 = vpop.f32.mrf.mxu0
        %v4129 = vadd.f32 %v3384, %v4128
        %v4130 = vpop.f32.mrf.mxu0
        %v4131 = vpop.f32.mrf.mxu0
        %v4132 = vadd.f32 %v3387, %v4131
        %v4133 = vpop.f32.mrf.mxu0
        %4134 = vmatprep.mubr.bf16.mxu0 %v3957
        %4135 = vmatmul.mubr.bf16.gmra.mxu0 %v3778
        %v4136 = vpop.f32.mrf.mxu0
        %v4137 = vadd.f32 %v3392, %v4136
        %v4138 = vpop.f32.mrf.mxu0
        %v4139 = vpop.f32.mrf.mxu0
        %v4140 = vadd.f32 %v3395, %v4139
        %v4141 = vpop.f32.mrf.mxu0
        %4142 = vmatprep.mubr.bf16.mxu0 %v3960
        %4143 = vmatmul.mubr.bf16.gmra.mxu0 %v3780
        %v4144 = vpop.f32.mrf.mxu0
        %v4145 = vadd.f32 %v3400, %v4144
        %v4146 = vpop.f32.mrf.mxu0
        %v4147 = vpop.f32.mrf.mxu0
        %v4148 = vadd.f32 %v3403, %v4147
        %v4149 = vpop.f32.mrf.mxu0
        %4150 = vmatprep.mubr.bf16.mxu0 %v3963
        %4151 = vmatmul.mubr.bf16.gmra.mxu0 %v3782
        %v4152 = vpop.f32.mrf.mxu0
        %v4153 = vadd.f32 %v3408, %v4152
        %v4154 = vpop.f32.mrf.mxu0
        %v4155 = vpop.f32.mrf.mxu0
        %v4156 = vadd.f32 %v3411, %v4155
        %v4157 = vpop.f32.mrf.mxu0
        %4158 = vmatprep.mubr.bf16.mxu0 %v3966
        %4159 = vmatmul.mubr.bf16.gmra.mxu0 %v3784
        %v4160 = vpop.f32.mrf.mxu0
        %v4161 = vadd.f32 %v3416, %v4160
        %v4162 = vpop.f32.mrf.mxu0
        %v4163 = vpop.f32.mrf.mxu0
        %v4164 = vadd.f32 %v3419, %v4163
        %v4165 = vpop.f32.mrf.mxu0
        %4166 = vmatprep.mubr.bf16.mxu0 %v3969
        %4167 = vmatmul.mubr.bf16.gmra.mxu0 %v3786
        %v4168 = vpop.f32.mrf.mxu0
        %v4169 = vadd.f32 %v3424, %v4168
        %v4170 = vpop.f32.mrf.mxu0
        %v4171 = vpop.f32.mrf.mxu0
        %v4172 = vadd.f32 %v3427, %v4171
        %v4173 = vpop.f32.mrf.mxu0
        %4174 = vmatprep.mubr.bf16.mxu0 %v3972
        %4175 = vmatmul.mubr.bf16.gmra.mxu0 %v3788
        %v4176 = vpop.f32.mrf.mxu0
        %v4177 = vadd.f32 %v3432, %v4176
        %v4178 = vpop.f32.mrf.mxu0
        %v4179 = vpop.f32.mrf.mxu0
        %v4180 = vadd.f32 %v3435, %v4179
        %v4181 = vpop.f32.mrf.mxu0
        %4182 = vmatprep.mubr.bf16.mxu0 %v3975
        %4183 = vmatmul.mubr.bf16.gmra.mxu0 %v3790
        %v4184 = vpop.f32.mrf.mxu0
        %v4185 = vadd.f32 %v3440, %v4184
        %v4186 = vpop.f32.mrf.mxu0
        %v4187 = vpop.f32.mrf.mxu0
        %v4188 = vadd.f32 %v3443, %v4187
        %v4189 = vpop.f32.mrf.mxu0
        %4190 = vmatprep.mubr.bf16.mxu0 %v3978
        %4191 = vmatmul.mubr.bf16.gmra.mxu0 %v3792
        %v4192 = vpop.f32.mrf.mxu0
        %v4193 = vadd.f32 %v3448, %v4192
        %v4194 = vpop.f32.mrf.mxu0
        %v4195 = vpop.f32.mrf.mxu0
        %v4196 = vadd.f32 %v3451, %v4195
        %v4197 = vpop.f32.mrf.mxu0
        %4198 = vmatprep.mubr.bf16.mxu0 %v3981
        %4199 = vmatmul.mubr.bf16.gmra.mxu0 %v3794
        %v4200 = vpop.f32.mrf.mxu0
        %v4201 = vadd.f32 %v3456, %v4200
        %v4202 = vpop.f32.mrf.mxu0
        %v4203 = vpop.f32.mrf.mxu0
        %v4204 = vadd.f32 %v3459, %v4203
        %v4205 = vpop.f32.mrf.mxu0
        %4206 = vmatprep.mubr.bf16.mxu0 %v3984
        %4207 = vmatmul.mubr.bf16.gmra.mxu0 %v3796
        %v4208 = vpop.f32.mrf.mxu0
        %v4209 = vadd.f32 %v3464, %v4208
        %v4210 = vpop.f32.mrf.mxu0
        %v4211 = vpop.f32.mrf.mxu0
        %v4212 = vadd.f32 %v3467, %v4211
        %v4213 = vpop.f32.mrf.mxu0
        %4214 = vmatprep.mubr.bf16.mxu0 %v3987
        %4215 = vmatmul.mubr.bf16.gmra.mxu0 %v3798
        %v4216 = vpop.f32.mrf.mxu0
        %v4217 = vadd.f32 %v3472, %v4216
        %v4218 = vpop.f32.mrf.mxu0
        %v4219 = vpop.f32.mrf.mxu0
        %v4220 = vadd.f32 %v3475, %v4219
        %v4221 = vpop.f32.mrf.mxu0
        %4222 = vmatprep.mubr.bf16.mxu0 %v3990
        %4223 = vmatmul.mubr.bf16.gmra.mxu0 %v3800
        %v4224 = vpop.f32.mrf.mxu0
        %v4225 = vadd.f32 %v3480, %v4224
        %v4226 = vpop.f32.mrf.mxu0
        %v4227 = vpop.f32.mrf.mxu0
        %v4228 = vadd.f32 %v3483, %v4227
        %v4229 = vpop.f32.mrf.mxu0
        %4230 = vmatprep.mubr.bf16.mxu0 %v3993
        %4231 = vmatmul.mubr.bf16.gmra.mxu0 %v3802
        %v4232 = vpop.f32.mrf.mxu0
        %v4233 = vadd.f32 %v3488, %v4232
        %v4234 = vpop.f32.mrf.mxu0
        %v4235 = vpop.f32.mrf.mxu0
        %v4236 = vadd.f32 %v3491, %v4235
        %v4237 = vpop.f32.mrf.mxu0
        %4238 = vmatprep.mubr.bf16.mxu0 %v3996
        %4239 = vmatmul.mubr.bf16.gmra.mxu0 %v3804
        %v4240 = vpop.f32.mrf.mxu0
        %v4241 = vadd.f32 %v3496, %v4240
        %v4242 = vpop.f32.mrf.mxu0
        %v4243 = vpop.f32.mrf.mxu0
        %v4244 = vadd.f32 %v3499, %v4243
        %v4245 = vpop.f32.mrf.mxu0
        %4246 = vmatprep.mubr.bf16.mxu0 %v3999
        %4247 = vmatmul.mubr.bf16.gmra.mxu0 %v3806
        %v4248 = vpop.f32.mrf.mxu0
        %v4249 = vadd.f32 %v3504, %v4248
        %v4250 = vpop.f32.mrf.mxu0
        %v4251 = vpop.f32.mrf.mxu0
        %v4252 = vadd.f32 %v3507, %v4251
        %v4253 = vpop.f32.mrf.mxu0
        %4254 = vmatprep.mubr.bf16.mxu0 %v4002
        %4255 = vmatmul.mubr.bf16.gmra.mxu0 %v3808
        %v4256 = vpop.f32.mrf.mxu0
        %v4257 = vadd.f32 %v3512, %v4256
        %v4258 = vpop.f32.mrf.mxu0
        %v4259 = vpop.f32.mrf.mxu0
        %v4260 = vadd.f32 %v3515, %v4259
        %v4261 = vpop.f32.mrf.mxu0
        %4262 = vmatprep.mubr.bf16.mxu0 %v4005
        %4263 = vmatmul.mubr.bf16.gmra.mxu0 %v3810
        %v4264 = vpop.f32.mrf.mxu0
        %v4265 = vadd.f32 %v3520, %v4264
        %v4266 = vpop.f32.mrf.mxu0
        %v4267 = vpop.f32.mrf.mxu0
        %v4268 = vadd.f32 %v3523, %v4267
        %v4269 = vpop.f32.mrf.mxu0
        %4270 = vmatprep.mubr.bf16.mxu0 %v4008
        %4271 = vmatmul.mubr.bf16.gmra.mxu0 %v3812
        %v4272 = vpop.f32.mrf.mxu0
        %v4273 = vadd.f32 %v3528, %v4272
        %v4274 = vpop.f32.mrf.mxu0
        %v4275 = vpop.f32.mrf.mxu0
        %v4276 = vadd.f32 %v3531, %v4275
        %v4277 = vpop.f32.mrf.mxu0
        %4278 = vmatprep.mubr.bf16.mxu0 %v4011
        %4279 = vmatmul.mubr.bf16.gmra.mxu0 %v3814
        %v4280 = vpop.f32.mrf.mxu0
        %v4281 = vadd.f32 %v3536, %v4280
        %v4282 = vpop.f32.mrf.mxu0
        %v4283 = vpop.f32.mrf.mxu0
        %v4284 = vadd.f32 %v3539, %v4283
        %v4285 = vpop.f32.mrf.mxu0
        %4286 = vmatprep.mubr.bf16.mxu0 %v4014
        %4287 = vmatmul.mubr.bf16.gmra.mxu0 %v3816
        %v4288 = vpop.f32.mrf.mxu0
        %v4289 = vadd.f32 %v3544, %v4288
        %v4290 = vpop.f32.mrf.mxu0
        %v4291 = vpop.f32.mrf.mxu0
        %v4292 = vadd.f32 %v3547, %v4291
        %v4293 = vpop.f32.mrf.mxu0
        %4294 = vmatprep.mubr.bf16.mxu0 %v4017
        %4295 = vmatmul.mubr.bf16.gmra.mxu0 %v3818
        %v4296 = vpop.f32.mrf.mxu0
        %v4297 = vadd.f32 %v3552, %v4296
        %v4298 = vpop.f32.mrf.mxu0
        %v4299 = vpop.f32.mrf.mxu0
        %v4300 = vadd.f32 %v3555, %v4299
        %v4301 = vpop.f32.mrf.mxu0
        %4302 = vmatprep.mubr.bf16.mxu0 %v4020
        %4303 = vmatmul.mubr.bf16.gmra.mxu0 %v3820
        %v4304 = vpop.f32.mrf.mxu0
        %v4305 = vadd.f32 %v3560, %v4304
        %v4306 = vpop.f32.mrf.mxu0
        %v4307 = vpop.f32.mrf.mxu0
        %v4308 = vadd.f32 %v3563, %v4307
        %v4309 = vpop.f32.mrf.mxu0
        %4310 = vdwg.mxu0
        %s4311 = scalar_lea.vmem [#allocation2], 64
        %v4312 = vld [vmem:[%s4311] sm:$0xff]
        %v4313 = vld [vmem:[%s4311 + $0x8] sm:$0xff]
        %v4314 = vld [vmem:[%s4311 + $0x10] sm:$0xff]
        %v4315 = vld [vmem:[%s4311 + $0x18] sm:$0xff]
        %v4316 = vld [vmem:[%s4311 + $0x20] sm:$0xff]
        %v4317 = vld [vmem:[%s4311 + $0x28] sm:$0xff]
        %v4318 = vld [vmem:[%s4311 + $0x30] sm:$0xff]
        %v4319 = vld [vmem:[%s4311 + $0x38] sm:$0xff]
        %v4320 = vld [vmem:[%s4311 + $0x40] sm:$0xff]
        %v4321 = vld [vmem:[%s4311 + $0x48] sm:$0xff]
        %v4322 = vld [vmem:[%s4311 + $0x50] sm:$0xff]
        %v4323 = vld [vmem:[%s4311 + $0x58] sm:$0xff]
        %v4324 = vld [vmem:[%s4311 + $0x60] sm:$0xff]
        %v4325 = vld [vmem:[%s4311 + $0x68] sm:$0xff]
        %v4326 = vld [vmem:[%s4311 + $0x70] sm:$0xff]
        %v4327 = vld [vmem:[%s4311 + $0x78] sm:$0xff]
        %v4328 = vld [vmem:[%s4311 + $0x80] sm:$0xff]
        %v4329 = vld [vmem:[%s4311 + $0x88] sm:$0xff]
        %v4330 = vld [vmem:[%s4311 + $0x90] sm:$0xff]
        %v4331 = vld [vmem:[%s4311 + $0x98] sm:$0xff]
        %v4332 = vld [vmem:[%s4311 + $0xa0] sm:$0xff]
        %v4333 = vld [vmem:[%s4311 + $0xa8] sm:$0xff]
        %v4334 = vld [vmem:[%s4311 + $0xb0] sm:$0xff]
        %v4335 = vld [vmem:[%s4311 + $0xb8] sm:$0xff]
        %v4336 = vld [vmem:[%s4311 + $0xc0] sm:$0xff]
        %v4337 = vld [vmem:[%s4311 + $0xc8] sm:$0xff]
        %v4338 = vld [vmem:[%s4311 + $0xd0] sm:$0xff]
        %v4339 = vld [vmem:[%s4311 + $0xd8] sm:$0xff]
        %v4340 = vld [vmem:[%s4311 + $0xe0] sm:$0xff]
        %v4341 = vld [vmem:[%s4311 + $0xe8] sm:$0xff]
        %v4342 = vld [vmem:[%s4311 + $0xf0] sm:$0xff]
        %v4343 = vld [vmem:[%s4311 + $0xf8] sm:$0xff]
        %v4344 = vld [vmem:[%s4311 + $0x100] sm:$0xff]
        %v4345 = vld [vmem:[%s4311 + $0x108] sm:$0xff]
        %v4346 = vld [vmem:[%s4311 + $0x110] sm:$0xff]
        %v4347 = vld [vmem:[%s4311 + $0x118] sm:$0xff]
        %v4348 = vld [vmem:[%s4311 + $0x120] sm:$0xff]
        %v4349 = vld [vmem:[%s4311 + $0x128] sm:$0xff]
        %v4350 = vld [vmem:[%s4311 + $0x130] sm:$0xff]
        %v4351 = vld [vmem:[%s4311 + $0x138] sm:$0xff]
        %v4352 = vld [vmem:[%s4311 + $0x140] sm:$0xff]
        %v4353 = vld [vmem:[%s4311 + $0x148] sm:$0xff]
        %v4354 = vld [vmem:[%s4311 + $0x150] sm:$0xff]
        %v4355 = vld [vmem:[%s4311 + $0x158] sm:$0xff]
        %v4356 = vld [vmem:[%s4311 + $0x160] sm:$0xff]
        %v4357 = vld [vmem:[%s4311 + $0x168] sm:$0xff]
        %v4358 = vld [vmem:[%s4311 + $0x170] sm:$0xff]
        %v4359 = vld [vmem:[%s4311 + $0x178] sm:$0xff]
        %v4360 = vld [vmem:[%s4311 + $0x180] sm:$0xff]
        %v4361 = vld [vmem:[%s4311 + $0x188] sm:$0xff]
        %v4362 = vld [vmem:[%s4311 + $0x190] sm:$0xff]
        %v4363 = vld [vmem:[%s4311 + $0x198] sm:$0xff]
        %v4364 = vld [vmem:[%s4311 + $0x1a0] sm:$0xff]
        %v4365 = vld [vmem:[%s4311 + $0x1a8] sm:$0xff]
        %v4366 = vld [vmem:[%s4311 + $0x1b0] sm:$0xff]
        %v4367 = vld [vmem:[%s4311 + $0x1b8] sm:$0xff]
        %v4368 = vld [vmem:[%s4311 + $0x1c0] sm:$0xff]
        %v4369 = vld [vmem:[%s4311 + $0x1c8] sm:$0xff]
        %v4370 = vld [vmem:[%s4311 + $0x1d0] sm:$0xff]
        %v4371 = vld [vmem:[%s4311 + $0x1d8] sm:$0xff]
        %v4372 = vld [vmem:[%s4311 + $0x1e0] sm:$0xff]
        %v4373 = vld [vmem:[%s4311 + $0x1e8] sm:$0xff]
        %v4374 = vld [vmem:[%s4311 + $0x1f0] sm:$0xff]
        %v4375 = vld [vmem:[%s4311 + $0x1f8] sm:$0xff]
        %s4376 = scalar_lea.vmem %s4, 192
        %v4377 = vld [vmem:[%s4376] sm:$0xf]
        %v4378 = vld [vmem:[%s4376 + $0x4] sm:$0xf]
        %v4379 = vld [vmem:[%s4376 + $0x8] sm:$0xf]
        %v4380 = vld [vmem:[%s4376 + $0xc] sm:$0xf]
        %v4381 = vld [vmem:[%s4376 + $0x10] sm:$0xf]
        %v4382 = vld [vmem:[%s4376 + $0x14] sm:$0xf]
        %v4383 = vld [vmem:[%s4376 + $0x18] sm:$0xf]
        %v4384 = vld [vmem:[%s4376 + $0x1c] sm:$0xf]
        %v4385 = vld [vmem:[%s4376 + $0x20] sm:$0xf]
        %v4386 = vld [vmem:[%s4376 + $0x24] sm:$0xf]
        %v4387 = vld [vmem:[%s4376 + $0x28] sm:$0xf]
        %v4388 = vld [vmem:[%s4376 + $0x2c] sm:$0xf]
        %v4389 = vld [vmem:[%s4376 + $0x30] sm:$0xf]
        %v4390 = vld [vmem:[%s4376 + $0x34] sm:$0xf]
        %v4391 = vld [vmem:[%s4376 + $0x38] sm:$0xf]
        %v4392 = vld [vmem:[%s4376 + $0x3c] sm:$0xf]
        %v4393 = vld [vmem:[%s4376 + $0x40] sm:$0xf]
        %v4394 = vld [vmem:[%s4376 + $0x44] sm:$0xf]
        %v4395 = vld [vmem:[%s4376 + $0x48] sm:$0xf]
        %v4396 = vld [vmem:[%s4376 + $0x4c] sm:$0xf]
        %v4397 = vld [vmem:[%s4376 + $0x50] sm:$0xf]
        %v4398 = vld [vmem:[%s4376 + $0x54] sm:$0xf]
        %v4399 = vld [vmem:[%s4376 + $0x58] sm:$0xf]
        %v4400 = vld [vmem:[%s4376 + $0x5c] sm:$0xf]
        %v4465 = vunpack.c.l.b16 %v4312
        %v4466 = vunpack.c.h.b16 %v4312
        %v4467 = vunpack.c.l.b16 %v4313
        %v4468 = vunpack.c.h.b16 %v4313
        %v4469 = vunpack.c.l.b16 %v4314
        %v4470 = vunpack.c.h.b16 %v4314
        %v4471 = vunpack.c.l.b16 %v4315
        %v4472 = vunpack.c.h.b16 %v4315
        %v4473 = vunpack.c.l.b16 %v4316
        %v4474 = vunpack.c.h.b16 %v4316
        %v4475 = vunpack.c.l.b16 %v4317
        %v4476 = vunpack.c.h.b16 %v4317
        %v4477 = vunpack.c.l.b16 %v4318
        %v4478 = vunpack.c.h.b16 %v4318
        %v4479 = vunpack.c.l.b16 %v4319
        %v4480 = vunpack.c.h.b16 %v4319
        %v4481 = vunpack.c.l.b16 %v4320
        %v4482 = vunpack.c.h.b16 %v4320
        %v4483 = vunpack.c.l.b16 %v4321
        %v4484 = vunpack.c.h.b16 %v4321
        %v4485 = vunpack.c.l.b16 %v4322
        %v4486 = vunpack.c.h.b16 %v4322
        %v4487 = vunpack.c.l.b16 %v4323
        %v4488 = vunpack.c.h.b16 %v4323
        %v4489 = vunpack.c.l.b16 %v4324
        %v4490 = vunpack.c.h.b16 %v4324
        %v4491 = vunpack.c.l.b16 %v4325
        %v4492 = vunpack.c.h.b16 %v4325
        %v4493 = vunpack.c.l.b16 %v4326
        %v4494 = vunpack.c.h.b16 %v4326
        %v4495 = vunpack.c.l.b16 %v4327
        %v4496 = vunpack.c.h.b16 %v4327
        %v4497 = vunpack.c.l.b16 %v4328
        %v4498 = vunpack.c.h.b16 %v4328
        %v4499 = vunpack.c.l.b16 %v4329
        %v4500 = vunpack.c.h.b16 %v4329
        %v4501 = vunpack.c.l.b16 %v4330
        %v4502 = vunpack.c.h.b16 %v4330
        %v4503 = vunpack.c.l.b16 %v4331
        %v4504 = vunpack.c.h.b16 %v4331
        %v4505 = vunpack.c.l.b16 %v4332
        %v4506 = vunpack.c.h.b16 %v4332
        %v4507 = vunpack.c.l.b16 %v4333
        %v4508 = vunpack.c.h.b16 %v4333
        %v4509 = vunpack.c.l.b16 %v4334
        %v4510 = vunpack.c.h.b16 %v4334
        %v4511 = vunpack.c.l.b16 %v4335
        %v4512 = vunpack.c.h.b16 %v4335
        %v4513 = vunpack.c.l.b16 %v4336
        %v4514 = vunpack.c.h.b16 %v4336
        %v4515 = vunpack.c.l.b16 %v4337
        %v4516 = vunpack.c.h.b16 %v4337
        %v4517 = vunpack.c.l.b16 %v4338
        %v4518 = vunpack.c.h.b16 %v4338
        %v4519 = vunpack.c.l.b16 %v4339
        %v4520 = vunpack.c.h.b16 %v4339
        %v4521 = vunpack.c.l.b16 %v4340
        %v4522 = vunpack.c.h.b16 %v4340
        %v4523 = vunpack.c.l.b16 %v4341
        %v4524 = vunpack.c.h.b16 %v4341
        %v4525 = vunpack.c.l.b16 %v4342
        %v4526 = vunpack.c.h.b16 %v4342
        %v4527 = vunpack.c.l.b16 %v4343
        %v4528 = vunpack.c.h.b16 %v4343
        %v4529 = vunpack.c.l.b16 %v4344
        %v4530 = vunpack.c.h.b16 %v4344
        %v4531 = vunpack.c.l.b16 %v4345
        %v4532 = vunpack.c.h.b16 %v4345
        %v4533 = vunpack.c.l.b16 %v4346
        %v4534 = vunpack.c.h.b16 %v4346
        %v4535 = vunpack.c.l.b16 %v4347
        %v4536 = vunpack.c.h.b16 %v4347
        %v4537 = vunpack.c.l.b16 %v4348
        %v4538 = vunpack.c.h.b16 %v4348
        %v4539 = vunpack.c.l.b16 %v4349
        %v4540 = vunpack.c.h.b16 %v4349
        %v4541 = vunpack.c.l.b16 %v4350
        %v4542 = vunpack.c.h.b16 %v4350
        %v4543 = vunpack.c.l.b16 %v4351
        %v4544 = vunpack.c.h.b16 %v4351
        %v4545 = vunpack.c.l.b16 %v4352
        %v4546 = vunpack.c.h.b16 %v4352
        %v4547 = vunpack.c.l.b16 %v4353
        %v4548 = vunpack.c.h.b16 %v4353
        %v4549 = vunpack.c.l.b16 %v4354
        %v4550 = vunpack.c.h.b16 %v4354
        %v4551 = vunpack.c.l.b16 %v4355
        %v4552 = vunpack.c.h.b16 %v4355
        %v4553 = vunpack.c.l.b16 %v4356
        %v4554 = vunpack.c.h.b16 %v4356
        %v4555 = vunpack.c.l.b16 %v4357
        %v4556 = vunpack.c.h.b16 %v4357
        %v4557 = vunpack.c.l.b16 %v4358
        %v4558 = vunpack.c.h.b16 %v4358
        %v4559 = vunpack.c.l.b16 %v4359
        %v4560 = vunpack.c.h.b16 %v4359
        %v4561 = vunpack.c.l.b16 %v4360
        %v4562 = vunpack.c.h.b16 %v4360
        %v4563 = vunpack.c.l.b16 %v4361
        %v4564 = vunpack.c.h.b16 %v4361
        %v4565 = vunpack.c.l.b16 %v4362
        %v4566 = vunpack.c.h.b16 %v4362
        %v4567 = vunpack.c.l.b16 %v4363
        %v4568 = vunpack.c.h.b16 %v4363
        %v4569 = vunpack.c.l.b16 %v4364
        %v4570 = vunpack.c.h.b16 %v4364
        %v4571 = vunpack.c.l.b16 %v4365
        %v4572 = vunpack.c.h.b16 %v4365
        %v4573 = vunpack.c.l.b16 %v4366
        %v4574 = vunpack.c.h.b16 %v4366
        %v4575 = vunpack.c.l.b16 %v4367
        %v4576 = vunpack.c.h.b16 %v4367
        %v4577 = vunpack.c.l.b16 %v4368
        %v4578 = vunpack.c.h.b16 %v4368
        %v4579 = vunpack.c.l.b16 %v4369
        %v4580 = vunpack.c.h.b16 %v4369
        %v4581 = vunpack.c.l.b16 %v4370
        %v4582 = vunpack.c.h.b16 %v4370
        %v4583 = vunpack.c.l.b16 %v4371
        %v4584 = vunpack.c.h.b16 %v4371
        %v4585 = vunpack.c.l.b16 %v4372
        %v4586 = vunpack.c.h.b16 %v4372
        %v4587 = vunpack.c.l.b16 %v4373
        %v4588 = vunpack.c.h.b16 %v4373
        %v4589 = vunpack.c.l.b16 %v4374
        %v4590 = vunpack.c.h.b16 %v4374
        %v4591 = vunpack.c.l.b16 %v4375
        %v4592 = vunpack.c.h.b16 %v4375
        %v4593 = vpack.c.b16 %v4467, %v4465
        %v4594 = vpack.c.b16 %v4468, %v4466
        %v4595 = vpack.c.b16 %v4471, %v4469
        %v4596 = vpack.c.b16 %v4472, %v4470
        %v4597 = vpack.c.b16 %v4475, %v4473
        %v4598 = vpack.c.b16 %v4476, %v4474
        %v4599 = vpack.c.b16 %v4479, %v4477
        %v4600 = vpack.c.b16 %v4480, %v4478
        %v4601 = vpack.c.b16 %v4483, %v4481
        %v4602 = vpack.c.b16 %v4484, %v4482
        %v4603 = vpack.c.b16 %v4487, %v4485
        %v4604 = vpack.c.b16 %v4488, %v4486
        %v4605 = vpack.c.b16 %v4491, %v4489
        %v4606 = vpack.c.b16 %v4492, %v4490
        %v4607 = vpack.c.b16 %v4495, %v4493
        %v4608 = vpack.c.b16 %v4496, %v4494
        %v4609 = vpack.c.b16 %v4499, %v4497
        %v4610 = vpack.c.b16 %v4500, %v4498
        %v4611 = vpack.c.b16 %v4503, %v4501
        %v4612 = vpack.c.b16 %v4504, %v4502
        %v4613 = vpack.c.b16 %v4507, %v4505
        %v4614 = vpack.c.b16 %v4508, %v4506
        %v4615 = vpack.c.b16 %v4511, %v4509
        %v4616 = vpack.c.b16 %v4512, %v4510
        %v4617 = vpack.c.b16 %v4515, %v4513
        %v4618 = vpack.c.b16 %v4516, %v4514
        %v4619 = vpack.c.b16 %v4519, %v4517
        %v4620 = vpack.c.b16 %v4520, %v4518
        %v4621 = vpack.c.b16 %v4523, %v4521
        %v4622 = vpack.c.b16 %v4524, %v4522
        %v4623 = vpack.c.b16 %v4527, %v4525
        %v4624 = vpack.c.b16 %v4528, %v4526
        %v4625 = vpack.c.b16 %v4531, %v4529
        %v4626 = vpack.c.b16 %v4532, %v4530
        %v4627 = vpack.c.b16 %v4535, %v4533
        %v4628 = vpack.c.b16 %v4536, %v4534
        %v4629 = vpack.c.b16 %v4539, %v4537
        %v4630 = vpack.c.b16 %v4540, %v4538
        %v4631 = vpack.c.b16 %v4543, %v4541
        %v4632 = vpack.c.b16 %v4544, %v4542
        %v4633 = vpack.c.b16 %v4547, %v4545
        %v4634 = vpack.c.b16 %v4548, %v4546
        %v4635 = vpack.c.b16 %v4551, %v4549
        %v4636 = vpack.c.b16 %v4552, %v4550
        %v4637 = vpack.c.b16 %v4555, %v4553
        %v4638 = vpack.c.b16 %v4556, %v4554
        %v4639 = vpack.c.b16 %v4559, %v4557
        %v4640 = vpack.c.b16 %v4560, %v4558
        %v4641 = vpack.c.b16 %v4563, %v4561
        %v4642 = vpack.c.b16 %v4564, %v4562
        %v4643 = vpack.c.b16 %v4567, %v4565
        %v4644 = vpack.c.b16 %v4568, %v4566
        %v4645 = vpack.c.b16 %v4571, %v4569
        %v4646 = vpack.c.b16 %v4572, %v4570
        %v4647 = vpack.c.b16 %v4575, %v4573
        %v4648 = vpack.c.b16 %v4576, %v4574
        %v4649 = vpack.c.b16 %v4579, %v4577
        %v4650 = vpack.c.b16 %v4580, %v4578
        %v4651 = vpack.c.b16 %v4583, %v4581
        %v4652 = vpack.c.b16 %v4584, %v4582
        %v4653 = vpack.c.b16 %v4587, %v4585
        %v4654 = vpack.c.b16 %v4588, %v4586
        %v4655 = vpack.c.b16 %v4591, %v4589
        %v4656 = vpack.c.b16 %v4592, %v4590
        %v4713 = vunpack.c.l.b16 %v4377
        %v4714 = vunpack.c.l.b16 %v4378
        %v4715 = vunpack.c.l.b16 %v4379
        %v4716 = vunpack.c.l.b16 %v4380
        %v4717 = vunpack.c.l.b16 %v4381
        %v4718 = vunpack.c.l.b16 %v4382
        %v4719 = vunpack.c.l.b16 %v4383
        %v4720 = vunpack.c.l.b16 %v4384
        %v4721 = vunpack.c.l.b16 %v4385
        %v4722 = vunpack.c.l.b16 %v4386
        %v4723 = vunpack.c.l.b16 %v4387
        %v4724 = vunpack.c.l.b16 %v4388
        %v4725 = vunpack.c.l.b16 %v4389
        %v4726 = vunpack.c.l.b16 %v4390
        %v4727 = vunpack.c.l.b16 %v4391
        %v4728 = vunpack.c.l.b16 %v4392
        %v4729 = vunpack.c.l.b16 %v4393
        %v4730 = vunpack.c.l.b16 %v4394
        %v4731 = vunpack.c.l.b16 %v4395
        %v4732 = vunpack.c.l.b16 %v4396
        %v4733 = vunpack.c.l.b16 %v4397
        %v4734 = vunpack.c.l.b16 %v4398
        %v4735 = vunpack.c.l.b16 %v4399
        %v4736 = vunpack.c.l.b16 %v4400
        %v4737 = vpack.c.b16 %v4714, %v4713
        %v4738 = vpack.c.b16 %v4716, %v4715
        %v4739 = vpack.c.b16 %v4718, %v4717
        %v4740 = vpack.c.b16 %v4720, %v4719
        %v4741 = vpack.c.b16 %v4722, %v4721
        %v4742 = vpack.c.b16 %v4724, %v4723
        %v4743 = vpack.c.b16 %v4726, %v4725
        %v4744 = vpack.c.b16 %v4728, %v4727
        %v4745 = vpack.c.b16 %v4730, %v4729
        %v4746 = vpack.c.b16 %v4732, %v4731
        %v4747 = vpack.c.b16 %v4734, %v4733
        %v4748 = vpack.c.b16 %v4736, %v4735
        %v4762 = vsel %vm2052, %v4594, 0
        %v4765 = vsel %vm2052, %v4596, 0
        %v4768 = vsel %vm2052, %v4598, 0
        %v4771 = vsel %vm2052, %v4600, 0
        %v4774 = vsel %vm2052, %v4602, 0
        %v4777 = vsel %vm2052, %v4604, 0
        %v4780 = vsel %vm2052, %v4606, 0
        %v4783 = vsel %vm2052, %v4608, 0
        %v4786 = vsel %vm2052, %v4610, 0
        %v4789 = vsel %vm2052, %v4612, 0
        %v4792 = vsel %vm2052, %v4614, 0
        %v4795 = vsel %vm2052, %v4616, 0
        %v4798 = vsel %vm2052, %v4618, 0
        %v4801 = vsel %vm2052, %v4620, 0
        %v4804 = vsel %vm2052, %v4622, 0
        %v4807 = vsel %vm2052, %v4624, 0
        %v4810 = vsel %vm2052, %v4626, 0
        %v4813 = vsel %vm2052, %v4628, 0
        %v4816 = vsel %vm2052, %v4630, 0
        %v4819 = vsel %vm2052, %v4632, 0
        %v4822 = vsel %vm2052, %v4634, 0
        %v4825 = vsel %vm2052, %v4636, 0
        %v4828 = vsel %vm2052, %v4638, 0
        %v4831 = vsel %vm2052, %v4640, 0
        %v4834 = vsel %vm2052, %v4642, 0
        %v4837 = vsel %vm2052, %v4644, 0
        %v4840 = vsel %vm2052, %v4646, 0
        %v4843 = vsel %vm2052, %v4648, 0
        %v4846 = vsel %vm2052, %v4650, 0
        %v4849 = vsel %vm2052, %v4652, 0
        %v4852 = vsel %vm2052, %v4654, 0
        %v4855 = vsel %vm2052, %v4656, 0
        %4857 = vmatprep.subr.bf16.mxu0 0
        %4858 = vmatpush1.bf16.msra.mxu0 %v4744
        %4859 = vmatprep.subr.bf16.mxu0 0
        %4860 = vmatpush1.bf16.msra.mxu0 %v4743
        %4861 = vmatprep.subr.bf16.mxu0 0
        %4862 = vmatpush1.bf16.msra.mxu0 %v4742
        %4863 = vmatprep.subr.bf16.mxu0 0
        %4864 = vmatpush1.bf16.msra.mxu0 %v4741
        %4865 = vmatprep.subr.bf16.mxu0 0
        %4866 = vmatpush1.bf16.msra.mxu0 %v4740
        %4867 = vmatprep.subr.bf16.mxu0 0
        %4868 = vmatpush1.bf16.msra.mxu0 %v4739
        %4869 = vmatprep.subr.bf16.mxu0 0
        %4870 = vmatpush1.bf16.msra.mxu0 %v4738
        %4871 = vmatprep.subr.bf16.mxu0 0
        %4872 = vmatpush1.bf16.msra.mxu0 %v4737
        %4873 = vmatprep.subr.bf16.mxu0 0
        %4874 = vmatpush2.bf16.msra.mxu0 0
        %4875 = vmatprep.subr.bf16.mxu0 0
        %4876 = vmatpush2.bf16.msra.mxu0 0
        %4877 = vmatprep.subr.bf16.mxu0 0
        %4878 = vmatpush2.bf16.msra.mxu0 0
        %4879 = vmatprep.subr.bf16.mxu0 0
        %4880 = vmatpush2.bf16.msra.mxu0 0
        %4881 = vmatprep.subr.bf16.mxu0 0
        %4882 = vmatpush2.bf16.msra.mxu0 %v4748
        %4883 = vmatprep.subr.bf16.mxu0 0
        %4884 = vmatpush2.bf16.msra.mxu0 %v4747
        %4885 = vmatprep.subr.bf16.mxu0 0
        %4886 = vmatpush2.bf16.msra.mxu0 %v4746
        %4887 = vmatprep.subr.bf16.mxu0 0
        %4888 = vmatpush2.bf16.msra.mxu0 %v4745
        %4889 = vmatprep.mubr.bf16.mxu0 %v4762
        %4890 = vmatmul.mubr.bf16.gmra.mxu0 %v4593
        %v4891 = vpop.f32.mrf.mxu0
        %v4892 = vadd.f32 0.0, %v4891
        %v4893 = vpop.f32.mrf.mxu0
        %v4894 = vpop.f32.mrf.mxu0
        %v4895 = vadd.f32 0.0, %v4894
        %v4896 = vpop.f32.mrf.mxu0
        %4897 = vmatprep.mubr.bf16.mxu0 %v4765
        %4898 = vmatmul.mubr.bf16.gmra.mxu0 %v4595
        %v4899 = vpop.f32.mrf.mxu0
        %v4900 = vadd.f32 0.0, %v4899
        %v4901 = vpop.f32.mrf.mxu0
        %v4902 = vpop.f32.mrf.mxu0
        %v4903 = vadd.f32 0.0, %v4902
        %v4904 = vpop.f32.mrf.mxu0
        %4905 = vmatprep.mubr.bf16.mxu0 %v4768
        %4906 = vmatmul.mubr.bf16.gmra.mxu0 %v4597
        %v4907 = vpop.f32.mrf.mxu0
        %v4908 = vadd.f32 0.0, %v4907
        %v4909 = vpop.f32.mrf.mxu0
        %v4910 = vpop.f32.mrf.mxu0
        %v4911 = vadd.f32 0.0, %v4910
        %v4912 = vpop.f32.mrf.mxu0
        %4913 = vmatprep.mubr.bf16.mxu0 %v4771
        %4914 = vmatmul.mubr.bf16.gmra.mxu0 %v4599
        %v4915 = vpop.f32.mrf.mxu0
        %v4916 = vadd.f32 0.0, %v4915
        %v4917 = vpop.f32.mrf.mxu0
        %v4918 = vpop.f32.mrf.mxu0
        %v4919 = vadd.f32 0.0, %v4918
        %v4920 = vpop.f32.mrf.mxu0
        %4921 = vmatprep.mubr.bf16.mxu0 %v4774
        %4922 = vmatmul.mubr.bf16.gmra.mxu0 %v4601
        %v4923 = vpop.f32.mrf.mxu0
        %v4924 = vadd.f32 0.0, %v4923
        %v4925 = vpop.f32.mrf.mxu0
        %v4926 = vpop.f32.mrf.mxu0
        %v4927 = vadd.f32 0.0, %v4926
        %v4928 = vpop.f32.mrf.mxu0
        %4929 = vmatprep.mubr.bf16.mxu0 %v4777
        %4930 = vmatmul.mubr.bf16.gmra.mxu0 %v4603
        %v4931 = vpop.f32.mrf.mxu0
        %v4932 = vadd.f32 0.0, %v4931
        %v4933 = vpop.f32.mrf.mxu0
        %v4934 = vpop.f32.mrf.mxu0
        %v4935 = vadd.f32 0.0, %v4934
        %v4936 = vpop.f32.mrf.mxu0
        %4937 = vmatprep.mubr.bf16.mxu0 %v4780
        %4938 = vmatmul.mubr.bf16.gmra.mxu0 %v4605
        %v4939 = vpop.f32.mrf.mxu0
        %v4940 = vadd.f32 0.0, %v4939
        %v4941 = vpop.f32.mrf.mxu0
        %v4942 = vpop.f32.mrf.mxu0
        %v4943 = vadd.f32 0.0, %v4942
        %v4944 = vpop.f32.mrf.mxu0
        %4945 = vmatprep.mubr.bf16.mxu0 %v4783
        %4946 = vmatmul.mubr.bf16.gmra.mxu0 %v4607
        %v4947 = vpop.f32.mrf.mxu0
        %v4948 = vadd.f32 0.0, %v4947
        %v4949 = vpop.f32.mrf.mxu0
        %v4950 = vpop.f32.mrf.mxu0
        %v4951 = vadd.f32 0.0, %v4950
        %v4952 = vpop.f32.mrf.mxu0
        %4953 = vmatprep.mubr.bf16.mxu0 %v4786
        %4954 = vmatmul.mubr.bf16.gmra.mxu0 %v4609
        %v4955 = vpop.f32.mrf.mxu0
        %v4956 = vadd.f32 0.0, %v4955
        %v4957 = vpop.f32.mrf.mxu0
        %v4958 = vpop.f32.mrf.mxu0
        %v4959 = vadd.f32 0.0, %v4958
        %v4960 = vpop.f32.mrf.mxu0
        %4961 = vmatprep.mubr.bf16.mxu0 %v4789
        %4962 = vmatmul.mubr.bf16.gmra.mxu0 %v4611
        %v4963 = vpop.f32.mrf.mxu0
        %v4964 = vadd.f32 0.0, %v4963
        %v4965 = vpop.f32.mrf.mxu0
        %v4966 = vpop.f32.mrf.mxu0
        %v4967 = vadd.f32 0.0, %v4966
        %v4968 = vpop.f32.mrf.mxu0
        %4969 = vmatprep.mubr.bf16.mxu0 %v4792
        %4970 = vmatmul.mubr.bf16.gmra.mxu0 %v4613
        %v4971 = vpop.f32.mrf.mxu0
        %v4972 = vadd.f32 0.0, %v4971
        %v4973 = vpop.f32.mrf.mxu0
        %v4974 = vpop.f32.mrf.mxu0
        %v4975 = vadd.f32 0.0, %v4974
        %v4976 = vpop.f32.mrf.mxu0
        %4977 = vmatprep.mubr.bf16.mxu0 %v4795
        %4978 = vmatmul.mubr.bf16.gmra.mxu0 %v4615
        %v4979 = vpop.f32.mrf.mxu0
        %v4980 = vadd.f32 0.0, %v4979
        %v4981 = vpop.f32.mrf.mxu0
        %v4982 = vpop.f32.mrf.mxu0
        %v4983 = vadd.f32 0.0, %v4982
        %v4984 = vpop.f32.mrf.mxu0
        %4985 = vmatprep.mubr.bf16.mxu0 %v4798
        %4986 = vmatmul.mubr.bf16.gmra.mxu0 %v4617
        %v4987 = vpop.f32.mrf.mxu0
        %v4988 = vadd.f32 0.0, %v4987
        %v4989 = vpop.f32.mrf.mxu0
        %v4990 = vpop.f32.mrf.mxu0
        %v4991 = vadd.f32 0.0, %v4990
        %v4992 = vpop.f32.mrf.mxu0
        %4993 = vmatprep.mubr.bf16.mxu0 %v4801
        %4994 = vmatmul.mubr.bf16.gmra.mxu0 %v4619
        %v4995 = vpop.f32.mrf.mxu0
        %v4996 = vadd.f32 0.0, %v4995
        %v4997 = vpop.f32.mrf.mxu0
        %v4998 = vpop.f32.mrf.mxu0
        %v4999 = vadd.f32 0.0, %v4998
        %v5000 = vpop.f32.mrf.mxu0
        %5001 = vmatprep.mubr.bf16.mxu0 %v4804
        %5002 = vmatmul.mubr.bf16.gmra.mxu0 %v4621
        %v5003 = vpop.f32.mrf.mxu0
        %v5004 = vadd.f32 0.0, %v5003
        %v5005 = vpop.f32.mrf.mxu0
        %v5006 = vpop.f32.mrf.mxu0
        %v5007 = vadd.f32 0.0, %v5006
        %v5008 = vpop.f32.mrf.mxu0
        %5009 = vmatprep.mubr.bf16.mxu0 %v4807
        %5010 = vmatmul.mubr.bf16.gmra.mxu0 %v4623
        %v5011 = vpop.f32.mrf.mxu0
        %v5012 = vadd.f32 0.0, %v5011
        %v5013 = vpop.f32.mrf.mxu0
        %v5014 = vpop.f32.mrf.mxu0
        %v5015 = vadd.f32 0.0, %v5014
        %v5016 = vpop.f32.mrf.mxu0
        %5017 = vmatprep.mubr.bf16.mxu0 %v4810
        %5018 = vmatmul.mubr.bf16.gmra.mxu0 %v4625
        %v5019 = vpop.f32.mrf.mxu0
        %v5020 = vadd.f32 0.0, %v5019
        %v5021 = vpop.f32.mrf.mxu0
        %v5022 = vpop.f32.mrf.mxu0
        %v5023 = vadd.f32 0.0, %v5022
        %v5024 = vpop.f32.mrf.mxu0
        %5025 = vmatprep.mubr.bf16.mxu0 %v4813
        %5026 = vmatmul.mubr.bf16.gmra.mxu0 %v4627
        %v5027 = vpop.f32.mrf.mxu0
        %v5028 = vadd.f32 0.0, %v5027
        %v5029 = vpop.f32.mrf.mxu0
        %v5030 = vpop.f32.mrf.mxu0
        %v5031 = vadd.f32 0.0, %v5030
        %v5032 = vpop.f32.mrf.mxu0
        %5033 = vmatprep.mubr.bf16.mxu0 %v4816
        %5034 = vmatmul.mubr.bf16.gmra.mxu0 %v4629
        %v5035 = vpop.f32.mrf.mxu0
        %v5036 = vadd.f32 0.0, %v5035
        %v5037 = vpop.f32.mrf.mxu0
        %v5038 = vpop.f32.mrf.mxu0
        %v5039 = vadd.f32 0.0, %v5038
        %v5040 = vpop.f32.mrf.mxu0
        %5041 = vmatprep.mubr.bf16.mxu0 %v4819
        %5042 = vmatmul.mubr.bf16.gmra.mxu0 %v4631
        %v5043 = vpop.f32.mrf.mxu0
        %v5044 = vadd.f32 0.0, %v5043
        %v5045 = vpop.f32.mrf.mxu0
        %v5046 = vpop.f32.mrf.mxu0
        %v5047 = vadd.f32 0.0, %v5046
        %v5048 = vpop.f32.mrf.mxu0
        %5049 = vmatprep.mubr.bf16.mxu0 %v4822
        %5050 = vmatmul.mubr.bf16.gmra.mxu0 %v4633
        %v5051 = vpop.f32.mrf.mxu0
        %v5052 = vadd.f32 0.0, %v5051
        %v5053 = vpop.f32.mrf.mxu0
        %v5054 = vpop.f32.mrf.mxu0
        %v5055 = vadd.f32 0.0, %v5054
        %v5056 = vpop.f32.mrf.mxu0
        %5057 = vmatprep.mubr.bf16.mxu0 %v4825
        %5058 = vmatmul.mubr.bf16.gmra.mxu0 %v4635
        %v5059 = vpop.f32.mrf.mxu0
        %v5060 = vadd.f32 0.0, %v5059
        %v5061 = vpop.f32.mrf.mxu0
        %v5062 = vpop.f32.mrf.mxu0
        %v5063 = vadd.f32 0.0, %v5062
        %v5064 = vpop.f32.mrf.mxu0
        %5065 = vmatprep.mubr.bf16.mxu0 %v4828
        %5066 = vmatmul.mubr.bf16.gmra.mxu0 %v4637
        %v5067 = vpop.f32.mrf.mxu0
        %v5068 = vadd.f32 0.0, %v5067
        %v5069 = vpop.f32.mrf.mxu0
        %v5070 = vpop.f32.mrf.mxu0
        %v5071 = vadd.f32 0.0, %v5070
        %v5072 = vpop.f32.mrf.mxu0
        %5073 = vmatprep.mubr.bf16.mxu0 %v4831
        %5074 = vmatmul.mubr.bf16.gmra.mxu0 %v4639
        %v5075 = vpop.f32.mrf.mxu0
        %v5076 = vadd.f32 0.0, %v5075
        %v5077 = vpop.f32.mrf.mxu0
        %v5078 = vpop.f32.mrf.mxu0
        %v5079 = vadd.f32 0.0, %v5078
        %v5080 = vpop.f32.mrf.mxu0
        %5081 = vmatprep.mubr.bf16.mxu0 %v4834
        %5082 = vmatmul.mubr.bf16.gmra.mxu0 %v4641
        %v5083 = vpop.f32.mrf.mxu0
        %v5084 = vadd.f32 0.0, %v5083
        %v5085 = vpop.f32.mrf.mxu0
        %v5086 = vpop.f32.mrf.mxu0
        %v5087 = vadd.f32 0.0, %v5086
        %v5088 = vpop.f32.mrf.mxu0
        %5089 = vmatprep.mubr.bf16.mxu0 %v4837
        %5090 = vmatmul.mubr.bf16.gmra.mxu0 %v4643
        %v5091 = vpop.f32.mrf.mxu0
        %v5092 = vadd.f32 0.0, %v5091
        %v5093 = vpop.f32.mrf.mxu0
        %v5094 = vpop.f32.mrf.mxu0
        %v5095 = vadd.f32 0.0, %v5094
        %v5096 = vpop.f32.mrf.mxu0
        %5097 = vmatprep.mubr.bf16.mxu0 %v4840
        %5098 = vmatmul.mubr.bf16.gmra.mxu0 %v4645
        %v5099 = vpop.f32.mrf.mxu0
        %v5100 = vadd.f32 0.0, %v5099
        %v5101 = vpop.f32.mrf.mxu0
        %v5102 = vpop.f32.mrf.mxu0
        %v5103 = vadd.f32 0.0, %v5102
        %v5104 = vpop.f32.mrf.mxu0
        %5105 = vmatprep.mubr.bf16.mxu0 %v4843
        %5106 = vmatmul.mubr.bf16.gmra.mxu0 %v4647
        %v5107 = vpop.f32.mrf.mxu0
        %v5108 = vadd.f32 0.0, %v5107
        %v5109 = vpop.f32.mrf.mxu0
        %v5110 = vpop.f32.mrf.mxu0
        %v5111 = vadd.f32 0.0, %v5110
        %v5112 = vpop.f32.mrf.mxu0
        %5113 = vmatprep.mubr.bf16.mxu0 %v4846
        %5114 = vmatmul.mubr.bf16.gmra.mxu0 %v4649
        %v5115 = vpop.f32.mrf.mxu0
        %v5116 = vadd.f32 0.0, %v5115
        %v5117 = vpop.f32.mrf.mxu0
        %v5118 = vpop.f32.mrf.mxu0
        %v5119 = vadd.f32 0.0, %v5118
        %v5120 = vpop.f32.mrf.mxu0
        %5121 = vmatprep.mubr.bf16.mxu0 %v4849
        %5122 = vmatmul.mubr.bf16.gmra.mxu0 %v4651
        %v5123 = vpop.f32.mrf.mxu0
        %v5124 = vadd.f32 0.0, %v5123
        %v5125 = vpop.f32.mrf.mxu0
        %v5126 = vpop.f32.mrf.mxu0
        %v5127 = vadd.f32 0.0, %v5126
        %v5128 = vpop.f32.mrf.mxu0
        %5129 = vmatprep.mubr.bf16.mxu0 %v4852
        %5130 = vmatmul.mubr.bf16.gmra.mxu0 %v4653
        %v5131 = vpop.f32.mrf.mxu0
        %v5132 = vadd.f32 0.0, %v5131
        %v5133 = vpop.f32.mrf.mxu0
        %v5134 = vpop.f32.mrf.mxu0
        %v5135 = vadd.f32 0.0, %v5134
        %v5136 = vpop.f32.mrf.mxu0
        %5137 = vmatprep.mubr.bf16.mxu0 %v4855
        %5138 = vmatmul.mubr.bf16.gmra.mxu0 %v4655
        %v5139 = vpop.f32.mrf.mxu0
        %v5140 = vadd.f32 0.0, %v5139
        %v5141 = vpop.f32.mrf.mxu0
        %v5142 = vpop.f32.mrf.mxu0
        %v5143 = vadd.f32 0.0, %v5142
        %v5144 = vpop.f32.mrf.mxu0
        %5145 = vdwg.mxu0
        %v5146 = vadd.f32 %v4057, %v4892
        %v5147 = vadd.f32 %v4060, %v4895
        %v5148 = vadd.f32 %v4065, %v4900
        %v5149 = vadd.f32 %v4068, %v4903
        %v5150 = vadd.f32 %v4073, %v4908
        %v5151 = vadd.f32 %v4076, %v4911
        %v5152 = vadd.f32 %v4081, %v4916
        %v5153 = vadd.f32 %v4084, %v4919
        %v5154 = vadd.f32 %v4089, %v4924
        %v5155 = vadd.f32 %v4092, %v4927
        %v5156 = vadd.f32 %v4097, %v4932
        %v5157 = vadd.f32 %v4100, %v4935
        %v5158 = vadd.f32 %v4105, %v4940
        %v5159 = vadd.f32 %v4108, %v4943
        %v5160 = vadd.f32 %v4113, %v4948
        %v5161 = vadd.f32 %v4116, %v4951
        %v5162 = vadd.f32 %v4121, %v4956
        %v5163 = vadd.f32 %v4124, %v4959
        %v5164 = vadd.f32 %v4129, %v4964
        %v5165 = vadd.f32 %v4132, %v4967
        %v5166 = vadd.f32 %v4137, %v4972
        %v5167 = vadd.f32 %v4140, %v4975
        %v5168 = vadd.f32 %v4145, %v4980
        %v5169 = vadd.f32 %v4148, %v4983
        %v5170 = vadd.f32 %v4153, %v4988
        %v5171 = vadd.f32 %v4156, %v4991
        %v5172 = vadd.f32 %v4161, %v4996
        %v5173 = vadd.f32 %v4164, %v4999
        %v5174 = vadd.f32 %v4169, %v5004
        %v5175 = vadd.f32 %v4172, %v5007
        %v5176 = vadd.f32 %v4177, %v5012
        %v5177 = vadd.f32 %v4180, %v5015
        %v5178 = vadd.f32 %v4185, %v5020
        %v5179 = vadd.f32 %v4188, %v5023
        %v5180 = vadd.f32 %v4193, %v5028
        %v5181 = vadd.f32 %v4196, %v5031
        %v5182 = vadd.f32 %v4201, %v5036
        %v5183 = vadd.f32 %v4204, %v5039
        %v5184 = vadd.f32 %v4209, %v5044
        %v5185 = vadd.f32 %v4212, %v5047
        %v5186 = vadd.f32 %v4217, %v5052
        %v5187 = vadd.f32 %v4220, %v5055
        %v5188 = vadd.f32 %v4225, %v5060
        %v5189 = vadd.f32 %v4228, %v5063
        %v5190 = vadd.f32 %v4233, %v5068
        %v5191 = vadd.f32 %v4236, %v5071
        %v5192 = vadd.f32 %v4241, %v5076
        %v5193 = vadd.f32 %v4244, %v5079
        %v5194 = vadd.f32 %v4249, %v5084
        %v5195 = vadd.f32 %v4252, %v5087
        %v5196 = vadd.f32 %v4257, %v5092
        %v5197 = vadd.f32 %v4260, %v5095
        %v5198 = vadd.f32 %v4265, %v5100
        %v5199 = vadd.f32 %v4268, %v5103
        %v5200 = vadd.f32 %v4273, %v5108
        %v5201 = vadd.f32 %v4276, %v5111
        %v5202 = vadd.f32 %v4281, %v5116
        %v5203 = vadd.f32 %v4284, %v5119
        %v5204 = vadd.f32 %v4289, %v5124
        %v5205 = vadd.f32 %v4292, %v5127
        %v5206 = vadd.f32 %v4297, %v5132
        %v5207 = vadd.f32 %v4300, %v5135
        %v5208 = vadd.f32 %v4305, %v5140
        %v5209 = vadd.f32 %v4308, %v5143
        %v5210 = vld [vmem:[%s7] sm:$0x1]
        %v5212 = vlaneseq
        %v5213 = vshrl.u32 %v5212, 7
        %v5214 = vsub.s32 0, %v5213
        %v5215 = vrot.slane %v5210, %v5214
        %v5217 = vadd.f32 %v5146, %v5215
        %v5218 = vadd.f32 %v5147, %v5215
        %v5219 = vadd.f32 %v5148, %v5215
        %v5220 = vadd.f32 %v5149, %v5215
        %v5221 = vadd.f32 %v5150, %v5215
        %v5222 = vadd.f32 %v5151, %v5215
        %v5223 = vadd.f32 %v5152, %v5215
        %v5224 = vadd.f32 %v5153, %v5215
        %v5225 = vadd.f32 %v5154, %v5215
        %v5226 = vadd.f32 %v5155, %v5215
        %v5227 = vadd.f32 %v5156, %v5215
        %v5228 = vadd.f32 %v5157, %v5215
        %v5229 = vadd.f32 %v5158, %v5215
        %v5230 = vadd.f32 %v5159, %v5215
        %v5231 = vadd.f32 %v5160, %v5215
        %v5232 = vadd.f32 %v5161, %v5215
        %v5233 = vadd.f32 %v5162, %v5215
        %v5234 = vadd.f32 %v5163, %v5215
        %v5235 = vadd.f32 %v5164, %v5215
        %v5236 = vadd.f32 %v5165, %v5215
        %v5237 = vadd.f32 %v5166, %v5215
        %v5238 = vadd.f32 %v5167, %v5215
        %v5239 = vadd.f32 %v5168, %v5215
        %v5240 = vadd.f32 %v5169, %v5215
        %v5241 = vadd.f32 %v5170, %v5215
        %v5242 = vadd.f32 %v5171, %v5215
        %v5243 = vadd.f32 %v5172, %v5215
        %v5244 = vadd.f32 %v5173, %v5215
        %v5245 = vadd.f32 %v5174, %v5215
        %v5246 = vadd.f32 %v5175, %v5215
        %v5247 = vadd.f32 %v5176, %v5215
        %v5248 = vadd.f32 %v5177, %v5215
        %v5249 = vadd.f32 %v5178, %v5215
        %v5250 = vadd.f32 %v5179, %v5215
        %v5251 = vadd.f32 %v5180, %v5215
        %v5252 = vadd.f32 %v5181, %v5215
        %v5253 = vadd.f32 %v5182, %v5215
        %v5254 = vadd.f32 %v5183, %v5215
        %v5255 = vadd.f32 %v5184, %v5215
        %v5256 = vadd.f32 %v5185, %v5215
        %v5257 = vadd.f32 %v5186, %v5215
        %v5258 = vadd.f32 %v5187, %v5215
        %v5259 = vadd.f32 %v5188, %v5215
        %v5260 = vadd.f32 %v5189, %v5215
        %v5261 = vadd.f32 %v5190, %v5215
        %v5262 = vadd.f32 %v5191, %v5215
        %v5263 = vadd.f32 %v5192, %v5215
        %v5264 = vadd.f32 %v5193, %v5215
        %v5265 = vadd.f32 %v5194, %v5215
        %v5266 = vadd.f32 %v5195, %v5215
        %v5267 = vadd.f32 %v5196, %v5215
        %v5268 = vadd.f32 %v5197, %v5215
        %v5269 = vadd.f32 %v5198, %v5215
        %v5270 = vadd.f32 %v5199, %v5215
        %v5271 = vadd.f32 %v5200, %v5215
        %v5272 = vadd.f32 %v5201, %v5215
        %v5273 = vadd.f32 %v5202, %v5215
        %v5274 = vadd.f32 %v5203, %v5215
        %v5275 = vadd.f32 %v5204, %v5215
        %v5276 = vadd.f32 %v5205, %v5215
        %v5277 = vadd.f32 %v5206, %v5215
        %v5278 = vadd.f32 %v5207, %v5215
        %v5279 = vadd.f32 %v5208, %v5215
        %v5280 = vadd.f32 %v5209, %v5215
        %v5281 = vmax.f32 %v5217, 0.0
        %v5282 = vmax.f32 %v5218, 0.0
        %v5283 = vmax.f32 %v5219, 0.0
        %v5284 = vmax.f32 %v5220, 0.0
        %v5285 = vmax.f32 %v5221, 0.0
        %v5286 = vmax.f32 %v5222, 0.0
        %v5287 = vmax.f32 %v5223, 0.0
        %v5288 = vmax.f32 %v5224, 0.0
        %v5289 = vmax.f32 %v5225, 0.0
        %v5290 = vmax.f32 %v5226, 0.0
        %v5291 = vmax.f32 %v5227, 0.0
        %v5292 = vmax.f32 %v5228, 0.0
        %v5293 = vmax.f32 %v5229, 0.0
        %v5294 = vmax.f32 %v5230, 0.0
        %v5295 = vmax.f32 %v5231, 0.0
        %v5296 = vmax.f32 %v5232, 0.0
        %v5297 = vmax.f32 %v5233, 0.0
        %v5298 = vmax.f32 %v5234, 0.0
        %v5299 = vmax.f32 %v5235, 0.0
        %v5300 = vmax.f32 %v5236, 0.0
        %v5301 = vmax.f32 %v5237, 0.0
        %v5302 = vmax.f32 %v5238, 0.0
        %v5303 = vmax.f32 %v5239, 0.0
        %v5304 = vmax.f32 %v5240, 0.0
        %v5305 = vmax.f32 %v5241, 0.0
        %v5306 = vmax.f32 %v5242, 0.0
        %v5307 = vmax.f32 %v5243, 0.0
        %v5308 = vmax.f32 %v5244, 0.0
        %v5309 = vmax.f32 %v5245, 0.0
        %v5310 = vmax.f32 %v5246, 0.0
        %v5311 = vmax.f32 %v5247, 0.0
        %v5312 = vmax.f32 %v5248, 0.0
        %v5313 = vmax.f32 %v5249, 0.0
        %v5314 = vmax.f32 %v5250, 0.0
        %v5315 = vmax.f32 %v5251, 0.0
        %v5316 = vmax.f32 %v5252, 0.0
        %v5317 = vmax.f32 %v5253, 0.0
        %v5318 = vmax.f32 %v5254, 0.0
        %v5319 = vmax.f32 %v5255, 0.0
        %v5320 = vmax.f32 %v5256, 0.0
        %v5321 = vmax.f32 %v5257, 0.0
        %v5322 = vmax.f32 %v5258, 0.0
        %v5323 = vmax.f32 %v5259, 0.0
        %v5324 = vmax.f32 %v5260, 0.0
        %v5325 = vmax.f32 %v5261, 0.0
        %v5326 = vmax.f32 %v5262, 0.0
        %v5327 = vmax.f32 %v5263, 0.0
        %v5328 = vmax.f32 %v5264, 0.0
        %v5329 = vmax.f32 %v5265, 0.0
        %v5330 = vmax.f32 %v5266, 0.0
        %v5331 = vmax.f32 %v5267, 0.0
        %v5332 = vmax.f32 %v5268, 0.0
        %v5333 = vmax.f32 %v5269, 0.0
        %v5334 = vmax.f32 %v5270, 0.0
        %v5335 = vmax.f32 %v5271, 0.0
        %v5336 = vmax.f32 %v5272, 0.0
        %v5337 = vmax.f32 %v5273, 0.0
        %v5338 = vmax.f32 %v5274, 0.0
        %v5339 = vmax.f32 %v5275, 0.0
        %v5340 = vmax.f32 %v5276, 0.0
        %v5341 = vmax.f32 %v5277, 0.0
        %v5342 = vmax.f32 %v5278, 0.0
        %v5343 = vmax.f32 %v5279, 0.0
        %v5344 = vmax.f32 %v5280, 0.0
        %v5345 = vpack.c.bf16 %v5282, %v5281
        %v5346 = vpack.c.bf16 %v5284, %v5283
        %v5347 = vpack.c.bf16 %v5286, %v5285
        %v5348 = vpack.c.bf16 %v5288, %v5287
        %v5349 = vpack.c.bf16 %v5290, %v5289
        %v5350 = vpack.c.bf16 %v5292, %v5291
        %v5351 = vpack.c.bf16 %v5294, %v5293
        %v5352 = vpack.c.bf16 %v5296, %v5295
        %v5353 = vpack.c.bf16 %v5298, %v5297
        %v5354 = vpack.c.bf16 %v5300, %v5299
        %v5355 = vpack.c.bf16 %v5302, %v5301
        %v5356 = vpack.c.bf16 %v5304, %v5303
        %v5357 = vpack.c.bf16 %v5306, %v5305
        %v5358 = vpack.c.bf16 %v5308, %v5307
        %v5359 = vpack.c.bf16 %v5310, %v5309
        %v5360 = vpack.c.bf16 %v5312, %v5311
        %v5361 = vpack.c.bf16 %v5314, %v5313
        %v5362 = vpack.c.bf16 %v5316, %v5315
        %v5363 = vpack.c.bf16 %v5318, %v5317
        %v5364 = vpack.c.bf16 %v5320, %v5319
        %v5365 = vpack.c.bf16 %v5322, %v5321
        %v5366 = vpack.c.bf16 %v5324, %v5323
        %v5367 = vpack.c.bf16 %v5326, %v5325
        %v5368 = vpack.c.bf16 %v5328, %v5327
        %v5369 = vpack.c.bf16 %v5330, %v5329
        %v5370 = vpack.c.bf16 %v5332, %v5331
        %v5371 = vpack.c.bf16 %v5334, %v5333
        %v5372 = vpack.c.bf16 %v5336, %v5335
        %v5373 = vpack.c.bf16 %v5338, %v5337
        %v5374 = vpack.c.bf16 %v5340, %v5339
        %v5375 = vpack.c.bf16 %v5342, %v5341
        %v5376 = vpack.c.bf16 %v5344, %v5343
        %v5377 = vld [vmem:[%s5] sm:$0xff]
        %v5378 = vld [vmem:[%s5 + $0x8] sm:$0xff]
        %v5379 = vld [vmem:[%s5 + $0x10] sm:$0xff]
        %v5380 = vld [vmem:[%s5 + $0x18] sm:$0xff]
        %v5381 = vld [vmem:[%s5 + $0x20] sm:$0xff]
        %v5382 = vld [vmem:[%s5 + $0x28] sm:$0xff]
        %v5383 = vld [vmem:[%s5 + $0x30] sm:$0xff]
        %v5384 = vld [vmem:[%s5 + $0x38] sm:$0xff]
        %v5385 = vld [vmem:[%s8] sm:$0x3]
        %v5387 = vlaneseq
        %v5388 = vshrl.u32 %v5387, 7
        %v5389 = vsub.s32 0, %v5388
        %v5390 = vrot.slane %v5385, %v5389
        %v5391 = vlaneseq
        %v5392 = vshrl.u32 %v5391, 7
        %v5393 = vsub.s32 1, %v5392
        %v5394 = vrot.slane %v5385, %v5393
        %v5405 = vunpack.c.l.b16 %v5377
        %v5406 = vunpack.c.h.b16 %v5377
        %v5407 = vunpack.c.l.b16 %v5378
        %v5408 = vunpack.c.h.b16 %v5378
        %v5409 = vunpack.c.l.b16 %v5379
        %v5410 = vunpack.c.h.b16 %v5379
        %v5411 = vunpack.c.l.b16 %v5380
        %v5412 = vunpack.c.h.b16 %v5380
        %v5413 = vunpack.c.l.b16 %v5381
        %v5414 = vunpack.c.h.b16 %v5381
        %v5415 = vunpack.c.l.b16 %v5382
        %v5416 = vunpack.c.h.b16 %v5382
        %v5417 = vunpack.c.l.b16 %v5383
        %v5418 = vunpack.c.h.b16 %v5383
        %v5419 = vunpack.c.l.b16 %v5384
        %v5420 = vunpack.c.h.b16 %v5384
        %v5421 = vpack.c.b16 %v5407, %v5405
        %v5422 = vpack.c.b16 %v5408, %v5406
        %v5423 = vpack.c.b16 %v5411, %v5409
        %v5424 = vpack.c.b16 %v5412, %v5410
        %v5425 = vpack.c.b16 %v5415, %v5413
        %v5426 = vpack.c.b16 %v5416, %v5414
        %v5427 = vpack.c.b16 %v5419, %v5417
        %v5428 = vpack.c.b16 %v5420, %v5418
        %v5438 = vsel %vm2052, %v5345, 0
        %v5441 = vsel %vm2052, %v5346, 0
        %v5444 = vsel %vm2052, %v5347, 0
        %v5447 = vsel %vm2052, %v5348, 0
        %v5450 = vsel %vm2052, %v5349, 0
        %v5453 = vsel %vm2052, %v5350, 0
        %v5456 = vsel %vm2052, %v5351, 0
        %v5459 = vsel %vm2052, %v5352, 0
        %v5462 = vsel %vm2052, %v5353, 0
        %v5465 = vsel %vm2052, %v5354, 0
        %v5468 = vsel %vm2052, %v5355, 0
        %v5471 = vsel %vm2052, %v5356, 0
        %v5474 = vsel %vm2052, %v5357, 0
        %v5477 = vsel %vm2052, %v5358, 0
        %v5480 = vsel %vm2052, %v5359, 0
        %v5483 = vsel %vm2052, %v5360, 0
        %v5486 = vsel %vm2052, %v5361, 0
        %v5489 = vsel %vm2052, %v5362, 0
        %v5492 = vsel %vm2052, %v5363, 0
        %v5495 = vsel %vm2052, %v5364, 0
        %v5498 = vsel %vm2052, %v5365, 0
        %v5501 = vsel %vm2052, %v5366, 0
        %v5504 = vsel %vm2052, %v5367, 0
        %v5507 = vsel %vm2052, %v5368, 0
        %v5510 = vsel %vm2052, %v5369, 0
        %v5513 = vsel %vm2052, %v5370, 0
        %v5516 = vsel %vm2052, %v5371, 0
        %v5519 = vsel %vm2052, %v5372, 0
        %v5522 = vsel %vm2052, %v5373, 0
        %v5525 = vsel %vm2052, %v5374, 0
        %v5528 = vsel %vm2052, %v5375, 0
        %v5531 = vsel %vm2052, %v5376, 0
        %5533 = vmatprep.subr.bf16.mxu0 0
        %5534 = vmatpush1.bf16.msra.mxu0 0
        %5535 = vmatprep.subr.bf16.mxu0 0
        %5536 = vmatpush1.bf16.msra.mxu0 0
        %5537 = vmatprep.subr.bf16.mxu0 0
        %5538 = vmatpush1.bf16.msra.mxu0 0
        %5539 = vmatprep.subr.bf16.mxu0 0
        %5540 = vmatpush1.bf16.msra.mxu0 0
        %5541 = vmatprep.subr.bf16.mxu0 %v5428
        %5542 = vmatpush1.bf16.msra.mxu0 %v5427
        %5543 = vmatprep.subr.bf16.mxu0 %v5426
        %5544 = vmatpush1.bf16.msra.mxu0 %v5425
        %5545 = vmatprep.subr.bf16.mxu0 %v5424
        %5546 = vmatpush1.bf16.msra.mxu0 %v5423
        %5547 = vmatprep.subr.bf16.mxu0 %v5422
        %5548 = vmatpush1.bf16.msra.mxu0 %v5421
        %5549 = vmatprep.subr.bf16.mxu0 0
        %5550 = vmatpush2.bf16.msra.mxu0 0
        %5551 = vmatprep.subr.bf16.mxu0 0
        %5552 = vmatpush2.bf16.msra.mxu0 0
        %5553 = vmatprep.subr.bf16.mxu0 0
        %5554 = vmatpush2.bf16.msra.mxu0 0
        %5555 = vmatprep.subr.bf16.mxu0 0
        %5556 = vmatpush2.bf16.msra.mxu0 0
        %5557 = vmatprep.subr.bf16.mxu0 0
        %5558 = vmatpush2.bf16.msra.mxu0 0
        %5559 = vmatprep.subr.bf16.mxu0 0
        %5560 = vmatpush2.bf16.msra.mxu0 0
        %5561 = vmatprep.subr.bf16.mxu0 0
        %5562 = vmatpush2.bf16.msra.mxu0 0
        %5563 = vmatprep.subr.bf16.mxu0 0
        %5564 = vmatpush2.bf16.msra.mxu0 0
        %5565 = vmatprep.mubr.bf16.mxu0 0
        %5566 = vmatmul.mubr.bf16.gmra.mxu0 %v5438
        %v5567 = vpop.f32.mrf.mxu0
        %v5568 = vadd.f32 %v5390, %v5567
        %v5569 = vpop.f32.mrf.mxu0
        %v5570 = vadd.f32 %v5394, %v5569
        %v5571 = vpop.f32.mrf.mxu0
        %v5572 = vadd.f32 %v5390, %v5571
        %v5573 = vpop.f32.mrf.mxu0
        %v5574 = vadd.f32 %v5394, %v5573
        %5575 = vmatprep.mubr.bf16.mxu0 0
        %5576 = vmatmul.mubr.bf16.gmra.mxu0 %v5441
        %v5577 = vpop.f32.mrf.mxu0
        %v5578 = vadd.f32 %v5390, %v5577
        %v5579 = vpop.f32.mrf.mxu0
        %v5580 = vadd.f32 %v5394, %v5579
        %v5581 = vpop.f32.mrf.mxu0
        %v5582 = vadd.f32 %v5390, %v5581
        %v5583 = vpop.f32.mrf.mxu0
        %v5584 = vadd.f32 %v5394, %v5583
        %5585 = vmatprep.mubr.bf16.mxu0 0
        %5586 = vmatmul.mubr.bf16.gmra.mxu0 %v5444
        %v5587 = vpop.f32.mrf.mxu0
        %v5588 = vadd.f32 %v5390, %v5587
        %v5589 = vpop.f32.mrf.mxu0
        %v5590 = vadd.f32 %v5394, %v5589
        %v5591 = vpop.f32.mrf.mxu0
        %v5592 = vadd.f32 %v5390, %v5591
        %v5593 = vpop.f32.mrf.mxu0
        %v5594 = vadd.f32 %v5394, %v5593
        %5595 = vmatprep.mubr.bf16.mxu0 0
        %5596 = vmatmul.mubr.bf16.gmra.mxu0 %v5447
        %v5597 = vpop.f32.mrf.mxu0
        %v5598 = vadd.f32 %v5390, %v5597
        %v5599 = vpop.f32.mrf.mxu0
        %v5600 = vadd.f32 %v5394, %v5599
        %v5601 = vpop.f32.mrf.mxu0
        %v5602 = vadd.f32 %v5390, %v5601
        %v5603 = vpop.f32.mrf.mxu0
        %v5604 = vadd.f32 %v5394, %v5603
        %5605 = vmatprep.mubr.bf16.mxu0 0
        %5606 = vmatmul.mubr.bf16.gmra.mxu0 %v5450
        %v5607 = vpop.f32.mrf.mxu0
        %v5608 = vadd.f32 %v5390, %v5607
        %v5609 = vpop.f32.mrf.mxu0
        %v5610 = vadd.f32 %v5394, %v5609
        %v5611 = vpop.f32.mrf.mxu0
        %v5612 = vadd.f32 %v5390, %v5611
        %v5613 = vpop.f32.mrf.mxu0
        %v5614 = vadd.f32 %v5394, %v5613
        %5615 = vmatprep.mubr.bf16.mxu0 0
        %5616 = vmatmul.mubr.bf16.gmra.mxu0 %v5453
        %v5617 = vpop.f32.mrf.mxu0
        %v5618 = vadd.f32 %v5390, %v5617
        %v5619 = vpop.f32.mrf.mxu0
        %v5620 = vadd.f32 %v5394, %v5619
        %v5621 = vpop.f32.mrf.mxu0
        %v5622 = vadd.f32 %v5390, %v5621
        %v5623 = vpop.f32.mrf.mxu0
        %v5624 = vadd.f32 %v5394, %v5623
        %5625 = vmatprep.mubr.bf16.mxu0 0
        %5626 = vmatmul.mubr.bf16.gmra.mxu0 %v5456
        %v5627 = vpop.f32.mrf.mxu0
        %v5628 = vadd.f32 %v5390, %v5627
        %v5629 = vpop.f32.mrf.mxu0
        %v5630 = vadd.f32 %v5394, %v5629
        %v5631 = vpop.f32.mrf.mxu0
        %v5632 = vadd.f32 %v5390, %v5631
        %v5633 = vpop.f32.mrf.mxu0
        %v5634 = vadd.f32 %v5394, %v5633
        %5635 = vmatprep.mubr.bf16.mxu0 0
        %5636 = vmatmul.mubr.bf16.gmra.mxu0 %v5459
        %v5637 = vpop.f32.mrf.mxu0
        %v5638 = vadd.f32 %v5390, %v5637
        %v5639 = vpop.f32.mrf.mxu0
        %v5640 = vadd.f32 %v5394, %v5639
        %v5641 = vpop.f32.mrf.mxu0
        %v5642 = vadd.f32 %v5390, %v5641
        %v5643 = vpop.f32.mrf.mxu0
        %v5644 = vadd.f32 %v5394, %v5643
        %5645 = vmatprep.mubr.bf16.mxu0 0
        %5646 = vmatmul.mubr.bf16.gmra.mxu0 %v5462
        %v5647 = vpop.f32.mrf.mxu0
        %v5648 = vadd.f32 %v5390, %v5647
        %v5649 = vpop.f32.mrf.mxu0
        %v5650 = vadd.f32 %v5394, %v5649
        %v5651 = vpop.f32.mrf.mxu0
        %v5652 = vadd.f32 %v5390, %v5651
        %v5653 = vpop.f32.mrf.mxu0
        %v5654 = vadd.f32 %v5394, %v5653
        %5655 = vmatprep.mubr.bf16.mxu0 0
        %5656 = vmatmul.mubr.bf16.gmra.mxu0 %v5465
        %v5657 = vpop.f32.mrf.mxu0
        %v5658 = vadd.f32 %v5390, %v5657
        %v5659 = vpop.f32.mrf.mxu0
        %v5660 = vadd.f32 %v5394, %v5659
        %v5661 = vpop.f32.mrf.mxu0
        %v5662 = vadd.f32 %v5390, %v5661
        %v5663 = vpop.f32.mrf.mxu0
        %v5664 = vadd.f32 %v5394, %v5663
        %5665 = vmatprep.mubr.bf16.mxu0 0
        %5666 = vmatmul.mubr.bf16.gmra.mxu0 %v5468
        %v5667 = vpop.f32.mrf.mxu0
        %v5668 = vadd.f32 %v5390, %v5667
        %v5669 = vpop.f32.mrf.mxu0
        %v5670 = vadd.f32 %v5394, %v5669
        %v5671 = vpop.f32.mrf.mxu0
        %v5672 = vadd.f32 %v5390, %v5671
        %v5673 = vpop.f32.mrf.mxu0
        %v5674 = vadd.f32 %v5394, %v5673
        %5675 = vmatprep.mubr.bf16.mxu0 0
        %5676 = vmatmul.mubr.bf16.gmra.mxu0 %v5471
        %v5677 = vpop.f32.mrf.mxu0
        %v5678 = vadd.f32 %v5390, %v5677
        %v5679 = vpop.f32.mrf.mxu0
        %v5680 = vadd.f32 %v5394, %v5679
        %v5681 = vpop.f32.mrf.mxu0
        %v5682 = vadd.f32 %v5390, %v5681
        %v5683 = vpop.f32.mrf.mxu0
        %v5684 = vadd.f32 %v5394, %v5683
        %5685 = vmatprep.mubr.bf16.mxu0 0
        %5686 = vmatmul.mubr.bf16.gmra.mxu0 %v5474
        %v5687 = vpop.f32.mrf.mxu0
        %v5688 = vadd.f32 %v5390, %v5687
        %v5689 = vpop.f32.mrf.mxu0
        %v5690 = vadd.f32 %v5394, %v5689
        %v5691 = vpop.f32.mrf.mxu0
        %v5692 = vadd.f32 %v5390, %v5691
        %v5693 = vpop.f32.mrf.mxu0
        %v5694 = vadd.f32 %v5394, %v5693
        %5695 = vmatprep.mubr.bf16.mxu0 0
        %5696 = vmatmul.mubr.bf16.gmra.mxu0 %v5477
        %v5697 = vpop.f32.mrf.mxu0
        %v5698 = vadd.f32 %v5390, %v5697
        %v5699 = vpop.f32.mrf.mxu0
        %v5700 = vadd.f32 %v5394, %v5699
        %v5701 = vpop.f32.mrf.mxu0
        %v5702 = vadd.f32 %v5390, %v5701
        %v5703 = vpop.f32.mrf.mxu0
        %v5704 = vadd.f32 %v5394, %v5703
        %5705 = vmatprep.mubr.bf16.mxu0 0
        %5706 = vmatmul.mubr.bf16.gmra.mxu0 %v5480
        %v5707 = vpop.f32.mrf.mxu0
        %v5708 = vadd.f32 %v5390, %v5707
        %v5709 = vpop.f32.mrf.mxu0
        %v5710 = vadd.f32 %v5394, %v5709
        %v5711 = vpop.f32.mrf.mxu0
        %v5712 = vadd.f32 %v5390, %v5711
        %v5713 = vpop.f32.mrf.mxu0
        %v5714 = vadd.f32 %v5394, %v5713
        %5715 = vmatprep.mubr.bf16.mxu0 0
        %5716 = vmatmul.mubr.bf16.gmra.mxu0 %v5483
        %v5717 = vpop.f32.mrf.mxu0
        %v5718 = vadd.f32 %v5390, %v5717
        %v5719 = vpop.f32.mrf.mxu0
        %v5720 = vadd.f32 %v5394, %v5719
        %v5721 = vpop.f32.mrf.mxu0
        %v5722 = vadd.f32 %v5390, %v5721
        %v5723 = vpop.f32.mrf.mxu0
        %v5724 = vadd.f32 %v5394, %v5723
        %5725 = vmatprep.mubr.bf16.mxu0 0
        %5726 = vmatmul.mubr.bf16.gmra.mxu0 %v5486
        %v5727 = vpop.f32.mrf.mxu0
        %v5728 = vadd.f32 %v5390, %v5727
        %v5729 = vpop.f32.mrf.mxu0
        %v5730 = vadd.f32 %v5394, %v5729
        %v5731 = vpop.f32.mrf.mxu0
        %v5732 = vadd.f32 %v5390, %v5731
        %v5733 = vpop.f32.mrf.mxu0
        %v5734 = vadd.f32 %v5394, %v5733
        %5735 = vmatprep.mubr.bf16.mxu0 0
        %5736 = vmatmul.mubr.bf16.gmra.mxu0 %v5489
        %v5737 = vpop.f32.mrf.mxu0
        %v5738 = vadd.f32 %v5390, %v5737
        %v5739 = vpop.f32.mrf.mxu0
        %v5740 = vadd.f32 %v5394, %v5739
        %v5741 = vpop.f32.mrf.mxu0
        %v5742 = vadd.f32 %v5390, %v5741
        %v5743 = vpop.f32.mrf.mxu0
        %v5744 = vadd.f32 %v5394, %v5743
        %5745 = vmatprep.mubr.bf16.mxu0 0
        %5746 = vmatmul.mubr.bf16.gmra.mxu0 %v5492
        %v5747 = vpop.f32.mrf.mxu0
        %v5748 = vadd.f32 %v5390, %v5747
        %v5749 = vpop.f32.mrf.mxu0
        %v5750 = vadd.f32 %v5394, %v5749
        %v5751 = vpop.f32.mrf.mxu0
        %v5752 = vadd.f32 %v5390, %v5751
        %v5753 = vpop.f32.mrf.mxu0
        %v5754 = vadd.f32 %v5394, %v5753
        %5755 = vmatprep.mubr.bf16.mxu0 0
        %5756 = vmatmul.mubr.bf16.gmra.mxu0 %v5495
        %v5757 = vpop.f32.mrf.mxu0
        %v5758 = vadd.f32 %v5390, %v5757
        %v5759 = vpop.f32.mrf.mxu0
        %v5760 = vadd.f32 %v5394, %v5759
        %v5761 = vpop.f32.mrf.mxu0
        %v5762 = vadd.f32 %v5390, %v5761
        %v5763 = vpop.f32.mrf.mxu0
        %v5764 = vadd.f32 %v5394, %v5763
        %5765 = vmatprep.mubr.bf16.mxu0 0
        %5766 = vmatmul.mubr.bf16.gmra.mxu0 %v5498
        %v5767 = vpop.f32.mrf.mxu0
        %v5768 = vadd.f32 %v5390, %v5767
        %v5769 = vpop.f32.mrf.mxu0
        %v5770 = vadd.f32 %v5394, %v5769
        %v5771 = vpop.f32.mrf.mxu0
        %v5772 = vadd.f32 %v5390, %v5771
        %v5773 = vpop.f32.mrf.mxu0
        %v5774 = vadd.f32 %v5394, %v5773
        %5775 = vmatprep.mubr.bf16.mxu0 0
        %5776 = vmatmul.mubr.bf16.gmra.mxu0 %v5501
        %v5777 = vpop.f32.mrf.mxu0
        %v5778 = vadd.f32 %v5390, %v5777
        %v5779 = vpop.f32.mrf.mxu0
        %v5780 = vadd.f32 %v5394, %v5779
        %v5781 = vpop.f32.mrf.mxu0
        %v5782 = vadd.f32 %v5390, %v5781
        %v5783 = vpop.f32.mrf.mxu0
        %v5784 = vadd.f32 %v5394, %v5783
        %5785 = vmatprep.mubr.bf16.mxu0 0
        %5786 = vmatmul.mubr.bf16.gmra.mxu0 %v5504
        %v5787 = vpop.f32.mrf.mxu0
        %v5788 = vadd.f32 %v5390, %v5787
        %v5789 = vpop.f32.mrf.mxu0
        %v5790 = vadd.f32 %v5394, %v5789
        %v5791 = vpop.f32.mrf.mxu0
        %v5792 = vadd.f32 %v5390, %v5791
        %v5793 = vpop.f32.mrf.mxu0
        %v5794 = vadd.f32 %v5394, %v5793
        %5795 = vmatprep.mubr.bf16.mxu0 0
        %5796 = vmatmul.mubr.bf16.gmra.mxu0 %v5507
        %v5797 = vpop.f32.mrf.mxu0
        %v5798 = vadd.f32 %v5390, %v5797
        %v5799 = vpop.f32.mrf.mxu0
        %v5800 = vadd.f32 %v5394, %v5799
        %v5801 = vpop.f32.mrf.mxu0
        %v5802 = vadd.f32 %v5390, %v5801
        %v5803 = vpop.f32.mrf.mxu0
        %v5804 = vadd.f32 %v5394, %v5803
        %5805 = vmatprep.mubr.bf16.mxu0 0
        %5806 = vmatmul.mubr.bf16.gmra.mxu0 %v5510
        %v5807 = vpop.f32.mrf.mxu0
        %v5808 = vadd.f32 %v5390, %v5807
        %v5809 = vpop.f32.mrf.mxu0
        %v5810 = vadd.f32 %v5394, %v5809
        %v5811 = vpop.f32.mrf.mxu0
        %v5812 = vadd.f32 %v5390, %v5811
        %v5813 = vpop.f32.mrf.mxu0
        %v5814 = vadd.f32 %v5394, %v5813
        %5815 = vmatprep.mubr.bf16.mxu0 0
        %5816 = vmatmul.mubr.bf16.gmra.mxu0 %v5513
        %v5817 = vpop.f32.mrf.mxu0
        %v5818 = vadd.f32 %v5390, %v5817
        %v5819 = vpop.f32.mrf.mxu0
        %v5820 = vadd.f32 %v5394, %v5819
        %v5821 = vpop.f32.mrf.mxu0
        %v5822 = vadd.f32 %v5390, %v5821
        %v5823 = vpop.f32.mrf.mxu0
        %v5824 = vadd.f32 %v5394, %v5823
        %5825 = vmatprep.mubr.bf16.mxu0 0
        %5826 = vmatmul.mubr.bf16.gmra.mxu0 %v5516
        %v5827 = vpop.f32.mrf.mxu0
        %v5828 = vadd.f32 %v5390, %v5827
        %v5829 = vpop.f32.mrf.mxu0
        %v5830 = vadd.f32 %v5394, %v5829
        %v5831 = vpop.f32.mrf.mxu0
        %v5832 = vadd.f32 %v5390, %v5831
        %v5833 = vpop.f32.mrf.mxu0
        %v5834 = vadd.f32 %v5394, %v5833
        %5835 = vmatprep.mubr.bf16.mxu0 0
        %5836 = vmatmul.mubr.bf16.gmra.mxu0 %v5519
        %v5837 = vpop.f32.mrf.mxu0
        %v5838 = vadd.f32 %v5390, %v5837
        %v5839 = vpop.f32.mrf.mxu0
        %v5840 = vadd.f32 %v5394, %v5839
        %v5841 = vpop.f32.mrf.mxu0
        %v5842 = vadd.f32 %v5390, %v5841
        %v5843 = vpop.f32.mrf.mxu0
        %v5844 = vadd.f32 %v5394, %v5843
        %5845 = vmatprep.mubr.bf16.mxu0 0
        %5846 = vmatmul.mubr.bf16.gmra.mxu0 %v5522
        %v5847 = vpop.f32.mrf.mxu0
        %v5848 = vadd.f32 %v5390, %v5847
        %v5849 = vpop.f32.mrf.mxu0
        %v5850 = vadd.f32 %v5394, %v5849
        %v5851 = vpop.f32.mrf.mxu0
        %v5852 = vadd.f32 %v5390, %v5851
        %v5853 = vpop.f32.mrf.mxu0
        %v5854 = vadd.f32 %v5394, %v5853
        %5855 = vmatprep.mubr.bf16.mxu0 0
        %5856 = vmatmul.mubr.bf16.gmra.mxu0 %v5525
        %v5857 = vpop.f32.mrf.mxu0
        %v5858 = vadd.f32 %v5390, %v5857
        %v5859 = vpop.f32.mrf.mxu0
        %v5860 = vadd.f32 %v5394, %v5859
        %v5861 = vpop.f32.mrf.mxu0
        %v5862 = vadd.f32 %v5390, %v5861
        %v5863 = vpop.f32.mrf.mxu0
        %v5864 = vadd.f32 %v5394, %v5863
        %5865 = vmatprep.mubr.bf16.mxu0 0
        %5866 = vmatmul.mubr.bf16.gmra.mxu0 %v5528
        %v5867 = vpop.f32.mrf.mxu0
        %v5868 = vadd.f32 %v5390, %v5867
        %v5869 = vpop.f32.mrf.mxu0
        %v5870 = vadd.f32 %v5394, %v5869
        %v5871 = vpop.f32.mrf.mxu0
        %v5872 = vadd.f32 %v5390, %v5871
        %v5873 = vpop.f32.mrf.mxu0
        %v5874 = vadd.f32 %v5394, %v5873
        %5875 = vmatprep.mubr.bf16.mxu0 0
        %5876 = vmatmul.mubr.bf16.gmra.mxu0 %v5531
        %v5877 = vpop.f32.mrf.mxu0
        %v5878 = vadd.f32 %v5390, %v5877
        %v5879 = vpop.f32.mrf.mxu0
        %v5880 = vadd.f32 %v5394, %v5879
        %v5881 = vpop.f32.mrf.mxu0
        %v5882 = vadd.f32 %v5390, %v5881
        %v5883 = vpop.f32.mrf.mxu0
        %v5884 = vadd.f32 %v5394, %v5883
        %5885 = vdwg.mxu0
        %v5886 = vld [vmem:[%s452] sm:$0xff]
        %v5887 = vld [vmem:[%s452 + $0x8] sm:$0xff]
        %v5888 = vld [vmem:[%s452 + $0x10] sm:$0xff]
        %v5889 = vld [vmem:[%s452 + $0x18] sm:$0xff]
        %v5890 = vld [vmem:[%s452 + $0x20] sm:$0xff]
        %v5891 = vld [vmem:[%s452 + $0x28] sm:$0xff]
        %v5892 = vld [vmem:[%s452 + $0x30] sm:$0xff]
        %v5893 = vld [vmem:[%s452 + $0x38] sm:$0xff]
        %v5894 = vld [vmem:[%s452 + $0x40] sm:$0xff]
        %v5895 = vld [vmem:[%s452 + $0x48] sm:$0xff]
        %v5896 = vld [vmem:[%s452 + $0x50] sm:$0xff]
        %v5897 = vld [vmem:[%s452 + $0x58] sm:$0xff]
        %v5898 = vld [vmem:[%s452 + $0x60] sm:$0xff]
        %v5899 = vld [vmem:[%s452 + $0x68] sm:$0xff]
        %v5900 = vld [vmem:[%s452 + $0x70] sm:$0xff]
        %v5901 = vld [vmem:[%s452 + $0x78] sm:$0xff]
        %v5902 = vld [vmem:[%s452 + $0x80] sm:$0xff]
        %v5903 = vld [vmem:[%s452 + $0x88] sm:$0xff]
        %v5904 = vld [vmem:[%s452 + $0x90] sm:$0xff]
        %v5905 = vld [vmem:[%s452 + $0x98] sm:$0xff]
        %v5906 = vld [vmem:[%s452 + $0xa0] sm:$0xff]
        %v5907 = vld [vmem:[%s452 + $0xa8] sm:$0xff]
        %v5908 = vld [vmem:[%s452 + $0xb0] sm:$0xff]
        %v5909 = vld [vmem:[%s452 + $0xb8] sm:$0xff]
        %v5910 = vld [vmem:[%s452 + $0xc0] sm:$0xff]
        %v5911 = vld [vmem:[%s452 + $0xc8] sm:$0xff]
        %v5912 = vld [vmem:[%s452 + $0xd0] sm:$0xff]
        %v5913 = vld [vmem:[%s452 + $0xd8] sm:$0xff]
        %v5914 = vld [vmem:[%s452 + $0xe0] sm:$0xff]
        %v5915 = vld [vmem:[%s452 + $0xe8] sm:$0xff]
        %v5916 = vld [vmem:[%s452 + $0xf0] sm:$0xff]
        %v5917 = vld [vmem:[%s452 + $0xf8] sm:$0xff]
        %v5918 = vld [vmem:[%s452 + $0x100] sm:$0xff]
        %v5919 = vld [vmem:[%s452 + $0x108] sm:$0xff]
        %v5920 = vld [vmem:[%s452 + $0x110] sm:$0xff]
        %v5921 = vld [vmem:[%s452 + $0x118] sm:$0xff]
        %v5922 = vld [vmem:[%s452 + $0x120] sm:$0xff]
        %v5923 = vld [vmem:[%s452 + $0x128] sm:$0xff]
        %v5924 = vld [vmem:[%s452 + $0x130] sm:$0xff]
        %v5925 = vld [vmem:[%s452 + $0x138] sm:$0xff]
        %v5926 = vld [vmem:[%s452 + $0x140] sm:$0xff]
        %v5927 = vld [vmem:[%s452 + $0x148] sm:$0xff]
        %v5928 = vld [vmem:[%s452 + $0x150] sm:$0xff]
        %v5929 = vld [vmem:[%s452 + $0x158] sm:$0xff]
        %v5930 = vld [vmem:[%s452 + $0x160] sm:$0xff]
        %v5931 = vld [vmem:[%s452 + $0x168] sm:$0xff]
        %v5932 = vld [vmem:[%s452 + $0x170] sm:$0xff]
        %v5933 = vld [vmem:[%s452 + $0x178] sm:$0xff]
        %v5934 = vld [vmem:[%s452 + $0x180] sm:$0xff]
        %v5935 = vld [vmem:[%s452 + $0x188] sm:$0xff]
        %v5936 = vld [vmem:[%s452 + $0x190] sm:$0xff]
        %v5937 = vld [vmem:[%s452 + $0x198] sm:$0xff]
        %v5938 = vld [vmem:[%s452 + $0x1a0] sm:$0xff]
        %v5939 = vld [vmem:[%s452 + $0x1a8] sm:$0xff]
        %v5940 = vld [vmem:[%s452 + $0x1b0] sm:$0xff]
        %v5941 = vld [vmem:[%s452 + $0x1b8] sm:$0xff]
        %v5942 = vld [vmem:[%s452 + $0x1c0] sm:$0xff]
        %v5943 = vld [vmem:[%s452 + $0x1c8] sm:$0xff]
        %v5944 = vld [vmem:[%s452 + $0x1d0] sm:$0xff]
        %v5945 = vld [vmem:[%s452 + $0x1d8] sm:$0xff]
        %v5946 = vld [vmem:[%s452 + $0x1e0] sm:$0xff]
        %v5947 = vld [vmem:[%s452 + $0x1e8] sm:$0xff]
        %v5948 = vld [vmem:[%s452 + $0x1f0] sm:$0xff]
        %v5949 = vld [vmem:[%s452 + $0x1f8] sm:$0xff]
        %v5950 = vunpack.c.l.bf16 %v5886
        %v5951 = vunpack.c.h.bf16 %v5886
        %v5952 = vunpack.c.l.bf16 %v5887
        %v5953 = vunpack.c.h.bf16 %v5887
        %v5954 = vunpack.c.l.bf16 %v5888
        %v5955 = vunpack.c.h.bf16 %v5888
        %v5956 = vunpack.c.l.bf16 %v5889
        %v5957 = vunpack.c.h.bf16 %v5889
        %v5958 = vunpack.c.l.bf16 %v5890
        %v5959 = vunpack.c.h.bf16 %v5890
        %v5960 = vunpack.c.l.bf16 %v5891
        %v5961 = vunpack.c.h.bf16 %v5891
        %v5962 = vunpack.c.l.bf16 %v5892
        %v5963 = vunpack.c.h.bf16 %v5892
        %v5964 = vunpack.c.l.bf16 %v5893
        %v5965 = vunpack.c.h.bf16 %v5893
        %v5966 = vunpack.c.l.bf16 %v5894
        %v5967 = vunpack.c.h.bf16 %v5894
        %v5968 = vunpack.c.l.bf16 %v5895
        %v5969 = vunpack.c.h.bf16 %v5895
        %v5970 = vunpack.c.l.bf16 %v5896
        %v5971 = vunpack.c.h.bf16 %v5896
        %v5972 = vunpack.c.l.bf16 %v5897
        %v5973 = vunpack.c.h.bf16 %v5897
        %v5974 = vunpack.c.l.bf16 %v5898
        %v5975 = vunpack.c.h.bf16 %v5898
        %v5976 = vunpack.c.l.bf16 %v5899
        %v5977 = vunpack.c.h.bf16 %v5899
        %v5978 = vunpack.c.l.bf16 %v5900
        %v5979 = vunpack.c.h.bf16 %v5900
        %v5980 = vunpack.c.l.bf16 %v5901
        %v5981 = vunpack.c.h.bf16 %v5901
        %v5982 = vunpack.c.l.bf16 %v5902
        %v5983 = vunpack.c.h.bf16 %v5902
        %v5984 = vunpack.c.l.bf16 %v5903
        %v5985 = vunpack.c.h.bf16 %v5903
        %v5986 = vunpack.c.l.bf16 %v5904
        %v5987 = vunpack.c.h.bf16 %v5904
        %v5988 = vunpack.c.l.bf16 %v5905
        %v5989 = vunpack.c.h.bf16 %v5905
        %v5990 = vunpack.c.l.bf16 %v5906
        %v5991 = vunpack.c.h.bf16 %v5906
        %v5992 = vunpack.c.l.bf16 %v5907
        %v5993 = vunpack.c.h.bf16 %v5907
        %v5994 = vunpack.c.l.bf16 %v5908
        %v5995 = vunpack.c.h.bf16 %v5908
        %v5996 = vunpack.c.l.bf16 %v5909
        %v5997 = vunpack.c.h.bf16 %v5909
        %v5998 = vunpack.c.l.bf16 %v5910
        %v5999 = vunpack.c.h.bf16 %v5910
        %v6000 = vunpack.c.l.bf16 %v5911
        %v6001 = vunpack.c.h.bf16 %v5911
        %v6002 = vunpack.c.l.bf16 %v5912
        %v6003 = vunpack.c.h.bf16 %v5912
        %v6004 = vunpack.c.l.bf16 %v5913
        %v6005 = vunpack.c.h.bf16 %v5913
        %v6006 = vunpack.c.l.bf16 %v5914
        %v6007 = vunpack.c.h.bf16 %v5914
        %v6008 = vunpack.c.l.bf16 %v5915
        %v6009 = vunpack.c.h.bf16 %v5915
        %v6010 = vunpack.c.l.bf16 %v5916
        %v6011 = vunpack.c.h.bf16 %v5916
        %v6012 = vunpack.c.l.bf16 %v5917
        %v6013 = vunpack.c.h.bf16 %v5917
        %v6014 = vunpack.c.l.bf16 %v5918
        %v6015 = vunpack.c.h.bf16 %v5918
        %v6016 = vunpack.c.l.bf16 %v5919
        %v6017 = vunpack.c.h.bf16 %v5919
        %v6018 = vunpack.c.l.bf16 %v5920
        %v6019 = vunpack.c.h.bf16 %v5920
        %v6020 = vunpack.c.l.bf16 %v5921
        %v6021 = vunpack.c.h.bf16 %v5921
        %v6022 = vunpack.c.l.bf16 %v5922
        %v6023 = vunpack.c.h.bf16 %v5922
        %v6024 = vunpack.c.l.bf16 %v5923
        %v6025 = vunpack.c.h.bf16 %v5923
        %v6026 = vunpack.c.l.bf16 %v5924
        %v6027 = vunpack.c.h.bf16 %v5924
        %v6028 = vunpack.c.l.bf16 %v5925
        %v6029 = vunpack.c.h.bf16 %v5925
        %v6030 = vunpack.c.l.bf16 %v5926
        %v6031 = vunpack.c.h.bf16 %v5926
        %v6032 = vunpack.c.l.bf16 %v5927
        %v6033 = vunpack.c.h.bf16 %v5927
        %v6034 = vunpack.c.l.bf16 %v5928
        %v6035 = vunpack.c.h.bf16 %v5928
        %v6036 = vunpack.c.l.bf16 %v5929
        %v6037 = vunpack.c.h.bf16 %v5929
        %v6038 = vunpack.c.l.bf16 %v5930
        %v6039 = vunpack.c.h.bf16 %v5930
        %v6040 = vunpack.c.l.bf16 %v5931
        %v6041 = vunpack.c.h.bf16 %v5931
        %v6042 = vunpack.c.l.bf16 %v5932
        %v6043 = vunpack.c.h.bf16 %v5932
        %v6044 = vunpack.c.l.bf16 %v5933
        %v6045 = vunpack.c.h.bf16 %v5933
        %v6046 = vunpack.c.l.bf16 %v5934
        %v6047 = vunpack.c.h.bf16 %v5934
        %v6048 = vunpack.c.l.bf16 %v5935
        %v6049 = vunpack.c.h.bf16 %v5935
        %v6050 = vunpack.c.l.bf16 %v5936
        %v6051 = vunpack.c.h.bf16 %v5936
        %v6052 = vunpack.c.l.bf16 %v5937
        %v6053 = vunpack.c.h.bf16 %v5937
        %v6054 = vunpack.c.l.bf16 %v5938
        %v6055 = vunpack.c.h.bf16 %v5938
        %v6056 = vunpack.c.l.bf16 %v5939
        %v6057 = vunpack.c.h.bf16 %v5939
        %v6058 = vunpack.c.l.bf16 %v5940
        %v6059 = vunpack.c.h.bf16 %v5940
        %v6060 = vunpack.c.l.bf16 %v5941
        %v6061 = vunpack.c.h.bf16 %v5941
        %v6062 = vunpack.c.l.bf16 %v5942
        %v6063 = vunpack.c.h.bf16 %v5942
        %v6064 = vunpack.c.l.bf16 %v5943
        %v6065 = vunpack.c.h.bf16 %v5943
        %v6066 = vunpack.c.l.bf16 %v5944
        %v6067 = vunpack.c.h.bf16 %v5944
        %v6068 = vunpack.c.l.bf16 %v5945
        %v6069 = vunpack.c.h.bf16 %v5945
        %v6070 = vunpack.c.l.bf16 %v5946
        %v6071 = vunpack.c.h.bf16 %v5946
        %v6072 = vunpack.c.l.bf16 %v5947
        %v6073 = vunpack.c.h.bf16 %v5947
        %v6074 = vunpack.c.l.bf16 %v5948
        %v6075 = vunpack.c.h.bf16 %v5948
        %v6076 = vunpack.c.l.bf16 %v5949
        %v6077 = vunpack.c.h.bf16 %v5949
        %v6078 = vadd.f32 %v5568, %v5950
        %v6079 = vadd.f32 %v5570, %v5951
        %v6080 = vadd.f32 %v5572, %v5952
        %v6081 = vadd.f32 %v5574, %v5953
        %v6082 = vadd.f32 %v5578, %v5954
        %v6083 = vadd.f32 %v5580, %v5955
        %v6084 = vadd.f32 %v5582, %v5956
        %v6085 = vadd.f32 %v5584, %v5957
        %v6086 = vadd.f32 %v5588, %v5958
        %v6087 = vadd.f32 %v5590, %v5959
        %v6088 = vadd.f32 %v5592, %v5960
        %v6089 = vadd.f32 %v5594, %v5961
        %v6090 = vadd.f32 %v5598, %v5962
        %v6091 = vadd.f32 %v5600, %v5963
        %v6092 = vadd.f32 %v5602, %v5964
        %v6093 = vadd.f32 %v5604, %v5965
        %v6094 = vadd.f32 %v5608, %v5966
        %v6095 = vadd.f32 %v5610, %v5967
        %v6096 = vadd.f32 %v5612, %v5968
        %v6097 = vadd.f32 %v5614, %v5969
        %v6098 = vadd.f32 %v5618, %v5970
        %v6099 = vadd.f32 %v5620, %v5971
        %v6100 = vadd.f32 %v5622, %v5972
        %v6101 = vadd.f32 %v5624, %v5973
        %v6102 = vadd.f32 %v5628, %v5974
        %v6103 = vadd.f32 %v5630, %v5975
        %v6104 = vadd.f32 %v5632, %v5976
        %v6105 = vadd.f32 %v5634, %v5977
        %v6106 = vadd.f32 %v5638, %v5978
        %v6107 = vadd.f32 %v5640, %v5979
        %v6108 = vadd.f32 %v5642, %v5980
        %v6109 = vadd.f32 %v5644, %v5981
        %v6110 = vadd.f32 %v5648, %v5982
        %v6111 = vadd.f32 %v5650, %v5983
        %v6112 = vadd.f32 %v5652, %v5984
        %v6113 = vadd.f32 %v5654, %v5985
        %v6114 = vadd.f32 %v5658, %v5986
        %v6115 = vadd.f32 %v5660, %v5987
        %v6116 = vadd.f32 %v5662, %v5988
        %v6117 = vadd.f32 %v5664, %v5989
        %v6118 = vadd.f32 %v5668, %v5990
        %v6119 = vadd.f32 %v5670, %v5991
        %v6120 = vadd.f32 %v5672, %v5992
        %v6121 = vadd.f32 %v5674, %v5993
        %v6122 = vadd.f32 %v5678, %v5994
        %v6123 = vadd.f32 %v5680, %v5995
        %v6124 = vadd.f32 %v5682, %v5996
        %v6125 = vadd.f32 %v5684, %v5997
        %v6126 = vadd.f32 %v5688, %v5998
        %v6127 = vadd.f32 %v5690, %v5999
        %v6128 = vadd.f32 %v5692, %v6000
        %v6129 = vadd.f32 %v5694, %v6001
        %v6130 = vadd.f32 %v5698, %v6002
        %v6131 = vadd.f32 %v5700, %v6003
        %v6132 = vadd.f32 %v5702, %v6004
        %v6133 = vadd.f32 %v5704, %v6005
        %v6134 = vadd.f32 %v5708, %v6006
        %v6135 = vadd.f32 %v5710, %v6007
        %v6136 = vadd.f32 %v5712, %v6008
        %v6137 = vadd.f32 %v5714, %v6009
        %v6138 = vadd.f32 %v5718, %v6010
        %v6139 = vadd.f32 %v5720, %v6011
        %v6140 = vadd.f32 %v5722, %v6012
        %v6141 = vadd.f32 %v5724, %v6013
        %v6142 = vadd.f32 %v5728, %v6014
        %v6143 = vadd.f32 %v5730, %v6015
        %v6144 = vadd.f32 %v5732, %v6016
        %v6145 = vadd.f32 %v5734, %v6017
        %v6146 = vadd.f32 %v5738, %v6018
        %v6147 = vadd.f32 %v5740, %v6019
        %v6148 = vadd.f32 %v5742, %v6020
        %v6149 = vadd.f32 %v5744, %v6021
        %v6150 = vadd.f32 %v5748, %v6022
        %v6151 = vadd.f32 %v5750, %v6023
        %v6152 = vadd.f32 %v5752, %v6024
        %v6153 = vadd.f32 %v5754, %v6025
        %v6154 = vadd.f32 %v5758, %v6026
        %v6155 = vadd.f32 %v5760, %v6027
        %v6156 = vadd.f32 %v5762, %v6028
        %v6157 = vadd.f32 %v5764, %v6029
        %v6158 = vadd.f32 %v5768, %v6030
        %v6159 = vadd.f32 %v5770, %v6031
        %v6160 = vadd.f32 %v5772, %v6032
        %v6161 = vadd.f32 %v5774, %v6033
        %v6162 = vadd.f32 %v5778, %v6034
        %v6163 = vadd.f32 %v5780, %v6035
        %v6164 = vadd.f32 %v5782, %v6036
        %v6165 = vadd.f32 %v5784, %v6037
        %v6166 = vadd.f32 %v5788, %v6038
        %v6167 = vadd.f32 %v5790, %v6039
        %v6168 = vadd.f32 %v5792, %v6040
        %v6169 = vadd.f32 %v5794, %v6041
        %v6170 = vadd.f32 %v5798, %v6042
        %v6171 = vadd.f32 %v5800, %v6043
        %v6172 = vadd.f32 %v5802, %v6044
        %v6173 = vadd.f32 %v5804, %v6045
        %v6174 = vadd.f32 %v5808, %v6046
        %v6175 = vadd.f32 %v5810, %v6047
        %v6176 = vadd.f32 %v5812, %v6048
        %v6177 = vadd.f32 %v5814, %v6049
        %v6178 = vadd.f32 %v5818, %v6050
        %v6179 = vadd.f32 %v5820, %v6051
        %v6180 = vadd.f32 %v5822, %v6052
        %v6181 = vadd.f32 %v5824, %v6053
        %v6182 = vadd.f32 %v5828, %v6054
        %v6183 = vadd.f32 %v5830, %v6055
        %v6184 = vadd.f32 %v5832, %v6056
        %v6185 = vadd.f32 %v5834, %v6057
        %v6186 = vadd.f32 %v5838, %v6058
        %v6187 = vadd.f32 %v5840, %v6059
        %v6188 = vadd.f32 %v5842, %v6060
        %v6189 = vadd.f32 %v5844, %v6061
        %v6190 = vadd.f32 %v5848, %v6062
        %v6191 = vadd.f32 %v5850, %v6063
        %v6192 = vadd.f32 %v5852, %v6064
        %v6193 = vadd.f32 %v5854, %v6065
        %v6194 = vadd.f32 %v5858, %v6066
        %v6195 = vadd.f32 %v5860, %v6067
        %v6196 = vadd.f32 %v5862, %v6068
        %v6197 = vadd.f32 %v5864, %v6069
        %v6198 = vadd.f32 %v5868, %v6070
        %v6199 = vadd.f32 %v5870, %v6071
        %v6200 = vadd.f32 %v5872, %v6072
        %v6201 = vadd.f32 %v5874, %v6073
        %v6202 = vadd.f32 %v5878, %v6074
        %v6203 = vadd.f32 %v5880, %v6075
        %v6204 = vadd.f32 %v5882, %v6076
        %v6205 = vadd.f32 %v5884, %v6077
        %v6206 = vmax.f32 %v6078, 0.0
        %v6207 = vmax.f32 %v6079, 0.0
        %v6208 = vmax.f32 %v6080, 0.0
        %v6209 = vmax.f32 %v6081, 0.0
        %v6210 = vmax.f32 %v6082, 0.0
        %v6211 = vmax.f32 %v6083, 0.0
        %v6212 = vmax.f32 %v6084, 0.0
        %v6213 = vmax.f32 %v6085, 0.0
        %v6214 = vmax.f32 %v6086, 0.0
        %v6215 = vmax.f32 %v6087, 0.0
        %v6216 = vmax.f32 %v6088, 0.0
        %v6217 = vmax.f32 %v6089, 0.0
        %v6218 = vmax.f32 %v6090, 0.0
        %v6219 = vmax.f32 %v6091, 0.0
        %v6220 = vmax.f32 %v6092, 0.0
        %v6221 = vmax.f32 %v6093, 0.0
        %v6222 = vmax.f32 %v6094, 0.0
        %v6223 = vmax.f32 %v6095, 0.0
        %v6224 = vmax.f32 %v6096, 0.0
        %v6225 = vmax.f32 %v6097, 0.0
        %v6226 = vmax.f32 %v6098, 0.0
        %v6227 = vmax.f32 %v6099, 0.0
        %v6228 = vmax.f32 %v6100, 0.0
        %v6229 = vmax.f32 %v6101, 0.0
        %v6230 = vmax.f32 %v6102, 0.0
        %v6231 = vmax.f32 %v6103, 0.0
        %v6232 = vmax.f32 %v6104, 0.0
        %v6233 = vmax.f32 %v6105, 0.0
        %v6234 = vmax.f32 %v6106, 0.0
        %v6235 = vmax.f32 %v6107, 0.0
        %v6236 = vmax.f32 %v6108, 0.0
        %v6237 = vmax.f32 %v6109, 0.0
        %v6238 = vmax.f32 %v6110, 0.0
        %v6239 = vmax.f32 %v6111, 0.0
        %v6240 = vmax.f32 %v6112, 0.0
        %v6241 = vmax.f32 %v6113, 0.0
        %v6242 = vmax.f32 %v6114, 0.0
        %v6243 = vmax.f32 %v6115, 0.0
        %v6244 = vmax.f32 %v6116, 0.0
        %v6245 = vmax.f32 %v6117, 0.0
        %v6246 = vmax.f32 %v6118, 0.0
        %v6247 = vmax.f32 %v6119, 0.0
        %v6248 = vmax.f32 %v6120, 0.0
        %v6249 = vmax.f32 %v6121, 0.0
        %v6250 = vmax.f32 %v6122, 0.0
        %v6251 = vmax.f32 %v6123, 0.0
        %v6252 = vmax.f32 %v6124, 0.0
        %v6253 = vmax.f32 %v6125, 0.0
        %v6254 = vmax.f32 %v6126, 0.0
        %v6255 = vmax.f32 %v6127, 0.0
        %v6256 = vmax.f32 %v6128, 0.0
        %v6257 = vmax.f32 %v6129, 0.0
        %v6258 = vmax.f32 %v6130, 0.0
        %v6259 = vmax.f32 %v6131, 0.0
        %v6260 = vmax.f32 %v6132, 0.0
        %v6261 = vmax.f32 %v6133, 0.0
        %v6262 = vmax.f32 %v6134, 0.0
        %v6263 = vmax.f32 %v6135, 0.0
        %v6264 = vmax.f32 %v6136, 0.0
        %v6265 = vmax.f32 %v6137, 0.0
        %v6266 = vmax.f32 %v6138, 0.0
        %v6267 = vmax.f32 %v6139, 0.0
        %v6268 = vmax.f32 %v6140, 0.0
        %v6269 = vmax.f32 %v6141, 0.0
        %v6270 = vmax.f32 %v6142, 0.0
        %v6271 = vmax.f32 %v6143, 0.0
        %v6272 = vmax.f32 %v6144, 0.0
        %v6273 = vmax.f32 %v6145, 0.0
        %v6274 = vmax.f32 %v6146, 0.0
        %v6275 = vmax.f32 %v6147, 0.0
        %v6276 = vmax.f32 %v6148, 0.0
        %v6277 = vmax.f32 %v6149, 0.0
        %v6278 = vmax.f32 %v6150, 0.0
        %v6279 = vmax.f32 %v6151, 0.0
        %v6280 = vmax.f32 %v6152, 0.0
        %v6281 = vmax.f32 %v6153, 0.0
        %v6282 = vmax.f32 %v6154, 0.0
        %v6283 = vmax.f32 %v6155, 0.0
        %v6284 = vmax.f32 %v6156, 0.0
        %v6285 = vmax.f32 %v6157, 0.0
        %v6286 = vmax.f32 %v6158, 0.0
        %v6287 = vmax.f32 %v6159, 0.0
        %v6288 = vmax.f32 %v6160, 0.0
        %v6289 = vmax.f32 %v6161, 0.0
        %v6290 = vmax.f32 %v6162, 0.0
        %v6291 = vmax.f32 %v6163, 0.0
        %v6292 = vmax.f32 %v6164, 0.0
        %v6293 = vmax.f32 %v6165, 0.0
        %v6294 = vmax.f32 %v6166, 0.0
        %v6295 = vmax.f32 %v6167, 0.0
        %v6296 = vmax.f32 %v6168, 0.0
        %v6297 = vmax.f32 %v6169, 0.0
        %v6298 = vmax.f32 %v6170, 0.0
        %v6299 = vmax.f32 %v6171, 0.0
        %v6300 = vmax.f32 %v6172, 0.0
        %v6301 = vmax.f32 %v6173, 0.0
        %v6302 = vmax.f32 %v6174, 0.0
        %v6303 = vmax.f32 %v6175, 0.0
        %v6304 = vmax.f32 %v6176, 0.0
        %v6305 = vmax.f32 %v6177, 0.0
        %v6306 = vmax.f32 %v6178, 0.0
        %v6307 = vmax.f32 %v6179, 0.0
        %v6308 = vmax.f32 %v6180, 0.0
        %v6309 = vmax.f32 %v6181, 0.0
        %v6310 = vmax.f32 %v6182, 0.0
        %v6311 = vmax.f32 %v6183, 0.0
        %v6312 = vmax.f32 %v6184, 0.0
        %v6313 = vmax.f32 %v6185, 0.0
        %v6314 = vmax.f32 %v6186, 0.0
        %v6315 = vmax.f32 %v6187, 0.0
        %v6316 = vmax.f32 %v6188, 0.0
        %v6317 = vmax.f32 %v6189, 0.0
        %v6318 = vmax.f32 %v6190, 0.0
        %v6319 = vmax.f32 %v6191, 0.0
        %v6320 = vmax.f32 %v6192, 0.0
        %v6321 = vmax.f32 %v6193, 0.0
        %v6322 = vmax.f32 %v6194, 0.0
        %v6323 = vmax.f32 %v6195, 0.0
        %v6324 = vmax.f32 %v6196, 0.0
        %v6325 = vmax.f32 %v6197, 0.0
        %v6326 = vmax.f32 %v6198, 0.0
        %v6327 = vmax.f32 %v6199, 0.0
        %v6328 = vmax.f32 %v6200, 0.0
        %v6329 = vmax.f32 %v6201, 0.0
        %v6330 = vmax.f32 %v6202, 0.0
        %v6331 = vmax.f32 %v6203, 0.0
        %v6332 = vmax.f32 %v6204, 0.0
        %v6333 = vmax.f32 %v6205, 0.0
        %6334 = vst [vmem:[%s442] sm:$0xff] %v6206
        %6335 = vst [vmem:[%s442 + $0x8] sm:$0xff] %v6207
        %6336 = vst [vmem:[%s442 + $0x10] sm:$0xff] %v6208
        %6337 = vst [vmem:[%s442 + $0x18] sm:$0xff] %v6209
        %6338 = vst [vmem:[%s442 + $0x20] sm:$0xff] %v6210
        %6339 = vst [vmem:[%s442 + $0x28] sm:$0xff] %v6211
        %6340 = vst [vmem:[%s442 + $0x30] sm:$0xff] %v6212
        %6341 = vst [vmem:[%s442 + $0x38] sm:$0xff] %v6213
        %6342 = vst [vmem:[%s442 + $0x40] sm:$0xff] %v6214
        %6343 = vst [vmem:[%s442 + $0x48] sm:$0xff] %v6215
        %6344 = vst [vmem:[%s442 + $0x50] sm:$0xff] %v6216
        %6345 = vst [vmem:[%s442 + $0x58] sm:$0xff] %v6217
        %6346 = vst [vmem:[%s442 + $0x60] sm:$0xff] %v6218
        %6347 = vst [vmem:[%s442 + $0x68] sm:$0xff] %v6219
        %6348 = vst [vmem:[%s442 + $0x70] sm:$0xff] %v6220
        %6349 = vst [vmem:[%s442 + $0x78] sm:$0xff] %v6221
        %6350 = vst [vmem:[%s442 + $0x80] sm:$0xff] %v6222
        %6351 = vst [vmem:[%s442 + $0x88] sm:$0xff] %v6223
        %6352 = vst [vmem:[%s442 + $0x90] sm:$0xff] %v6224
        %6353 = vst [vmem:[%s442 + $0x98] sm:$0xff] %v6225
        %6354 = vst [vmem:[%s442 + $0xa0] sm:$0xff] %v6226
        %6355 = vst [vmem:[%s442 + $0xa8] sm:$0xff] %v6227
        %6356 = vst [vmem:[%s442 + $0xb0] sm:$0xff] %v6228
        %6357 = vst [vmem:[%s442 + $0xb8] sm:$0xff] %v6229
        %6358 = vst [vmem:[%s442 + $0xc0] sm:$0xff] %v6230
        %6359 = vst [vmem:[%s442 + $0xc8] sm:$0xff] %v6231
        %6360 = vst [vmem:[%s442 + $0xd0] sm:$0xff] %v6232
        %6361 = vst [vmem:[%s442 + $0xd8] sm:$0xff] %v6233
        %6362 = vst [vmem:[%s442 + $0xe0] sm:$0xff] %v6234
        %6363 = vst [vmem:[%s442 + $0xe8] sm:$0xff] %v6235
        %6364 = vst [vmem:[%s442 + $0xf0] sm:$0xff] %v6236
        %6365 = vst [vmem:[%s442 + $0xf8] sm:$0xff] %v6237
        %6366 = vst [vmem:[%s442 + $0x100] sm:$0xff] %v6238
        %6367 = vst [vmem:[%s442 + $0x108] sm:$0xff] %v6239
        %6368 = vst [vmem:[%s442 + $0x110] sm:$0xff] %v6240
        %6369 = vst [vmem:[%s442 + $0x118] sm:$0xff] %v6241
        %6370 = vst [vmem:[%s442 + $0x120] sm:$0xff] %v6242
        %6371 = vst [vmem:[%s442 + $0x128] sm:$0xff] %v6243
        %6372 = vst [vmem:[%s442 + $0x130] sm:$0xff] %v6244
        %6373 = vst [vmem:[%s442 + $0x138] sm:$0xff] %v6245
        %6374 = vst [vmem:[%s442 + $0x140] sm:$0xff] %v6246
        %6375 = vst [vmem:[%s442 + $0x148] sm:$0xff] %v6247
        %6376 = vst [vmem:[%s442 + $0x150] sm:$0xff] %v6248
        %6377 = vst [vmem:[%s442 + $0x158] sm:$0xff] %v6249
        %6378 = vst [vmem:[%s442 + $0x160] sm:$0xff] %v6250
        %6379 = vst [vmem:[%s442 + $0x168] sm:$0xff] %v6251
        %6380 = vst [vmem:[%s442 + $0x170] sm:$0xff] %v6252
        %6381 = vst [vmem:[%s442 + $0x178] sm:$0xff] %v6253
        %6382 = vst [vmem:[%s442 + $0x180] sm:$0xff] %v6254
        %6383 = vst [vmem:[%s442 + $0x188] sm:$0xff] %v6255
        %6384 = vst [vmem:[%s442 + $0x190] sm:$0xff] %v6256
        %6385 = vst [vmem:[%s442 + $0x198] sm:$0xff] %v6257
        %6386 = vst [vmem:[%s442 + $0x1a0] sm:$0xff] %v6258
        %6387 = vst [vmem:[%s442 + $0x1a8] sm:$0xff] %v6259
        %6388 = vst [vmem:[%s442 + $0x1b0] sm:$0xff] %v6260
        %6389 = vst [vmem:[%s442 + $0x1b8] sm:$0xff] %v6261
        %6390 = vst [vmem:[%s442 + $0x1c0] sm:$0xff] %v6262
        %6391 = vst [vmem:[%s442 + $0x1c8] sm:$0xff] %v6263
        %6392 = vst [vmem:[%s442 + $0x1d0] sm:$0xff] %v6264
        %6393 = vst [vmem:[%s442 + $0x1d8] sm:$0xff] %v6265
        %6394 = vst [vmem:[%s442 + $0x1e0] sm:$0xff] %v6266
        %6395 = vst [vmem:[%s442 + $0x1e8] sm:$0xff] %v6267
        %6396 = vst [vmem:[%s442 + $0x1f0] sm:$0xff] %v6268
        %6397 = vst [vmem:[%s442 + $0x1f8] sm:$0xff] %v6269
        %6398 = vst [vmem:[%s442 + $0x200] sm:$0xff] %v6270
        %6399 = vst [vmem:[%s442 + $0x208] sm:$0xff] %v6271
        %6400 = vst [vmem:[%s442 + $0x210] sm:$0xff] %v6272
        %6401 = vst [vmem:[%s442 + $0x218] sm:$0xff] %v6273
        %6402 = vst [vmem:[%s442 + $0x220] sm:$0xff] %v6274
        %6403 = vst [vmem:[%s442 + $0x228] sm:$0xff] %v6275
        %6404 = vst [vmem:[%s442 + $0x230] sm:$0xff] %v6276
        %6405 = vst [vmem:[%s442 + $0x238] sm:$0xff] %v6277
        %6406 = vst [vmem:[%s442 + $0x240] sm:$0xff] %v6278
        %6407 = vst [vmem:[%s442 + $0x248] sm:$0xff] %v6279
        %6408 = vst [vmem:[%s442 + $0x250] sm:$0xff] %v6280
        %6409 = vst [vmem:[%s442 + $0x258] sm:$0xff] %v6281
        %6410 = vst [vmem:[%s442 + $0x260] sm:$0xff] %v6282
        %6411 = vst [vmem:[%s442 + $0x268] sm:$0xff] %v6283
        %6412 = vst [vmem:[%s442 + $0x270] sm:$0xff] %v6284
        %6413 = vst [vmem:[%s442 + $0x278] sm:$0xff] %v6285
        %6414 = vst [vmem:[%s442 + $0x280] sm:$0xff] %v6286
        %6415 = vst [vmem:[%s442 + $0x288] sm:$0xff] %v6287
        %6416 = vst [vmem:[%s442 + $0x290] sm:$0xff] %v6288
        %6417 = vst [vmem:[%s442 + $0x298] sm:$0xff] %v6289
        %6418 = vst [vmem:[%s442 + $0x2a0] sm:$0xff] %v6290
        %6419 = vst [vmem:[%s442 + $0x2a8] sm:$0xff] %v6291
        %6420 = vst [vmem:[%s442 + $0x2b0] sm:$0xff] %v6292
        %6421 = vst [vmem:[%s442 + $0x2b8] sm:$0xff] %v6293
        %6422 = vst [vmem:[%s442 + $0x2c0] sm:$0xff] %v6294
        %6423 = vst [vmem:[%s442 + $0x2c8] sm:$0xff] %v6295
        %6424 = vst [vmem:[%s442 + $0x2d0] sm:$0xff] %v6296
        %6425 = vst [vmem:[%s442 + $0x2d8] sm:$0xff] %v6297
        %6426 = vst [vmem:[%s442 + $0x2e0] sm:$0xff] %v6298
        %6427 = vst [vmem:[%s442 + $0x2e8] sm:$0xff] %v6299
        %6428 = vst [vmem:[%s442 + $0x2f0] sm:$0xff] %v6300
        %6429 = vst [vmem:[%s442 + $0x2f8] sm:$0xff] %v6301
        %6430 = vst [vmem:[%s442 + $0x300] sm:$0xff] %v6302
        %6431 = vst [vmem:[%s442 + $0x308] sm:$0xff] %v6303
        %6432 = vst [vmem:[%s442 + $0x310] sm:$0xff] %v6304
        %6433 = vst [vmem:[%s442 + $0x318] sm:$0xff] %v6305
        %6434 = vst [vmem:[%s442 + $0x320] sm:$0xff] %v6306
        %6435 = vst [vmem:[%s442 + $0x328] sm:$0xff] %v6307
        %6436 = vst [vmem:[%s442 + $0x330] sm:$0xff] %v6308
        %6437 = vst [vmem:[%s442 + $0x338] sm:$0xff] %v6309
        %6438 = vst [vmem:[%s442 + $0x340] sm:$0xff] %v6310
        %6439 = vst [vmem:[%s442 + $0x348] sm:$0xff] %v6311
        %6440 = vst [vmem:[%s442 + $0x350] sm:$0xff] %v6312
        %6441 = vst [vmem:[%s442 + $0x358] sm:$0xff] %v6313
        %6442 = vst [vmem:[%s442 + $0x360] sm:$0xff] %v6314
        %6443 = vst [vmem:[%s442 + $0x368] sm:$0xff] %v6315
        %6444 = vst [vmem:[%s442 + $0x370] sm:$0xff] %v6316
        %6445 = vst [vmem:[%s442 + $0x378] sm:$0xff] %v6317
        %6446 = vst [vmem:[%s442 + $0x380] sm:$0xff] %v6318
        %6447 = vst [vmem:[%s442 + $0x388] sm:$0xff] %v6319
        %6448 = vst [vmem:[%s442 + $0x390] sm:$0xff] %v6320
        %6449 = vst [vmem:[%s442 + $0x398] sm:$0xff] %v6321
        %6450 = vst [vmem:[%s442 + $0x3a0] sm:$0xff] %v6322
        %6451 = vst [vmem:[%s442 + $0x3a8] sm:$0xff] %v6323
        %6452 = vst [vmem:[%s442 + $0x3b0] sm:$0xff] %v6324
        %6453 = vst [vmem:[%s442 + $0x3b8] sm:$0xff] %v6325
        %6454 = vst [vmem:[%s442 + $0x3c0] sm:$0xff] %v6326
        %6455 = vst [vmem:[%s442 + $0x3c8] sm:$0xff] %v6327
        %6456 = vst [vmem:[%s442 + $0x3d0] sm:$0xff] %v6328
        %6457 = vst [vmem:[%s442 + $0x3d8] sm:$0xff] %v6329
        %6458 = vst [vmem:[%s442 + $0x3e0] sm:$0xff] %v6330
        %6459 = vst [vmem:[%s442 + $0x3e8] sm:$0xff] %v6331
        %6460 = vst [vmem:[%s442 + $0x3f0] sm:$0xff] %v6332
        %6461 = vst [vmem:[%s442 + $0x3f8] sm:$0xff] %v6333
        %s6462 = sand.u32 %s271, 1
        %s6463 = scalar_lea.sflag [#allocation4], %s6462
        %s6464 = sand.u32 %s271, 1
        %s6465 = smul.addr %s6464, 1024
        %s6466 = scalar_lea.vmem [#allocation3], %s6465
        // Predicated region
        $region57: #{bottleneck_pallas.1} parent=55 // pred_check
          %p6467 = pneg %p281
        $region58: #{bottleneck_pallas.1} parent=55 // pred_check_branch
          %6469 = sbr.rel (%p6467) target = $region60
        $region59: #{bottleneck_pallas.1} parent=55 // pred_region
          %s6470 = smul.u32 16, %s28
          %s6472 = ssub.s32 16384, 16384
          %6473 = vsyncadd %s6463, %s6472
          %s6474 = smul.addr %s6470, 8
          %s6475 = smul.addr %s27, 256
          %s6476 = sadd.s32 %s6474, %s6475
          %s6477 = smul.addr %s6476, 128
          %s6478 = scalar_lea.hbm %s9, %s6477
          %s6479 = sshll.u32 %s6466, 4
          %s6480 = int_to_ptr.vmem [resolvable:$true] %s6479
          %6485 = dma.vmem_to_hbm [thread:$0]  %s6480, 16384, %s6478, %s6463, 256, 256, 16
        $region60: #{bottleneck_pallas.1} parent=55 // pred_fallthru
          _
      $region56: #{bottleneck_pallas.1} parent=5 // pred_fallthru
        _
      %p6486 = scmp.le.s32.totalorder 2, %s18
      // Predicated region
      $region61: #{bottleneck_pallas.1} parent=5 // pred_check
        %p6487 = pneg %p6486
      $region62: #{bottleneck_pallas.1} parent=5 // pred_check_branch
        %6489 = sbr.rel (%p6487) target = $region64
      $region63: #{bottleneck_pallas.1} parent=5 // pred_region
        %s6490 = ssub.s32 %s18, 2
        // Predicated region
        $region65: #{bottleneck_pallas.1} parent=63 // pred_check
          %p6491 = pneg %p287
        $region66: #{bottleneck_pallas.1} parent=63 // pred_check_branch
          %6493 = sbr.rel (%p6491) target = $region68
        $region67: #{bottleneck_pallas.1} parent=63 // pred_region
          %s6494 = sand.u32 %s272, 1
          %s6495 = scalar_lea.sflag [#allocation4], %s6494
          %s6496 = sand.u32 %s272, 1
          %s6497 = smul.addr %s6496, 1024
          %s6498 = scalar_lea.vmem [#allocation3], %s6497
          %6499 = dma.done %s6495, 16384
        $region68: #{bottleneck_pallas.1} parent=63 // pred_fallthru
          _
      $region64: #{bottleneck_pallas.1} parent=5 // pred_fallthru
        _
    $region6: #{bottleneck_pallas.1} parent=1 // loop_footer
      %s22 = sadd.s32 1, %s18
    $region7: #{bottleneck_pallas.1} parent=1 // loop_footer_branch
      %17 = sbr.rel target = $region3
    $region8: #{bottleneck_pallas.1} parent=1 // loop_exit
      _
    %6500 = vsyncpa [#allocation4], 1
    %s6501 = scalar_lea.sflag [#allocation4], 1
    %6502 = vsyncpa %s6501, 1

</llo_original>
